<compile_context>
chip_gen: v5e
topology: v5e:2x2
jax: 0.10.0
libtpu: 0.0.40
codegen_flags: <defaults>
</compile_context>

<pallas_src>
import functools

import jax
import jax.numpy as jnp
from jax.experimental import pallas as pl
from jax.experimental.pallas import tpu as pltpu


# ----------------------------- in-kernel math helpers -----------------------------

def _layer_norm(x, gamma, beta, eps=1e-6):
    # x: [T, D] f32, gamma/beta: [1, D] f32.  Exact reciprocal (review: approx only for softmax).
    mean = jnp.mean(x, axis=-1, keepdims=True)
    # torch.Tensor.std is unbiased (ddof=1) by default.
    var = jnp.sum((x - mean) ** 2, axis=-1, keepdims=True) / (x.shape[-1] - 1)
    return gamma * (x - mean) / (jnp.sqrt(var) + eps) + beta


def _mha_core(q_f32, k_f32, v_f32, bias, n_head):
    """Batched-head attention.  q_f32: [Tq, D], k_f32/v_f32: [Tk, D] (f32 accumulators),
    bias: additive mask bias broadcastable to [Tq, Tk] (0 = keep, -1e9 = masked).
    The 1/sqrt(d_k) scale is already folded into the Q projection weights.
    Returns merged heads [Tq, D] in bf16 (pre output-projection)."""
    _, d_model = q_f32.shape
    d_k = d_model // n_head

    # TODO(synk): at production shapes (d_model multiple of 128) replace the lane-slice
    # stack/concat with pltpu.einshape-style relayouts and pack heads along the MXU K dim.
    def split_heads(t):  # [T, D] f32 -> [H, T, d_k] bf16, cast per slice at point of use
        return jnp.stack(
            [t[:, h * d_k:(h + 1) * d_k].astype(jnp.bfloat16) for h in range(n_head)],
            axis=0)

    qh, kh, vh = split_heads(q_f32), split_heads(k_f32), split_heads(v_f32)

    # One batched NT matmul for all heads, f32 accumulation on the MXU.
    s = jnp.einsum("hqd,hkd->hqk", qh, kh, preferred_element_type=jnp.float32)
    s = s + bias[None]                       # single additive-bias pass (no where/select)
    s = s - jnp.max(s, axis=-1, keepdims=True)
    p = jnp.exp(s)
    p = p * pl.reciprocal(jnp.sum(p, axis=-1, keepdims=True), approx=True)

    oh = jnp.einsum("hqk,hkd->hqd", p.astype(jnp.bfloat16), vh,
                    preferred_element_type=jnp.float32)      # [H, Tq, d_k] f32
    return jnp.concatenate([oh[h] for h in range(n_head)], axis=-1).astype(jnp.bfloat16)


# ----------------------------------- Pallas kernel -----------------------------------

def _decoder_layer_kernel(
    decq_ref, deckv_ref, enc_ref, sbias_ref,
    # self-attention (scaled Wq + fused KV) + norm1
    wq1_ref, bq1_ref, wkv1_ref, bkv1_ref, wo1_ref, bo1_ref, g1_ref, be1_ref,
    # cross-attention (scaled Wq + fused KV) + norm2
    wq2_ref, bq2_ref, wkv2_ref, bkv2_ref, wo2_ref, bo2_ref, g2_ref, be2_ref,
    # position-wise FFN + norm3
    wf1_ref, bf1_ref, wf2_ref, bf2_ref, g3_ref, be3_ref,
    out_ref, *, n_head):

    d_model = decq_ref.shape[-1]
    tq = decq_ref.shape[1]
    s_kv = deckv_ref.shape[1]

    x = decq_ref[0]                                  # [tq, D]     f32 (residual path stays f32)
    dec_kv = deckv_ref[0].astype(jnp.bfloat16)       # [S, D]      bf16 matmul operand
    enc = enc_ref[0]                                 # [S_enc, D]  bf16 (shipped bf16)
    sbias = sbias_ref[0]                             # [1, S_enc]  f32 additive padding bias

    # Causal (tgt) mask generated in-kernel: keep key j for global query row i iff j <= i.
    q_off = pl.program_id(1) * tq
    rows = q_off + jax.lax.broadcasted_iota(jnp.int32, (tq, s_kv), 0)
    cols = jax.lax.broadcasted_iota(jnp.int32, (tq, s_kv), 1)
    tbias = jnp.where(rows >= cols, 0.0, -1e9).astype(jnp.float32)

    # --- self attention (dropout = identity) + residual + norm1 ---
    res = x
    q = jnp.dot(x.astype(jnp.bfloat16), wq1_ref[...],
                preferred_element_type=jnp.float32) + bq1_ref[...]
    # NOTE: K/V projection uses the full per-batch block (recomputed per query tile when
    # the q grid has >1 step; a production kernel would hoist it or use KV-tiled flash).
    kv = jnp.dot(dec_kv, wkv1_ref[...],
                 preferred_element_type=jnp.float32) + bkv1_ref[...]
    attn = _mha_core(q, kv[:, :d_model], kv[:, d_model:], tbias, n_head)
    y = jnp.dot(attn, wo1_ref[...], preferred_element_type=jnp.float32) + bo1_ref[...]
    x = _layer_norm(y + res, g1_ref[...], be1_ref[...])

    # --- cross attention over encoder output + residual + norm2 ---
    res = x
    q = jnp.dot(x.astype(jnp.bfloat16), wq2_ref[...],
                preferred_element_type=jnp.float32) + bq2_ref[...]
    kv = jnp.dot(enc, wkv2_ref[...],
                 preferred_element_type=jnp.float32) + bkv2_ref[...]
    attn = _mha_core(q, kv[:, :d_model], kv[:, d_model:], sbias, n_head)
    y = jnp.dot(attn, wo2_ref[...], preferred_element_type=jnp.float32) + bo2_ref[...]
    x = _layer_norm(y + res, g2_ref[...], be2_ref[...])

    # --- position-wise feed-forward (Linear -> ReLU -> Linear) + residual + norm3 ---
    # TODO(synk): for production d_ff, chunk this matmul over d_ff tiles (v7x 64 MiB VMEM).
    res = x
    h = jnp.dot(x.astype(jnp.bfloat16), wf1_ref[...],
                preferred_element_type=jnp.float32) + bf1_ref[...]
    h = jnp.maximum(h, 0.0)
    y = jnp.dot(h.astype(jnp.bfloat16), wf2_ref[...],
                preferred_element_type=jnp.float32) + bf2_ref[...]
    x = _layer_norm(y + res, g3_ref[...], be3_ref[...])

    out_ref[0] = x.astype(out_ref.dtype)


# ------------------------------------- host wrapper -------------------------------------

_WEIGHT_ORDER = [
    "wq1", "bq1", "wkv1", "bkv1", "wo1", "bo1", "g1", "beta1",
    "wq2", "bq2", "wkv2", "bkv2", "wo2", "bo2", "g2", "beta2",
    "wf1", "bf1", "wf2", "bf2", "g3", "beta3",
]


def _prep_weights(p, n_head):
    """Fuse KV projection weights, fold 1/sqrt(d_k) into the Q projections,
    and pre-cast matmul weights to bf16 (halves weight DMA)."""
    bf16 = jnp.bfloat16
    d_model = p["wq1"].shape[0]
    scale = 1.0 / ((d_model // n_head) ** 0.5)
    w = {
        "wq1": (p["wq1"] * scale).astype(bf16), "bq1": p["bq1"] * scale,
        "wkv1": jnp.concatenate([p["wk1"], p["wv1"]], axis=1).astype(bf16),
        "bkv1": jnp.concatenate([p["bk1"], p["bv1"]], axis=1),
        "wo1": p["wo1"].astype(bf16), "bo1": p["bo1"],
        "g1": p["g1"], "beta1": p["beta1"],
        "wq2": (p["wq2"] * scale).astype(bf16), "bq2": p["bq2"] * scale,
        "wkv2": jnp.concatenate([p["wk2"], p["wv2"]], axis=1).astype(bf16),
        "bkv2": jnp.concatenate([p["bk2"], p["bv2"]], axis=1),
        "wo2": p["wo2"].astype(bf16), "bo2": p["bo2"],
        "g2": p["g2"], "beta2": p["beta2"],
        "wf1": p["wf1"].astype(bf16), "bf1": p["bf1"],
        "wf2": p["wf2"].astype(bf16), "bf2": p["bf2"],
        "g3": p["g3"], "beta3": p["beta3"],
    }
    return [w[k] for k in _WEIGHT_ORDER]


def decoder_layer_pallas(dec, enc, src_keep, params, n_head, *, q_tile=None):
    """dec: [B, S, D] f32, enc: [B, S_enc, D] f32, src_keep: [B, S_enc] (1 = keep, 0 = masked).
    tgt mask is the standard causal mask, generated inside the kernel.
    # TODO(synk): arbitrary dense tgt/src masks would need the old dense-mask input path.
    """
    B, S, D = dec.shape
    S_enc = enc.shape[1]

    if q_tile is None:
        q_tile = S if S <= 128 else 128
    assert S % q_tile == 0, "seq len must be divisible by the query tile"
    nq = S // q_tile

    weights = _prep_weights(params, n_head)
    enc_bf16 = enc.astype(jnp.bfloat16)                       # matmul-only operand -> bf16 HBM
    src_bias = ((src_keep > 0).astype(jnp.float32) - 1.0) * 1e9   # 0 keep / -1e9 masked
    src_bias = src_bias.reshape(B, 1, S_enc)

    def make_specs(weight_buffering):
        in_specs = [
            pl.BlockSpec((1, q_tile, D), lambda b, q: (b, q, 0)),   # dec query tile
            pl.BlockSpec((1, S, D),      lambda b, q: (b, 0, 0)),   # dec full (self-attn K/V src)
            pl.BlockSpec((1, S_enc, D),  lambda b, q: (b, 0, 0)),   # enc (bf16)
            pl.BlockSpec((1, 1, S_enc),  lambda b, q: (b, 0, 0)),   # src additive bias
        ]
        for w in weights:
            idx = (lambda b, q, _n=w.ndim: (0,) * _n)
            if weight_buffering is None:
                in_specs.append(pl.BlockSpec(w.shape, idx))
            else:
                # Constant blocks across the whole grid -> single buffer saves VMEM.
                in_specs.append(pl.BlockSpec(w.shape, idx, pipeline_mode=weight_buffering))
        out_specs = pl.BlockSpec((1, q_tile, D), lambda b, q: (b, q, 0))
        return in_specs, out_specs

    # Explicit scoped-VMEM budget: weights (x2 for safety) + activation slabs (x buffers) + slack.
    weight_bytes = sum(int(w.size) * w.dtype.itemsize for w in weights)
    act_bytes = 4 * (q_tile * D * 2 + S * D + S_enc * D + S_enc)
    vmem_limit = int(min(100 * 2**20, max(32 * 2**20, 2 * weight_bytes + 4 * act_bytes + (4 << 20))))

    def build(weight_buffering):
        in_specs, out_specs = make_specs(weight_buffering)
        return pl.pallas_call(
            functools.partial(_decoder_layer_kernel, n_head=n_head),
            out_shape=jax.ShapeDtypeStruct((B, S, D), jnp.float32),
            grid=(B, nq),
            in_specs=in_specs,
            out_specs=out_specs,
            compiler_params=pltpu.CompilerParams(
                dimension_semantics=("parallel", "parallel"),
                vmem_limit_bytes=vmem_limit),
        )

    args = (dec, dec, enc_bf16, src_bias, *weights)
    try:
        return build(pl.Buffered(1))(*args)
    except Exception:
        # Fallback: this jax/libtpu build rejects single-buffered pipeline_mode; use defaults.
        return build(None)(*args)


# ------------------------------------ plain-JAX reference ----------------------------------------
# Full-precision (f32) reference matching the torch module semantics exactly.

def _ref_layer_norm(x, gamma, beta, eps=1e-6):
    mean = jnp.mean(x, axis=-1, keepdims=True)
    var = jnp.sum((x - mean) ** 2, axis=-1, keepdims=True) / (x.shape[-1] - 1)
    return gamma * (x - mean) / (jnp.sqrt(var) + eps) + beta


def _ref_mha(x_q, x_kv, mask, wq, bq, wk, bk, wv, bv, wo, bo, n_head):
    d_model = x_q.shape[-1]
    d_k = d_model // n_head
    scale = 1.0 / (d_k ** 0.5)
    q = x_q @ wq + bq
    k = x_kv @ wk + bk
    v = x_kv @ wv + bv
    heads = []
    for h in range(n_head):
        sl = slice(h * d_k, (h + 1) * d_k)
        s = (q[:, sl] @ k[:, sl].T) * scale
        s = jnp.where(mask > 0, s, -1e9)
        p = jax.nn.softmax(s, axis=-1)
        heads.append(p @ v[:, sl])
    return jnp.concatenate(heads, axis=-1) @ wo + bo


def decoder_layer_reference(dec, enc, src_keep, p, n_head):
    B, S, _ = dec.shape
    S_enc = enc.shape[1]
    tgt_mask = jnp.tril(jnp.ones((S, S), jnp.float32))                     # causal
    src_mask = jnp.broadcast_to(src_keep[:, None, :], (B, S, S_enc))       # padding

    def one(x, e, sm):
        r = x
        y = _ref_mha(x, x, tgt_mask, p["wq1"], p["bq1"], p["wk1"], p["bk1"],
                     p["wv1"], p["bv1"], p["wo1"], p["bo1"], n_head)
        y = _ref_layer_norm(y + r, p["g1"], p["beta1"])
        r = y
        y = _ref_mha(y, e, sm, p["wq2"], p["bq2"], p["wk2"], p["bk2"],
                     p["wv2"], p["bv2"], p["wo2"], p["bo2"], n_head)
        y = _ref_layer_norm(y + r, p["g2"], p["beta2"])
        r = y
        h = jnp.maximum(y @ p["wf1"] + p["bf1"], 0.0)
        y = h @ p["wf2"] + p["bf2"]
        y = _ref_layer_norm(y + r, p["g3"], p["beta3"])
        return y
    return jax.vmap(one)(dec, enc, src_mask)


# --------------------------------------- parameter init ------------------------------------------

def make_params(key, d_model, d_ff):
    ks = iter(jax.random.split(key, 32))

    def dense(shape, scale=0.05):
        return (scale * jax.random.normal(next(ks), shape)).astype(jnp.float32)

    p = {}
    for tag in ("1", "2"):  # 1 = self-attention, 2 = cross(src)-attention
        for nm in ("q", "k", "v", "o"):
            p[f"w{nm}{tag}"] = dense((d_model, d_model))
            p[f"b{nm}{tag}"] = dense((1, d_model))
    p["wf1"] = dense((d_model, d_ff))
    p["bf1"] = dense((1, d_ff))
    p["wf2"] = dense((d_ff, d_model))
    p["bf2"] = dense((1, d_model))
    for i in ("1", "2", "3"):
        p[f"g{i}"] = jnp.ones((1, d_model), jnp.float32)
        p[f"beta{i}"] = jnp.zeros((1, d_model), jnp.float32)
    return p


# --------------------------------------------- main ----------------------------------------------

if __name__ == "__main__":
    B, S, S_ENC = 2, 8, 16
    D_MODEL, FFN_HIDDEN, N_HEAD = 32, 64, 4

    key = jax.random.PRNGKey(0)
    k_dec, k_enc, k_par = jax.random.split(key, 3)

    dec = jax.random.normal(k_dec, (B, S, D_MODEL), jnp.float32)
    enc = jax.random.normal(k_enc, (B, S_ENC, D_MODEL), jnp.float32)

    # Padding keep-vector for the encoder: mask out the last 2 encoder positions.
    src_keep = jnp.ones((B, S_ENC), jnp.float32).at[:, -2:].set(0.0)

    params = make_params(k_par, D_MODEL, FFN_HIDDEN)

    out = decoder_layer_pallas(dec, enc, src_keep, params, N_HEAD)
    out = jax.block_until_ready(out)

    ref = decoder_layer_reference(dec, enc, src_keep, params, N_HEAD)
    assert out.shape == (B, S, D_MODEL)
    assert jnp.all(jnp.isfinite(out))
    # bf16 matmul inputs -> slightly looser tolerance vs the f32 reference
    # (tightened from 3e-2 after switching LayerNorm to exact reciprocal).
    assert jnp.allclose(out, ref, rtol=2e-2, atol=2e-2), "Pallas output mismatch vs reference"

    print("KERNEL_OK")
</pallas_src>

<mosaic_0001>
module attributes {stable_mosaic.version = 11 : i64} {
  func.func @_decoder_layer_kernel(%arg0: i32, %arg1: i32, %arg2: memref<1x8x32xf32, #tpu.memory_space<vmem>>, %arg3: memref<1x8x32xf32, #tpu.memory_space<vmem>>, %arg4: memref<1x16x32xbf16, #tpu.memory_space<vmem>>, %arg5: memref<1x1x16xf32, #tpu.memory_space<vmem>>, %arg6: memref<32x32xbf16, #tpu.memory_space<vmem>>, %arg7: memref<1x32xf32, #tpu.memory_space<vmem>>, %arg8: memref<32x64xbf16, #tpu.memory_space<vmem>>, %arg9: memref<1x64xf32, #tpu.memory_space<vmem>>, %arg10: memref<32x32xbf16, #tpu.memory_space<vmem>>, %arg11: memref<1x32xf32, #tpu.memory_space<vmem>>, %arg12: memref<1x32xf32, #tpu.memory_space<vmem>>, %arg13: memref<1x32xf32, #tpu.memory_space<vmem>>, %arg14: memref<32x32xbf16, #tpu.memory_space<vmem>>, %arg15: memref<1x32xf32, #tpu.memory_space<vmem>>, %arg16: memref<32x64xbf16, #tpu.memory_space<vmem>>, %arg17: memref<1x64xf32, #tpu.memory_space<vmem>>, %arg18: memref<32x32xbf16, #tpu.memory_space<vmem>>, %arg19: memref<1x32xf32, #tpu.memory_space<vmem>>, %arg20: memref<1x32xf32, #tpu.memory_space<vmem>>, %arg21: memref<1x32xf32, #tpu.memory_space<vmem>>, %arg22: memref<32x64xbf16, #tpu.memory_space<vmem>>, %arg23: memref<1x64xf32, #tpu.memory_space<vmem>>, %arg24: memref<64x32xbf16, #tpu.memory_space<vmem>>, %arg25: memref<1x32xf32, #tpu.memory_space<vmem>>, %arg26: memref<1x32xf32, #tpu.memory_space<vmem>>, %arg27: memref<1x32xf32, #tpu.memory_space<vmem>>, %arg28: memref<1x8x32xf32, #tpu.memory_space<vmem>>) attributes {dimension_semantics = [#tpu.dimension_semantics<parallel>, #tpu.dimension_semantics<parallel>], iteration_bounds = array<i64: 2, 1>, scalar_prefetch = 0 : i64, scratch_operands = 0 : i64, tpu.core_type = #tpu.core_type<tc>, window_params = [{transform_indices = @transform_0, window_bounds = array<i64: 1, 8, 32>}, {transform_indices = @transform_1, window_bounds = array<i64: 1, 8, 32>}, {transform_indices = @transform_2, window_bounds = array<i64: 1, 16, 32>}, {transform_indices = @transform_3, window_bounds = array<i64: 1, 1, 16>}, {pipeline_mode = #tpu.pipeline_mode<synchronous>, transform_indices = @transform_4, window_bounds = array<i64: 32, 32>}, {pipeline_mode = #tpu.pipeline_mode<synchronous>, transform_indices = @transform_5, window_bounds = array<i64: 1, 32>}, {pipeline_mode = #tpu.pipeline_mode<synchronous>, transform_indices = @transform_6, window_bounds = array<i64: 32, 64>}, {pipeline_mode = #tpu.pipeline_mode<synchronous>, transform_indices = @transform_7, window_bounds = array<i64: 1, 64>}, {pipeline_mode = #tpu.pipeline_mode<synchronous>, transform_indices = @transform_8, window_bounds = array<i64: 32, 32>}, {pipeline_mode = #tpu.pipeline_mode<synchronous>, transform_indices = @transform_9, window_bounds = array<i64: 1, 32>}, {pipeline_mode = #tpu.pipeline_mode<synchronous>, transform_indices = @transform_10, window_bounds = array<i64: 1, 32>}, {pipeline_mode = #tpu.pipeline_mode<synchronous>, transform_indices = @transform_11, window_bounds = array<i64: 1, 32>}, {pipeline_mode = #tpu.pipeline_mode<synchronous>, transform_indices = @transform_12, window_bounds = array<i64: 32, 32>}, {pipeline_mode = #tpu.pipeline_mode<synchronous>, transform_indices = @transform_13, window_bounds = array<i64: 1, 32>}, {pipeline_mode = #tpu.pipeline_mode<synchronous>, transform_indices = @transform_14, window_bounds = array<i64: 32, 64>}, {pipeline_mode = #tpu.pipeline_mode<synchronous>, transform_indices = @transform_15, window_bounds = array<i64: 1, 64>}, {pipeline_mode = #tpu.pipeline_mode<synchronous>, transform_indices = @transform_16, window_bounds = array<i64: 32, 32>}, {pipeline_mode = #tpu.pipeline_mode<synchronous>, transform_indices = @transform_17, window_bounds = array<i64: 1, 32>}, {pipeline_mode = #tpu.pipeline_mode<synchronous>, transform_indices = @transform_18, window_bounds = array<i64: 1, 32>}, {pipeline_mode = #tpu.pipeline_mode<synchronous>, transform_indices = @transform_19, window_bounds = array<i64: 1, 32>}, {pipeline_mode = #tpu.pipeline_mode<synchronous>, transform_indices = @transform_20, window_bounds = array<i64: 32, 64>}, {pipeline_mode = #tpu.pipeline_mode<synchronous>, transform_indices = @transform_21, window_bounds = array<i64: 1, 64>}, {pipeline_mode = #tpu.pipeline_mode<synchronous>, transform_indices = @transform_22, window_bounds = array<i64: 64, 32>}, {pipeline_mode = #tpu.pipeline_mode<synchronous>, transform_indices = @transform_23, window_bounds = array<i64: 1, 32>}, {pipeline_mode = #tpu.pipeline_mode<synchronous>, transform_indices = @transform_24, window_bounds = array<i64: 1, 32>}, {pipeline_mode = #tpu.pipeline_mode<synchronous>, transform_indices = @transform_25, window_bounds = array<i64: 1, 32>}, {transform_indices = @transform_26, window_bounds = array<i64: 1, 8, 32>}]} {
    %c0 = arith.constant 0 : index
    %c0_0 = arith.constant 0 : index
    %c0_1 = arith.constant 0 : index
    %0 = vector.load %arg2[%c0, %c0_0, %c0_1] : memref<1x8x32xf32, #tpu.memory_space<vmem>>, vector<1x8x32xf32>
    %1 = vector.shape_cast %0 : vector<1x8x32xf32> to vector<8x32xf32>
    %c0_2 = arith.constant 0 : index
    %c0_3 = arith.constant 0 : index
    %c0_4 = arith.constant 0 : index
    %2 = vector.load %arg3[%c0_2, %c0_3, %c0_4] : memref<1x8x32xf32, #tpu.memory_space<vmem>>, vector<1x8x32xf32>
    %3 = vector.shape_cast %2 : vector<1x8x32xf32> to vector<8x32xf32>
    %4 = arith.truncf %3 : vector<8x32xf32> to vector<8x32xbf16>
    %c0_5 = arith.constant 0 : index
    %c0_6 = arith.constant 0 : index
    %c0_7 = arith.constant 0 : index
    %5 = vector.load %arg4[%c0_5, %c0_6, %c0_7] : memref<1x16x32xbf16, #tpu.memory_space<vmem>>, vector<1x16x32xbf16>
    %6 = vector.shape_cast %5 : vector<1x16x32xbf16> to vector<16x32xbf16>
    %c0_8 = arith.constant 0 : index
    %c0_9 = arith.constant 0 : index
    %c0_10 = arith.constant 0 : index
    %7 = vector.load %arg5[%c0_8, %c0_9, %c0_10] : memref<1x1x16xf32, #tpu.memory_space<vmem>>, vector<1x1x16xf32>
    %8 = vector.shape_cast %7 : vector<1x1x16xf32> to vector<1x16xf32>
    %c8_i32 = arith.constant 8 : i32
    %9 = arith.muli %arg1, %c8_i32 : i32
    %10 = tpu.iota {dimensions = array<i32: 0>} : vector<8x8xi32>
    %11 = vector.broadcast %9 : i32 to vector<8x8xi32>
    %12 = arith.addi %11, %10 : vector<8x8xi32>
    %13 = tpu.iota {dimensions = array<i32: 1>} : vector<8x8xi32>
    %14 = arith.cmpi sge, %12, %13 : vector<8x8xi32>
    %cst = arith.constant 0.000000e+00 : f32
    %cst_11 = arith.constant -1.000000e+09 : f32
    %15 = vector.broadcast %cst : f32 to vector<8x8xf32>
    %16 = vector.broadcast %cst_11 : f32 to vector<8x8xf32>
    %17 = arith.select %14, %15, %16 : vector<8x8xi1>, vector<8x8xf32>
    %18 = arith.truncf %1 : vector<8x32xf32> to vector<8x32xbf16>
    %c0_12 = arith.constant 0 : index
    %c0_13 = arith.constant 0 : index
    %19 = vector.load %arg6[%c0_12, %c0_13] : memref<32x32xbf16, #tpu.memory_space<vmem>>, vector<32x32xbf16>
    %cst_14 = arith.constant dense<0.000000e+00> : vector<8x32xf32>
    %20 = tpu.matmul %18, %19, %cst_14 {dimension_numbers = #tpu.dot_dimension_numbers<[1], [0], [0], [1], [0, 0, 1, 1], [], []>} : vector<8x32xbf16>, vector<32x32xbf16>, vector<8x32xf32> -> vector<8x32xf32>
    %c0_15 = arith.constant 0 : index
    %c0_16 = arith.constant 0 : index
    %21 = vector.load %arg7[%c0_15, %c0_16] : memref<1x32xf32, #tpu.memory_space<vmem>>, vector<1x32xf32>
    %22 = vector.broadcast %21 : vector<1x32xf32> to vector<8x32xf32>
    %23 = arith.addf %20, %22 : vector<8x32xf32>
    %c0_17 = arith.constant 0 : index
    %c0_18 = arith.constant 0 : index
    %24 = vector.load %arg8[%c0_17, %c0_18] : memref<32x64xbf16, #tpu.memory_space<vmem>>, vector<32x64xbf16>
    %cst_19 = arith.constant dense<0.000000e+00> : vector<8x64xf32>
    %25 = tpu.matmul %4, %24, %cst_19 {dimension_numbers = #tpu.dot_dimension_numbers<[1], [0], [0], [1], [0, 0, 1, 1], [], []>} : vector<8x32xbf16>, vector<32x64xbf16>, vector<8x64xf32> -> vector<8x64xf32>
    %c0_20 = arith.constant 0 : index
    %c0_21 = arith.constant 0 : index
    %26 = vector.load %arg9[%c0_20, %c0_21] : memref<1x64xf32, #tpu.memory_space<vmem>>, vector<1x64xf32>
    %27 = vector.broadcast %26 : vector<1x64xf32> to vector<8x64xf32>
    %28 = arith.addf %25, %27 : vector<8x64xf32>
    %29 = vector.extract_strided_slice %28 {offsets = [0, 0], sizes = [8, 32], strides = [1, 1]} : vector<8x64xf32> to vector<8x32xf32>
    %30 = vector.extract_strided_slice %28 {offsets = [0, 32], sizes = [8, 32], strides = [1, 1]} : vector<8x64xf32> to vector<8x32xf32>
    %31 = vector.extract_strided_slice %23 {offsets = [0, 0], sizes = [8, 8], strides = [1, 1]} : vector<8x32xf32> to vector<8x8xf32>
    %32 = arith.truncf %31 : vector<8x8xf32> to vector<8x8xbf16>
    %33 = vector.extract_strided_slice %23 {offsets = [0, 8], sizes = [8, 8], strides = [1, 1]} : vector<8x32xf32> to vector<8x8xf32>
    %34 = arith.truncf %33 : vector<8x8xf32> to vector<8x8xbf16>
    %35 = vector.extract_strided_slice %23 {offsets = [0, 16], sizes = [8, 8], strides = [1, 1]} : vector<8x32xf32> to vector<8x8xf32>
    %36 = arith.truncf %35 : vector<8x8xf32> to vector<8x8xbf16>
    %37 = vector.extract_strided_slice %23 {offsets = [0, 24], sizes = [8, 8], strides = [1, 1]} : vector<8x32xf32> to vector<8x8xf32>
    %38 = arith.truncf %37 : vector<8x8xf32> to vector<8x8xbf16>
    %39 = vector.shape_cast %32 : vector<8x8xbf16> to vector<1x8x8xbf16>
    %40 = vector.shape_cast %34 : vector<8x8xbf16> to vector<1x8x8xbf16>
    %41 = vector.shape_cast %36 : vector<8x8xbf16> to vector<1x8x8xbf16>
    %42 = vector.shape_cast %38 : vector<8x8xbf16> to vector<1x8x8xbf16>
    %43 = tpu.concatenate %39, %40, %41, %42 in 0 : vector<1x8x8xbf16>, vector<1x8x8xbf16>, vector<1x8x8xbf16>, vector<1x8x8xbf16> -> vector<4x8x8xbf16>
    %44 = vector.extract_strided_slice %29 {offsets = [0, 0], sizes = [8, 8], strides = [1, 1]} : vector<8x32xf32> to vector<8x8xf32>
    %45 = arith.truncf %44 : vector<8x8xf32> to vector<8x8xbf16>
    %46 = vector.extract_strided_slice %29 {offsets = [0, 8], sizes = [8, 8], strides = [1, 1]} : vector<8x32xf32> to vector<8x8xf32>
    %47 = arith.truncf %46 : vector<8x8xf32> to vector<8x8xbf16>
    %48 = vector.extract_strided_slice %29 {offsets = [0, 16], sizes = [8, 8], strides = [1, 1]} : vector<8x32xf32> to vector<8x8xf32>
    %49 = arith.truncf %48 : vector<8x8xf32> to vector<8x8xbf16>
    %50 = vector.extract_strided_slice %29 {offsets = [0, 24], sizes = [8, 8], strides = [1, 1]} : vector<8x32xf32> to vector<8x8xf32>
    %51 = arith.truncf %50 : vector<8x8xf32> to vector<8x8xbf16>
    %52 = vector.shape_cast %45 : vector<8x8xbf16> to vector<1x8x8xbf16>
    %53 = vector.shape_cast %47 : vector<8x8xbf16> to vector<1x8x8xbf16>
    %54 = vector.shape_cast %49 : vector<8x8xbf16> to vector<1x8x8xbf16>
    %55 = vector.shape_cast %51 : vector<8x8xbf16> to vector<1x8x8xbf16>
    %56 = tpu.concatenate %52, %53, %54, %55 in 0 : vector<1x8x8xbf16>, vector<1x8x8xbf16>, vector<1x8x8xbf16>, vector<1x8x8xbf16> -> vector<4x8x8xbf16>
    %57 = vector.extract_strided_slice %30 {offsets = [0, 0], sizes = [8, 8], strides = [1, 1]} : vector<8x32xf32> to vector<8x8xf32>
    %58 = arith.truncf %57 : vector<8x8xf32> to vector<8x8xbf16>
    %59 = vector.extract_strided_slice %30 {offsets = [0, 8], sizes = [8, 8], strides = [1, 1]} : vector<8x32xf32> to vector<8x8xf32>
    %60 = arith.truncf %59 : vector<8x8xf32> to vector<8x8xbf16>
    %61 = vector.extract_strided_slice %30 {offsets = [0, 16], sizes = [8, 8], strides = [1, 1]} : vector<8x32xf32> to vector<8x8xf32>
    %62 = arith.truncf %61 : vector<8x8xf32> to vector<8x8xbf16>
    %63 = vector.extract_strided_slice %30 {offsets = [0, 24], sizes = [8, 8], strides = [1, 1]} : vector<8x32xf32> to vector<8x8xf32>
    %64 = arith.truncf %63 : vector<8x8xf32> to vector<8x8xbf16>
    %65 = vector.shape_cast %58 : vector<8x8xbf16> to vector<1x8x8xbf16>
    %66 = vector.shape_cast %60 : vector<8x8xbf16> to vector<1x8x8xbf16>
    %67 = vector.shape_cast %62 : vector<8x8xbf16> to vector<1x8x8xbf16>
    %68 = vector.shape_cast %64 : vector<8x8xbf16> to vector<1x8x8xbf16>
    %69 = tpu.concatenate %65, %66, %67, %68 in 0 : vector<1x8x8xbf16>, vector<1x8x8xbf16>, vector<1x8x8xbf16>, vector<1x8x8xbf16> -> vector<4x8x8xbf16>
    "tpu.trace_start"() <{level = 10 : i32, message = "hqd,hkd->hqk"}> : () -> ()
    %cst_22 = arith.constant dense<0.000000e+00> : vector<4x8x8xf32>
    %70 = tpu.matmul %43, %56, %cst_22 {dimension_numbers = #tpu.dot_dimension_numbers<[2], [2], [1], [1], [0, 0, 0, 1, 1, 1], [0], [0]>} : vector<4x8x8xbf16>, vector<4x8x8xbf16>, vector<4x8x8xf32> -> vector<4x8x8xf32>
    "tpu.trace_stop"() : () -> ()
    %71 = vector.shape_cast %17 : vector<8x8xf32> to vector<1x8x8xf32>
    %72 = vector.broadcast %71 : vector<1x8x8xf32> to vector<4x8x8xf32>
    %73 = arith.addf %70, %72 : vector<4x8x8xf32>
    %cst_23 = arith.constant dense<0xFF800000> : vector<4x8xf32>
    %74 = vector.multi_reduction <maximumf>, %73, %cst_23 [2] : vector<4x8x8xf32> to vector<4x8xf32>
    %75 = vector.shape_cast %74 : vector<4x8xf32> to vector<4x8x1xf32>
    %76 = vector.broadcast %75 : vector<4x8x1xf32> to vector<4x8x8xf32>
    %77 = arith.subf %73, %76 : vector<4x8x8xf32>
    %78 = math.exp %77 : vector<4x8x8xf32>
    %cst_24 = arith.constant dense<0.000000e+00> : vector<4x8xf32>
    %79 = vector.multi_reduction <add>, %78, %cst_24 [2] : vector<4x8x8xf32> to vector<4x8xf32>
    %80 = vector.shape_cast %79 : vector<4x8xf32> to vector<4x8x1xf32>
    %81 = tpu.reciprocal %80 {approx = true} : vector<4x8x1xf32> -> vector<4x8x1xf32>
    %82 = vector.broadcast %81 : vector<4x8x1xf32> to vector<4x8x8xf32>
    %83 = arith.mulf %78, %82 : vector<4x8x8xf32>
    %84 = arith.truncf %83 : vector<4x8x8xf32> to vector<4x8x8xbf16>
    "tpu.trace_start"() <{level = 10 : i32, message = "hqk,hkd->hqd"}> : () -> ()
    %cst_25 = arith.constant dense<0.000000e+00> : vector<4x8x8xf32>
    %85 = tpu.matmul %84, %69, %cst_25 {dimension_numbers = #tpu.dot_dimension_numbers<[2], [1], [1], [2], [0, 0, 0, 1, 1, 2], [0], [0]>} : vector<4x8x8xbf16>, vector<4x8x8xbf16>, vector<4x8x8xf32> -> vector<4x8x8xf32>
    "tpu.trace_stop"() : () -> ()
    %86 = vector.extract_strided_slice %85 {offsets = [0, 0, 0], sizes = [1, 8, 8], strides = [1, 1, 1]} : vector<4x8x8xf32> to vector<1x8x8xf32>
    %87 = vector.shape_cast %86 : vector<1x8x8xf32> to vector<8x8xf32>
    %88 = vector.extract_strided_slice %85 {offsets = [1, 0, 0], sizes = [1, 8, 8], strides = [1, 1, 1]} : vector<4x8x8xf32> to vector<1x8x8xf32>
    %89 = vector.shape_cast %88 : vector<1x8x8xf32> to vector<8x8xf32>
    %90 = vector.extract_strided_slice %85 {offsets = [2, 0, 0], sizes = [1, 8, 8], strides = [1, 1, 1]} : vector<4x8x8xf32> to vector<1x8x8xf32>
    %91 = vector.shape_cast %90 : vector<1x8x8xf32> to vector<8x8xf32>
    %92 = vector.extract_strided_slice %85 {offsets = [3, 0, 0], sizes = [1, 8, 8], strides = [1, 1, 1]} : vector<4x8x8xf32> to vector<1x8x8xf32>
    %93 = vector.shape_cast %92 : vector<1x8x8xf32> to vector<8x8xf32>
    %94 = tpu.concatenate %87, %89, %91, %93 in 1 : vector<8x8xf32>, vector<8x8xf32>, vector<8x8xf32>, vector<8x8xf32> -> vector<8x32xf32>
    %95 = arith.truncf %94 : vector<8x32xf32> to vector<8x32xbf16>
    %c0_26 = arith.constant 0 : index
    %c0_27 = arith.constant 0 : index
    %96 = vector.load %arg10[%c0_26, %c0_27] : memref<32x32xbf16, #tpu.memory_space<vmem>>, vector<32x32xbf16>
    %cst_28 = arith.constant dense<0.000000e+00> : vector<8x32xf32>
    %97 = tpu.matmul %95, %96, %cst_28 {dimension_numbers = #tpu.dot_dimension_numbers<[1], [0], [0], [1], [0, 0, 1, 1], [], []>} : vector<8x32xbf16>, vector<32x32xbf16>, vector<8x32xf32> -> vector<8x32xf32>
    %c0_29 = arith.constant 0 : index
    %c0_30 = arith.constant 0 : index
    %98 = vector.load %arg11[%c0_29, %c0_30] : memref<1x32xf32, #tpu.memory_space<vmem>>, vector<1x32xf32>
    %99 = vector.broadcast %98 : vector<1x32xf32> to vector<8x32xf32>
    %100 = arith.addf %97, %99 : vector<8x32xf32>
    %101 = arith.addf %100, %1 : vector<8x32xf32>
    %c0_31 = arith.constant 0 : index
    %c0_32 = arith.constant 0 : index
    %102 = vector.load %arg12[%c0_31, %c0_32] : memref<1x32xf32, #tpu.memory_space<vmem>>, vector<1x32xf32>
    %c0_33 = arith.constant 0 : index
    %c0_34 = arith.constant 0 : index
    %103 = vector.load %arg13[%c0_33, %c0_34] : memref<1x32xf32, #tpu.memory_space<vmem>>, vector<1x32xf32>
    %cst_35 = arith.constant dense<0.000000e+00> : vector<8xf32>
    %104 = vector.multi_reduction <add>, %101, %cst_35 [1] : vector<8x32xf32> to vector<8xf32>
    %105 = vector.shape_cast %104 : vector<8xf32> to vector<8x1xf32>
    %cst_36 = arith.constant 3.200000e+01 : f32
    %106 = vector.broadcast %cst_36 : f32 to vector<8x1xf32>
    %107 = arith.divf %105, %106 : vector<8x1xf32>
    %108 = vector.broadcast %107 : vector<8x1xf32> to vector<8x32xf32>
    %109 = arith.subf %101, %108 : vector<8x32xf32>
    %110 = arith.mulf %109, %109 : vector<8x32xf32>
    %cst_37 = arith.constant dense<0.000000e+00> : vector<8xf32>
    %111 = vector.multi_reduction <add>, %110, %cst_37 [1] : vector<8x32xf32> to vector<8xf32>
    %112 = vector.shape_cast %111 : vector<8xf32> to vector<8x1xf32>
    %cst_38 = arith.constant 3.100000e+01 : f32
    %113 = vector.broadcast %cst_38 : f32 to vector<8x1xf32>
    %114 = arith.divf %112, %113 : vector<8x1xf32>
    %115 = vector.broadcast %107 : vector<8x1xf32> to vector<8x32xf32>
    %116 = arith.subf %101, %115 : vector<8x32xf32>
    %117 = vector.broadcast %102 : vector<1x32xf32> to vector<8x32xf32>
    %118 = arith.mulf %117, %116 : vector<8x32xf32>
    %119 = math.sqrt %114 : vector<8x1xf32>
    %cst_39 = arith.constant 9.99999997E-7 : f32
    %120 = vector.broadcast %cst_39 : f32 to vector<8x1xf32>
    %121 = arith.addf %119, %120 : vector<8x1xf32>
    %122 = vector.broadcast %121 : vector<8x1xf32> to vector<8x32xf32>
    %123 = arith.divf %118, %122 : vector<8x32xf32>
    %124 = vector.broadcast %103 : vector<1x32xf32> to vector<8x32xf32>
    %125 = arith.addf %123, %124 : vector<8x32xf32>
    %126 = arith.truncf %125 : vector<8x32xf32> to vector<8x32xbf16>
    %c0_40 = arith.constant 0 : index
    %c0_41 = arith.constant 0 : index
    %127 = vector.load %arg14[%c0_40, %c0_41] : memref<32x32xbf16, #tpu.memory_space<vmem>>, vector<32x32xbf16>
    %cst_42 = arith.constant dense<0.000000e+00> : vector<8x32xf32>
    %128 = tpu.matmul %126, %127, %cst_42 {dimension_numbers = #tpu.dot_dimension_numbers<[1], [0], [0], [1], [0, 0, 1, 1], [], []>} : vector<8x32xbf16>, vector<32x32xbf16>, vector<8x32xf32> -> vector<8x32xf32>
    %c0_43 = arith.constant 0 : index
    %c0_44 = arith.constant 0 : index
    %129 = vector.load %arg15[%c0_43, %c0_44] : memref<1x32xf32, #tpu.memory_space<vmem>>, vector<1x32xf32>
    %130 = vector.broadcast %129 : vector<1x32xf32> to vector<8x32xf32>
    %131 = arith.addf %128, %130 : vector<8x32xf32>
    %c0_45 = arith.constant 0 : index
    %c0_46 = arith.constant 0 : index
    %132 = vector.load %arg16[%c0_45, %c0_46] : memref<32x64xbf16, #tpu.memory_space<vmem>>, vector<32x64xbf16>
    %cst_47 = arith.constant dense<0.000000e+00> : vector<16x64xf32>
    %133 = tpu.matmul %6, %132, %cst_47 {dimension_numbers = #tpu.dot_dimension_numbers<[1], [0], [0], [1], [0, 0, 1, 1], [], []>} : vector<16x32xbf16>, vector<32x64xbf16>, vector<16x64xf32> -> vector<16x64xf32>
    %c0_48 = arith.constant 0 : index
    %c0_49 = arith.constant 0 : index
    %134 = vector.load %arg17[%c0_48, %c0_49] : memref<1x64xf32, #tpu.memory_space<vmem>>, vector<1x64xf32>
    %135 = vector.broadcast %134 : vector<1x64xf32> to vector<16x64xf32>
    %136 = arith.addf %133, %135 : vector<16x64xf32>
    %137 = vector.extract_strided_slice %136 {offsets = [0, 0], sizes = [16, 32], strides = [1, 1]} : vector<16x64xf32> to vector<16x32xf32>
    %138 = vector.extract_strided_slice %136 {offsets = [0, 32], sizes = [16, 32], strides = [1, 1]} : vector<16x64xf32> to vector<16x32xf32>
    %139 = vector.extract_strided_slice %131 {offsets = [0, 0], sizes = [8, 8], strides = [1, 1]} : vector<8x32xf32> to vector<8x8xf32>
    %140 = arith.truncf %139 : vector<8x8xf32> to vector<8x8xbf16>
    %141 = vector.extract_strided_slice %131 {offsets = [0, 8], sizes = [8, 8], strides = [1, 1]} : vector<8x32xf32> to vector<8x8xf32>
    %142 = arith.truncf %141 : vector<8x8xf32> to vector<8x8xbf16>
    %143 = vector.extract_strided_slice %131 {offsets = [0, 16], sizes = [8, 8], strides = [1, 1]} : vector<8x32xf32> to vector<8x8xf32>
    %144 = arith.truncf %143 : vector<8x8xf32> to vector<8x8xbf16>
    %145 = vector.extract_strided_slice %131 {offsets = [0, 24], sizes = [8, 8], strides = [1, 1]} : vector<8x32xf32> to vector<8x8xf32>
    %146 = arith.truncf %145 : vector<8x8xf32> to vector<8x8xbf16>
    %147 = vector.shape_cast %140 : vector<8x8xbf16> to vector<1x8x8xbf16>
    %148 = vector.shape_cast %142 : vector<8x8xbf16> to vector<1x8x8xbf16>
    %149 = vector.shape_cast %144 : vector<8x8xbf16> to vector<1x8x8xbf16>
    %150 = vector.shape_cast %146 : vector<8x8xbf16> to vector<1x8x8xbf16>
    %151 = tpu.concatenate %147, %148, %149, %150 in 0 : vector<1x8x8xbf16>, vector<1x8x8xbf16>, vector<1x8x8xbf16>, vector<1x8x8xbf16> -> vector<4x8x8xbf16>
    %152 = vector.extract_strided_slice %137 {offsets = [0, 0], sizes = [16, 8], strides = [1, 1]} : vector<16x32xf32> to vector<16x8xf32>
    %153 = arith.truncf %152 : vector<16x8xf32> to vector<16x8xbf16>
    %154 = vector.extract_strided_slice %137 {offsets = [0, 8], sizes = [16, 8], strides = [1, 1]} : vector<16x32xf32> to vector<16x8xf32>
    %155 = arith.truncf %154 : vector<16x8xf32> to vector<16x8xbf16>
    %156 = vector.extract_strided_slice %137 {offsets = [0, 16], sizes = [16, 8], strides = [1, 1]} : vector<16x32xf32> to vector<16x8xf32>
    %157 = arith.truncf %156 : vector<16x8xf32> to vector<16x8xbf16>
    %158 = vector.extract_strided_slice %137 {offsets = [0, 24], sizes = [16, 8], strides = [1, 1]} : vector<16x32xf32> to vector<16x8xf32>
    %159 = arith.truncf %158 : vector<16x8xf32> to vector<16x8xbf16>
    %160 = vector.shape_cast %153 : vector<16x8xbf16> to vector<1x16x8xbf16>
    %161 = vector.shape_cast %155 : vector<16x8xbf16> to vector<1x16x8xbf16>
    %162 = vector.shape_cast %157 : vector<16x8xbf16> to vector<1x16x8xbf16>
    %163 = vector.shape_cast %159 : vector<16x8xbf16> to vector<1x16x8xbf16>
    %164 = tpu.concatenate %160, %161, %162, %163 in 0 : vector<1x16x8xbf16>, vector<1x16x8xbf16>, vector<1x16x8xbf16>, vector<1x16x8xbf16> -> vector<4x16x8xbf16>
    %165 = vector.extract_strided_slice %138 {offsets = [0, 0], sizes = [16, 8], strides = [1, 1]} : vector<16x32xf32> to vector<16x8xf32>
    %166 = arith.truncf %165 : vector<16x8xf32> to vector<16x8xbf16>
    %167 = vector.extract_strided_slice %138 {offsets = [0, 8], sizes = [16, 8], strides = [1, 1]} : vector<16x32xf32> to vector<16x8xf32>
    %168 = arith.truncf %167 : vector<16x8xf32> to vector<16x8xbf16>
    %169 = vector.extract_strided_slice %138 {offsets = [0, 16], sizes = [16, 8], strides = [1, 1]} : vector<16x32xf32> to vector<16x8xf32>
    %170 = arith.truncf %169 : vector<16x8xf32> to vector<16x8xbf16>
    %171 = vector.extract_strided_slice %138 {offsets = [0, 24], sizes = [16, 8], strides = [1, 1]} : vector<16x32xf32> to vector<16x8xf32>
    %172 = arith.truncf %171 : vector<16x8xf32> to vector<16x8xbf16>
    %173 = vector.shape_cast %166 : vector<16x8xbf16> to vector<1x16x8xbf16>
    %174 = vector.shape_cast %168 : vector<16x8xbf16> to vector<1x16x8xbf16>
    %175 = vector.shape_cast %170 : vector<16x8xbf16> to vector<1x16x8xbf16>
    %176 = vector.shape_cast %172 : vector<16x8xbf16> to vector<1x16x8xbf16>
    %177 = tpu.concatenate %173, %174, %175, %176 in 0 : vector<1x16x8xbf16>, vector<1x16x8xbf16>, vector<1x16x8xbf16>, vector<1x16x8xbf16> -> vector<4x16x8xbf16>
    "tpu.trace_start"() <{level = 10 : i32, message = "hqd,hkd->hqk"}> : () -> ()
    %cst_50 = arith.constant dense<0.000000e+00> : vector<4x8x16xf32>
    %178 = tpu.matmul %151, %164, %cst_50 {dimension_numbers = #tpu.dot_dimension_numbers<[2], [2], [1], [1], [0, 0, 0, 1, 1, 1], [0], [0]>} : vector<4x8x8xbf16>, vector<4x16x8xbf16>, vector<4x8x16xf32> -> vector<4x8x16xf32>
    "tpu.trace_stop"() : () -> ()
    %179 = vector.shape_cast %8 : vector<1x16xf32> to vector<1x1x16xf32>
    %180 = vector.broadcast %179 : vector<1x1x16xf32> to vector<4x8x16xf32>
    %181 = arith.addf %178, %180 : vector<4x8x16xf32>
    %cst_51 = arith.constant dense<0xFF800000> : vector<4x8xf32>
    %182 = vector.multi_reduction <maximumf>, %181, %cst_51 [2] : vector<4x8x16xf32> to vector<4x8xf32>
    %183 = vector.shape_cast %182 : vector<4x8xf32> to vector<4x8x1xf32>
    %184 = vector.broadcast %183 : vector<4x8x1xf32> to vector<4x8x16xf32>
    %185 = arith.subf %181, %184 : vector<4x8x16xf32>
    %186 = math.exp %185 : vector<4x8x16xf32>
    %cst_52 = arith.constant dense<0.000000e+00> : vector<4x8xf32>
    %187 = vector.multi_reduction <add>, %186, %cst_52 [2] : vector<4x8x16xf32> to vector<4x8xf32>
    %188 = vector.shape_cast %187 : vector<4x8xf32> to vector<4x8x1xf32>
    %189 = tpu.reciprocal %188 {approx = true} : vector<4x8x1xf32> -> vector<4x8x1xf32>
    %190 = vector.broadcast %189 : vector<4x8x1xf32> to vector<4x8x16xf32>
    %191 = arith.mulf %186, %190 : vector<4x8x16xf32>
    %192 = arith.truncf %191 : vector<4x8x16xf32> to vector<4x8x16xbf16>
    "tpu.trace_start"() <{level = 10 : i32, message = "hqk,hkd->hqd"}> : () -> ()
    %cst_53 = arith.constant dense<0.000000e+00> : vector<4x8x8xf32>
    %193 = tpu.matmul %192, %177, %cst_53 {dimension_numbers = #tpu.dot_dimension_numbers<[2], [1], [1], [2], [0, 0, 0, 1, 1, 2], [0], [0]>} : vector<4x8x16xbf16>, vector<4x16x8xbf16>, vector<4x8x8xf32> -> vector<4x8x8xf32>
    "tpu.trace_stop"() : () -> ()
    %194 = vector.extract_strided_slice %193 {offsets = [0, 0, 0], sizes = [1, 8, 8], strides = [1, 1, 1]} : vector<4x8x8xf32> to vector<1x8x8xf32>
    %195 = vector.shape_cast %194 : vector<1x8x8xf32> to vector<8x8xf32>
    %196 = vector.extract_strided_slice %193 {offsets = [1, 0, 0], sizes = [1, 8, 8], strides = [1, 1, 1]} : vector<4x8x8xf32> to vector<1x8x8xf32>
    %197 = vector.shape_cast %196 : vector<1x8x8xf32> to vector<8x8xf32>
    %198 = vector.extract_strided_slice %193 {offsets = [2, 0, 0], sizes = [1, 8, 8], strides = [1, 1, 1]} : vector<4x8x8xf32> to vector<1x8x8xf32>
    %199 = vector.shape_cast %198 : vector<1x8x8xf32> to vector<8x8xf32>
    %200 = vector.extract_strided_slice %193 {offsets = [3, 0, 0], sizes = [1, 8, 8], strides = [1, 1, 1]} : vector<4x8x8xf32> to vector<1x8x8xf32>
    %201 = vector.shape_cast %200 : vector<1x8x8xf32> to vector<8x8xf32>
    %202 = tpu.concatenate %195, %197, %199, %201 in 1 : vector<8x8xf32>, vector<8x8xf32>, vector<8x8xf32>, vector<8x8xf32> -> vector<8x32xf32>
    %203 = arith.truncf %202 : vector<8x32xf32> to vector<8x32xbf16>
    %c0_54 = arith.constant 0 : index
    %c0_55 = arith.constant 0 : index
    %204 = vector.load %arg18[%c0_54, %c0_55] : memref<32x32xbf16, #tpu.memory_space<vmem>>, vector<32x32xbf16>
    %cst_56 = arith.constant dense<0.000000e+00> : vector<8x32xf32>
    %205 = tpu.matmul %203, %204, %cst_56 {dimension_numbers = #tpu.dot_dimension_numbers<[1], [0], [0], [1], [0, 0, 1, 1], [], []>} : vector<8x32xbf16>, vector<32x32xbf16>, vector<8x32xf32> -> vector<8x32xf32>
    %c0_57 = arith.constant 0 : index
    %c0_58 = arith.constant 0 : index
    %206 = vector.load %arg19[%c0_57, %c0_58] : memref<1x32xf32, #tpu.memory_space<vmem>>, vector<1x32xf32>
    %207 = vector.broadcast %206 : vector<1x32xf32> to vector<8x32xf32>
    %208 = arith.addf %205, %207 : vector<8x32xf32>
    %209 = arith.addf %208, %125 : vector<8x32xf32>
    %c0_59 = arith.constant 0 : index
    %c0_60 = arith.constant 0 : index
    %210 = vector.load %arg20[%c0_59, %c0_60] : memref<1x32xf32, #tpu.memory_space<vmem>>, vector<1x32xf32>
    %c0_61 = arith.constant 0 : index
    %c0_62 = arith.constant 0 : index
    %211 = vector.load %arg21[%c0_61, %c0_62] : memref<1x32xf32, #tpu.memory_space<vmem>>, vector<1x32xf32>
    %cst_63 = arith.constant dense<0.000000e+00> : vector<8xf32>
    %212 = vector.multi_reduction <add>, %209, %cst_63 [1] : vector<8x32xf32> to vector<8xf32>
    %213 = vector.shape_cast %212 : vector<8xf32> to vector<8x1xf32>
    %cst_64 = arith.constant 3.200000e+01 : f32
    %214 = vector.broadcast %cst_64 : f32 to vector<8x1xf32>
    %215 = arith.divf %213, %214 : vector<8x1xf32>
    %216 = vector.broadcast %215 : vector<8x1xf32> to vector<8x32xf32>
    %217 = arith.subf %209, %216 : vector<8x32xf32>
    %218 = arith.mulf %217, %217 : vector<8x32xf32>
    %cst_65 = arith.constant dense<0.000000e+00> : vector<8xf32>
    %219 = vector.multi_reduction <add>, %218, %cst_65 [1] : vector<8x32xf32> to vector<8xf32>
    %220 = vector.shape_cast %219 : vector<8xf32> to vector<8x1xf32>
    %cst_66 = arith.constant 3.100000e+01 : f32
    %221 = vector.broadcast %cst_66 : f32 to vector<8x1xf32>
    %222 = arith.divf %220, %221 : vector<8x1xf32>
    %223 = vector.broadcast %215 : vector<8x1xf32> to vector<8x32xf32>
    %224 = arith.subf %209, %223 : vector<8x32xf32>
    %225 = vector.broadcast %210 : vector<1x32xf32> to vector<8x32xf32>
    %226 = arith.mulf %225, %224 : vector<8x32xf32>
    %227 = math.sqrt %222 : vector<8x1xf32>
    %cst_67 = arith.constant 9.99999997E-7 : f32
    %228 = vector.broadcast %cst_67 : f32 to vector<8x1xf32>
    %229 = arith.addf %227, %228 : vector<8x1xf32>
    %230 = vector.broadcast %229 : vector<8x1xf32> to vector<8x32xf32>
    %231 = arith.divf %226, %230 : vector<8x32xf32>
    %232 = vector.broadcast %211 : vector<1x32xf32> to vector<8x32xf32>
    %233 = arith.addf %231, %232 : vector<8x32xf32>
    %234 = arith.truncf %233 : vector<8x32xf32> to vector<8x32xbf16>
    %c0_68 = arith.constant 0 : index
    %c0_69 = arith.constant 0 : index
    %235 = vector.load %arg22[%c0_68, %c0_69] : memref<32x64xbf16, #tpu.memory_space<vmem>>, vector<32x64xbf16>
    %cst_70 = arith.constant dense<0.000000e+00> : vector<8x64xf32>
    %236 = tpu.matmul %234, %235, %cst_70 {dimension_numbers = #tpu.dot_dimension_numbers<[1], [0], [0], [1], [0, 0, 1, 1], [], []>} : vector<8x32xbf16>, vector<32x64xbf16>, vector<8x64xf32> -> vector<8x64xf32>
    %c0_71 = arith.constant 0 : index
    %c0_72 = arith.constant 0 : index
    %237 = vector.load %arg23[%c0_71, %c0_72] : memref<1x64xf32, #tpu.memory_space<vmem>>, vector<1x64xf32>
    %238 = vector.broadcast %237 : vector<1x64xf32> to vector<8x64xf32>
    %239 = arith.addf %236, %238 : vector<8x64xf32>
    %cst_73 = arith.constant 0.000000e+00 : f32
    %240 = vector.broadcast %cst_73 : f32 to vector<8x64xf32>
    %241 = arith.maximumf %239, %240 : vector<8x64xf32>
    %242 = arith.truncf %241 : vector<8x64xf32> to vector<8x64xbf16>
    %c0_74 = arith.constant 0 : index
    %c0_75 = arith.constant 0 : index
    %243 = vector.load %arg24[%c0_74, %c0_75] : memref<64x32xbf16, #tpu.memory_space<vmem>>, vector<64x32xbf16>
    %cst_76 = arith.constant dense<0.000000e+00> : vector<8x32xf32>
    %244 = tpu.matmul %242, %243, %cst_76 {dimension_numbers = #tpu.dot_dimension_numbers<[1], [0], [0], [1], [0, 0, 1, 1], [], []>} : vector<8x64xbf16>, vector<64x32xbf16>, vector<8x32xf32> -> vector<8x32xf32>
    %c0_77 = arith.constant 0 : index
    %c0_78 = arith.constant 0 : index
    %245 = vector.load %arg25[%c0_77, %c0_78] : memref<1x32xf32, #tpu.memory_space<vmem>>, vector<1x32xf32>
    %246 = vector.broadcast %245 : vector<1x32xf32> to vector<8x32xf32>
    %247 = arith.addf %244, %246 : vector<8x32xf32>
    %248 = arith.addf %247, %233 : vector<8x32xf32>
    %c0_79 = arith.constant 0 : index
    %c0_80 = arith.constant 0 : index
    %249 = vector.load %arg26[%c0_79, %c0_80] : memref<1x32xf32, #tpu.memory_space<vmem>>, vector<1x32xf32>
    %c0_81 = arith.constant 0 : index
    %c0_82 = arith.constant 0 : index
    %250 = vector.load %arg27[%c0_81, %c0_82] : memref<1x32xf32, #tpu.memory_space<vmem>>, vector<1x32xf32>
    %cst_83 = arith.constant dense<0.000000e+00> : vector<8xf32>
    %251 = vector.multi_reduction <add>, %248, %cst_83 [1] : vector<8x32xf32> to vector<8xf32>
    %252 = vector.shape_cast %251 : vector<8xf32> to vector<8x1xf32>
    %cst_84 = arith.constant 3.200000e+01 : f32
    %253 = vector.broadcast %cst_84 : f32 to vector<8x1xf32>
    %254 = arith.divf %252, %253 : vector<8x1xf32>
    %255 = vector.broadcast %254 : vector<8x1xf32> to vector<8x32xf32>
    %256 = arith.subf %248, %255 : vector<8x32xf32>
    %257 = arith.mulf %256, %256 : vector<8x32xf32>
    %cst_85 = arith.constant dense<0.000000e+00> : vector<8xf32>
    %258 = vector.multi_reduction <add>, %257, %cst_85 [1] : vector<8x32xf32> to vector<8xf32>
    %259 = vector.shape_cast %258 : vector<8xf32> to vector<8x1xf32>
    %cst_86 = arith.constant 3.100000e+01 : f32
    %260 = vector.broadcast %cst_86 : f32 to vector<8x1xf32>
    %261 = arith.divf %259, %260 : vector<8x1xf32>
    %262 = vector.broadcast %254 : vector<8x1xf32> to vector<8x32xf32>
    %263 = arith.subf %248, %262 : vector<8x32xf32>
    %264 = vector.broadcast %249 : vector<1x32xf32> to vector<8x32xf32>
    %265 = arith.mulf %264, %263 : vector<8x32xf32>
    %266 = math.sqrt %261 : vector<8x1xf32>
    %cst_87 = arith.constant 9.99999997E-7 : f32
    %267 = vector.broadcast %cst_87 : f32 to vector<8x1xf32>
    %268 = arith.addf %266, %267 : vector<8x1xf32>
    %269 = vector.broadcast %268 : vector<8x1xf32> to vector<8x32xf32>
    %270 = arith.divf %265, %269 : vector<8x32xf32>
    %271 = vector.broadcast %250 : vector<1x32xf32> to vector<8x32xf32>
    %272 = arith.addf %270, %271 : vector<8x32xf32>
    %c0_88 = arith.constant 0 : index
    %c0_89 = arith.constant 0 : index
    %c0_90 = arith.constant 0 : index
    %273 = vector.load %arg28[%c0_88, %c0_89, %c0_90] : memref<1x8x32xf32, #tpu.memory_space<vmem>>, vector<1x8x32xf32>
    %274 = vector.shape_cast %273 : vector<1x8x32xf32> to vector<8x32xf32>
    %275 = vector.shape_cast %272 : vector<8x32xf32> to vector<1x8x32xf32>
    tpu.vector_store %arg28[%c0_88, %c0_89, %c0_90], %275 {strides = array<i32>} : memref<1x8x32xf32, #tpu.memory_space<vmem>>, vector<1x8x32xf32>,
    return
  }
  func.func @transform_0(%arg0: i32, %arg1: i32) -> (i32, i32, i32) {
    %c0_i32 = arith.constant 0 : i32
    %c0_i32_0 = arith.constant 0 : i32
    return %arg0, %arg1, %c0_i32 : i32, i32, i32
  }
  func.func @transform_1(%arg0: i32, %arg1: i32) -> (i32, i32, i32) {
    %c0_i32 = arith.constant 0 : i32
    %c0_i32_0 = arith.constant 0 : i32
    %c0_i32_1 = arith.constant 0 : i32
    return %arg0, %c0_i32, %c0_i32_0 : i32, i32, i32
  }
  func.func @transform_2(%arg0: i32, %arg1: i32) -> (i32, i32, i32) {
    %c0_i32 = arith.constant 0 : i32
    %c0_i32_0 = arith.constant 0 : i32
    %c0_i32_1 = arith.constant 0 : i32
    return %arg0, %c0_i32, %c0_i32_0 : i32, i32, i32
  }
  func.func @transform_3(%arg0: i32, %arg1: i32) -> (i32, i32, i32) {
    %c0_i32 = arith.constant 0 : i32
    %c0_i32_0 = arith.constant 0 : i32
    %c0_i32_1 = arith.constant 0 : i32
    return %arg0, %c0_i32, %c0_i32_0 : i32, i32, i32
  }
  func.func @transform_4(%arg0: i32, %arg1: i32) -> (i32, i32) {
    %c0_i32 = arith.constant 0 : i32
    %c0_i32_0 = arith.constant 0 : i32
    %c0_i32_1 = arith.constant 0 : i32
    return %c0_i32, %c0_i32_0 : i32, i32
  }
  func.func @transform_5(%arg0: i32, %arg1: i32) -> (i32, i32) {
    %c0_i32 = arith.constant 0 : i32
    %c0_i32_0 = arith.constant 0 : i32
    %c0_i32_1 = arith.constant 0 : i32
    return %c0_i32, %c0_i32_0 : i32, i32
  }
  func.func @transform_6(%arg0: i32, %arg1: i32) -> (i32, i32) {
    %c0_i32 = arith.constant 0 : i32
    %c0_i32_0 = arith.constant 0 : i32
    %c0_i32_1 = arith.constant 0 : i32
    return %c0_i32, %c0_i32_0 : i32, i32
  }
  func.func @transform_7(%arg0: i32, %arg1: i32) -> (i32, i32) {
    %c0_i32 = arith.constant 0 : i32
    %c0_i32_0 = arith.constant 0 : i32
    %c0_i32_1 = arith.constant 0 : i32
    return %c0_i32, %c0_i32_0 : i32, i32
  }
  func.func @transform_8(%arg0: i32, %arg1: i32) -> (i32, i32) {
    %c0_i32 = arith.constant 0 : i32
    %c0_i32_0 = arith.constant 0 : i32
    %c0_i32_1 = arith.constant 0 : i32
    return %c0_i32, %c0_i32_0 : i32, i32
  }
  func.func @transform_9(%arg0: i32, %arg1: i32) -> (i32, i32) {
    %c0_i32 = arith.constant 0 : i32
    %c0_i32_0 = arith.constant 0 : i32
    %c0_i32_1 = arith.constant 0 : i32
    return %c0_i32, %c0_i32_0 : i32, i32
  }
  func.func @transform_10(%arg0: i32, %arg1: i32) -> (i32, i32) {
    %c0_i32 = arith.constant 0 : i32
    %c0_i32_0 = arith.constant 0 : i32
    %c0_i32_1 = arith.constant 0 : i32
    return %c0_i32, %c0_i32_0 : i32, i32
  }
  func.func @transform_11(%arg0: i32, %arg1: i32) -> (i32, i32) {
    %c0_i32 = arith.constant 0 : i32
    %c0_i32_0 = arith.constant 0 : i32
    %c0_i32_1 = arith.constant 0 : i32
    return %c0_i32, %c0_i32_0 : i32, i32
  }
  func.func @transform_12(%arg0: i32, %arg1: i32) -> (i32, i32) {
    %c0_i32 = arith.constant 0 : i32
    %c0_i32_0 = arith.constant 0 : i32
    %c0_i32_1 = arith.constant 0 : i32
    return %c0_i32, %c0_i32_0 : i32, i32
  }
  func.func @transform_13(%arg0: i32, %arg1: i32) -> (i32, i32) {
    %c0_i32 = arith.constant 0 : i32
    %c0_i32_0 = arith.constant 0 : i32
    %c0_i32_1 = arith.constant 0 : i32
    return %c0_i32, %c0_i32_0 : i32, i32
  }
  func.func @transform_14(%arg0: i32, %arg1: i32) -> (i32, i32) {
    %c0_i32 = arith.constant 0 : i32
    %c0_i32_0 = arith.constant 0 : i32
    %c0_i32_1 = arith.constant 0 : i32
    return %c0_i32, %c0_i32_0 : i32, i32
  }
  func.func @transform_15(%arg0: i32, %arg1: i32) -> (i32, i32) {
    %c0_i32 = arith.constant 0 : i32
    %c0_i32_0 = arith.constant 0 : i32
    %c0_i32_1 = arith.constant 0 : i32
    return %c0_i32, %c0_i32_0 : i32, i32
  }
  func.func @transform_16(%arg0: i32, %arg1: i32) -> (i32, i32) {
    %c0_i32 = arith.constant 0 : i32
    %c0_i32_0 = arith.constant 0 : i32
    %c0_i32_1 = arith.constant 0 : i32
    return %c0_i32, %c0_i32_0 : i32, i32
  }
  func.func @transform_17(%arg0: i32, %arg1: i32) -> (i32, i32) {
    %c0_i32 = arith.constant 0 : i32
    %c0_i32_0 = arith.constant 0 : i32
    %c0_i32_1 = arith.constant 0 : i32
    return %c0_i32, %c0_i32_0 : i32, i32
  }
  func.func @transform_18(%arg0: i32, %arg1: i32) -> (i32, i32) {
    %c0_i32 = arith.constant 0 : i32
    %c0_i32_0 = arith.constant 0 : i32
    %c0_i32_1 = arith.constant 0 : i32
    return %c0_i32, %c0_i32_0 : i32, i32
  }
  func.func @transform_19(%arg0: i32, %arg1: i32) -> (i32, i32) {
    %c0_i32 = arith.constant 0 : i32
    %c0_i32_0 = arith.constant 0 : i32
    %c0_i32_1 = arith.constant 0 : i32
    return %c0_i32, %c0_i32_0 : i32, i32
  }
  func.func @transform_20(%arg0: i32, %arg1: i32) -> (i32, i32) {
    %c0_i32 = arith.constant 0 : i32
    %c0_i32_0 = arith.constant 0 : i32
    %c0_i32_1 = arith.constant 0 : i32
    return %c0_i32, %c0_i32_0 : i32, i32
  }
  func.func @transform_21(%arg0: i32, %arg1: i32) -> (i32, i32) {
    %c0_i32 = arith.constant 0 : i32
    %c0_i32_0 = arith.constant 0 : i32
    %c0_i32_1 = arith.constant 0 : i32
    return %c0_i32, %c0_i32_0 : i32, i32
  }
  func.func @transform_22(%arg0: i32, %arg1: i32) -> (i32, i32) {
    %c0_i32 = arith.constant 0 : i32
    %c0_i32_0 = arith.constant 0 : i32
    %c0_i32_1 = arith.constant 0 : i32
    return %c0_i32, %c0_i32_0 : i32, i32
  }
  func.func @transform_23(%arg0: i32, %arg1: i32) -> (i32, i32) {
    %c0_i32 = arith.constant 0 : i32
    %c0_i32_0 = arith.constant 0 : i32
    %c0_i32_1 = arith.constant 0 : i32
    return %c0_i32, %c0_i32_0 : i32, i32
  }
  func.func @transform_24(%arg0: i32, %arg1: i32) -> (i32, i32) {
    %c0_i32 = arith.constant 0 : i32
    %c0_i32_0 = arith.constant 0 : i32
    %c0_i32_1 = arith.constant 0 : i32
    return %c0_i32, %c0_i32_0 : i32, i32
  }
  func.func @transform_25(%arg0: i32, %arg1: i32) -> (i32, i32) {
    %c0_i32 = arith.constant 0 : i32
    %c0_i32_0 = arith.constant 0 : i32
    %c0_i32_1 = arith.constant 0 : i32
    return %c0_i32, %c0_i32_0 : i32, i32
  }
  func.func @transform_26(%arg0: i32, %arg1: i32) -> (i32, i32, i32) {
    %c0_i32 = arith.constant 0 : i32
    %c0_i32_0 = arith.constant 0 : i32
    return %arg0, %arg1, %c0_i32 : i32, i32, i32
  }
}

module attributes {stable_mosaic.version = 11 : i64} {
  func.func @_decoder_layer_kernel(%arg0: i32, %arg1: i32, %arg2: memref<1x8x32xf32, #tpu.memory_space<vmem>>, %arg3: memref<1x8x32xf32, #tpu.memory_space<vmem>>, %arg4: memref<1x16x32xbf16, #tpu.memory_space<vmem>>, %arg5: memref<1x1x16xf32, #tpu.memory_space<vmem>>, %arg6: memref<32x32xbf16, #tpu.memory_space<vmem>>, %arg7: memref<1x32xf32, #tpu.memory_space<vmem>>, %arg8: memref<32x64xbf16, #tpu.memory_space<vmem>>, %arg9: memref<1x64xf32, #tpu.memory_space<vmem>>, %arg10: memref<32x32xbf16, #tpu.memory_space<vmem>>, %arg11: memref<1x32xf32, #tpu.memory_space<vmem>>, %arg12: memref<1x32xf32, #tpu.memory_space<vmem>>, %arg13: memref<1x32xf32, #tpu.memory_space<vmem>>, %arg14: memref<32x32xbf16, #tpu.memory_space<vmem>>, %arg15: memref<1x32xf32, #tpu.memory_space<vmem>>, %arg16: memref<32x64xbf16, #tpu.memory_space<vmem>>, %arg17: memref<1x64xf32, #tpu.memory_space<vmem>>, %arg18: memref<32x32xbf16, #tpu.memory_space<vmem>>, %arg19: memref<1x32xf32, #tpu.memory_space<vmem>>, %arg20: memref<1x32xf32, #tpu.memory_space<vmem>>, %arg21: memref<1x32xf32, #tpu.memory_space<vmem>>, %arg22: memref<32x64xbf16, #tpu.memory_space<vmem>>, %arg23: memref<1x64xf32, #tpu.memory_space<vmem>>, %arg24: memref<64x32xbf16, #tpu.memory_space<vmem>>, %arg25: memref<1x32xf32, #tpu.memory_space<vmem>>, %arg26: memref<1x32xf32, #tpu.memory_space<vmem>>, %arg27: memref<1x32xf32, #tpu.memory_space<vmem>>, %arg28: memref<1x8x32xf32, #tpu.memory_space<vmem>>) attributes {dimension_semantics = [#tpu.dimension_semantics<parallel>, #tpu.dimension_semantics<parallel>], iteration_bounds = array<i64: 2, 1>, scalar_prefetch = 0 : i64, scratch_operands = 0 : i64, tpu.core_type = #tpu.core_type<tc>, window_params = [{transform_indices = @transform_0, window_bounds = array<i64: 1, 8, 32>}, {transform_indices = @transform_1, window_bounds = array<i64: 1, 8, 32>}, {transform_indices = @transform_2, window_bounds = array<i64: 1, 16, 32>}, {transform_indices = @transform_3, window_bounds = array<i64: 1, 1, 16>}, {pipeline_mode = #tpu.pipeline_mode<synchronous>, transform_indices = @transform_4, window_bounds = array<i64: 32, 32>}, {pipeline_mode = #tpu.pipeline_mode<synchronous>, transform_indices = @transform_5, window_bounds = array<i64: 1, 32>}, {pipeline_mode = #tpu.pipeline_mode<synchronous>, transform_indices = @transform_6, window_bounds = array<i64: 32, 64>}, {pipeline_mode = #tpu.pipeline_mode<synchronous>, transform_indices = @transform_7, window_bounds = array<i64: 1, 64>}, {pipeline_mode = #tpu.pipeline_mode<synchronous>, transform_indices = @transform_8, window_bounds = array<i64: 32, 32>}, {pipeline_mode = #tpu.pipeline_mode<synchronous>, transform_indices = @transform_9, window_bounds = array<i64: 1, 32>}, {pipeline_mode = #tpu.pipeline_mode<synchronous>, transform_indices = @transform_10, window_bounds = array<i64: 1, 32>}, {pipeline_mode = #tpu.pipeline_mode<synchronous>, transform_indices = @transform_11, window_bounds = array<i64: 1, 32>}, {pipeline_mode = #tpu.pipeline_mode<synchronous>, transform_indices = @transform_12, window_bounds = array<i64: 32, 32>}, {pipeline_mode = #tpu.pipeline_mode<synchronous>, transform_indices = @transform_13, window_bounds = array<i64: 1, 32>}, {pipeline_mode = #tpu.pipeline_mode<synchronous>, transform_indices = @transform_14, window_bounds = array<i64: 32, 64>}, {pipeline_mode = #tpu.pipeline_mode<synchronous>, transform_indices = @transform_15, window_bounds = array<i64: 1, 64>}, {pipeline_mode = #tpu.pipeline_mode<synchronous>, transform_indices = @transform_16, window_bounds = array<i64: 32, 32>}, {pipeline_mode = #tpu.pipeline_mode<synchronous>, transform_indices = @transform_17, window_bounds = array<i64: 1, 32>}, {pipeline_mode = #tpu.pipeline_mode<synchronous>, transform_indices = @transform_18, window_bounds = array<i64: 1, 32>}, {pipeline_mode = #tpu.pipeline_mode<synchronous>, transform_indices = @transform_19, window_bounds = array<i64: 1, 32>}, {pipeline_mode = #tpu.pipeline_mode<synchronous>, transform_indices = @transform_20, window_bounds = array<i64: 32, 64>}, {pipeline_mode = #tpu.pipeline_mode<synchronous>, transform_indices = @transform_21, window_bounds = array<i64: 1, 64>}, {pipeline_mode = #tpu.pipeline_mode<synchronous>, transform_indices = @transform_22, window_bounds = array<i64: 64, 32>}, {pipeline_mode = #tpu.pipeline_mode<synchronous>, transform_indices = @transform_23, window_bounds = array<i64: 1, 32>}, {pipeline_mode = #tpu.pipeline_mode<synchronous>, transform_indices = @transform_24, window_bounds = array<i64: 1, 32>}, {pipeline_mode = #tpu.pipeline_mode<synchronous>, transform_indices = @transform_25, window_bounds = array<i64: 1, 32>}, {transform_indices = @transform_26, window_bounds = array<i64: 1, 8, 32>}]} {
    %c0 = arith.constant 0 : index
    %c0_0 = arith.constant 0 : index
    %c0_1 = arith.constant 0 : index
    %0 = vector.load %arg2[%c0, %c0_0, %c0_1] : memref<1x8x32xf32, #tpu.memory_space<vmem>>, vector<1x8x32xf32>
    %1 = vector.shape_cast %0 : vector<1x8x32xf32> to vector<8x32xf32>
    %c0_2 = arith.constant 0 : index
    %c0_3 = arith.constant 0 : index
    %c0_4 = arith.constant 0 : index
    %2 = vector.load %arg3[%c0_2, %c0_3, %c0_4] : memref<1x8x32xf32, #tpu.memory_space<vmem>>, vector<1x8x32xf32>
    %3 = vector.shape_cast %2 : vector<1x8x32xf32> to vector<8x32xf32>
    %4 = arith.truncf %3 : vector<8x32xf32> to vector<8x32xbf16>
    %c0_5 = arith.constant 0 : index
    %c0_6 = arith.constant 0 : index
    %c0_7 = arith.constant 0 : index
    %5 = vector.load %arg4[%c0_5, %c0_6, %c0_7] : memref<1x16x32xbf16, #tpu.memory_space<vmem>>, vector<1x16x32xbf16>
    %6 = vector.shape_cast %5 : vector<1x16x32xbf16> to vector<16x32xbf16>
    %c0_8 = arith.constant 0 : index
    %c0_9 = arith.constant 0 : index
    %c0_10 = arith.constant 0 : index
    %7 = vector.load %arg5[%c0_8, %c0_9, %c0_10] : memref<1x1x16xf32, #tpu.memory_space<vmem>>, vector<1x1x16xf32>
    %8 = vector.shape_cast %7 : vector<1x1x16xf32> to vector<1x16xf32>
    %c8_i32 = arith.constant 8 : i32
    %9 = arith.muli %arg1, %c8_i32 : i32
    %10 = tpu.iota {dimensions = array<i32: 0>} : vector<8x8xi32>
    %11 = vector.broadcast %9 : i32 to vector<8x8xi32>
    %12 = arith.addi %11, %10 : vector<8x8xi32>
    %13 = tpu.iota {dimensions = array<i32: 1>} : vector<8x8xi32>
    %14 = arith.cmpi sge, %12, %13 : vector<8x8xi32>
    %cst = arith.constant 0.000000e+00 : f32
    %cst_11 = arith.constant -1.000000e+09 : f32
    %15 = vector.broadcast %cst : f32 to vector<8x8xf32>
    %16 = vector.broadcast %cst_11 : f32 to vector<8x8xf32>
    %17 = arith.select %14, %15, %16 : vector<8x8xi1>, vector<8x8xf32>
    %18 = arith.truncf %1 : vector<8x32xf32> to vector<8x32xbf16>
    %c0_12 = arith.constant 0 : index
    %c0_13 = arith.constant 0 : index
    %19 = vector.load %arg6[%c0_12, %c0_13] : memref<32x32xbf16, #tpu.memory_space<vmem>>, vector<32x32xbf16>
    %cst_14 = arith.constant dense<0.000000e+00> : vector<8x32xf32>
    %20 = tpu.matmul %18, %19, %cst_14 {dimension_numbers = #tpu.dot_dimension_numbers<[1], [0], [0], [1], [0, 0, 1, 1], [], []>} : vector<8x32xbf16>, vector<32x32xbf16>, vector<8x32xf32> -> vector<8x32xf32>
    %c0_15 = arith.constant 0 : index
    %c0_16 = arith.constant 0 : index
    %21 = vector.load %arg7[%c0_15, %c0_16] : memref<1x32xf32, #tpu.memory_space<vmem>>, vector<1x32xf32>
    %22 = vector.broadcast %21 : vector<1x32xf32> to vector<8x32xf32>
    %23 = arith.addf %20, %22 : vector<8x32xf32>
    %c0_17 = arith.constant 0 : index
    %c0_18 = arith.constant 0 : index
    %24 = vector.load %arg8[%c0_17, %c0_18] : memref<32x64xbf16, #tpu.memory_space<vmem>>, vector<32x64xbf16>
    %cst_19 = arith.constant dense<0.000000e+00> : vector<8x64xf32>
    %25 = tpu.matmul %4, %24, %cst_19 {dimension_numbers = #tpu.dot_dimension_numbers<[1], [0], [0], [1], [0, 0, 1, 1], [], []>} : vector<8x32xbf16>, vector<32x64xbf16>, vector<8x64xf32> -> vector<8x64xf32>
    %c0_20 = arith.constant 0 : index
    %c0_21 = arith.constant 0 : index
    %26 = vector.load %arg9[%c0_20, %c0_21] : memref<1x64xf32, #tpu.memory_space<vmem>>, vector<1x64xf32>
    %27 = vector.broadcast %26 : vector<1x64xf32> to vector<8x64xf32>
    %28 = arith.addf %25, %27 : vector<8x64xf32>
    %29 = vector.extract_strided_slice %28 {offsets = [0, 0], sizes = [8, 32], strides = [1, 1]} : vector<8x64xf32> to vector<8x32xf32>
    %30 = vector.extract_strided_slice %28 {offsets = [0, 32], sizes = [8, 32], strides = [1, 1]} : vector<8x64xf32> to vector<8x32xf32>
    %31 = vector.extract_strided_slice %23 {offsets = [0, 0], sizes = [8, 8], strides = [1, 1]} : vector<8x32xf32> to vector<8x8xf32>
    %32 = arith.truncf %31 : vector<8x8xf32> to vector<8x8xbf16>
    %33 = vector.extract_strided_slice %23 {offsets = [0, 8], sizes = [8, 8], strides = [1, 1]} : vector<8x32xf32> to vector<8x8xf32>
    %34 = arith.truncf %33 : vector<8x8xf32> to vector<8x8xbf16>
    %35 = vector.extract_strided_slice %23 {offsets = [0, 16], sizes = [8, 8], strides = [1, 1]} : vector<8x32xf32> to vector<8x8xf32>
    %36 = arith.truncf %35 : vector<8x8xf32> to vector<8x8xbf16>
    %37 = vector.extract_strided_slice %23 {offsets = [0, 24], sizes = [8, 8], strides = [1, 1]} : vector<8x32xf32> to vector<8x8xf32>
    %38 = arith.truncf %37 : vector<8x8xf32> to vector<8x8xbf16>
    %39 = vector.shape_cast %32 : vector<8x8xbf16> to vector<1x8x8xbf16>
    %40 = vector.shape_cast %34 : vector<8x8xbf16> to vector<1x8x8xbf16>
    %41 = vector.shape_cast %36 : vector<8x8xbf16> to vector<1x8x8xbf16>
    %42 = vector.shape_cast %38 : vector<8x8xbf16> to vector<1x8x8xbf16>
    %43 = tpu.concatenate %39, %40, %41, %42 in 0 : vector<1x8x8xbf16>, vector<1x8x8xbf16>, vector<1x8x8xbf16>, vector<1x8x8xbf16> -> vector<4x8x8xbf16>
    %44 = vector.extract_strided_slice %29 {offsets = [0, 0], sizes = [8, 8], strides = [1, 1]} : vector<8x32xf32> to vector<8x8xf32>
    %45 = arith.truncf %44 : vector<8x8xf32> to vector<8x8xbf16>
    %46 = vector.extract_strided_slice %29 {offsets = [0, 8], sizes = [8, 8], strides = [1, 1]} : vector<8x32xf32> to vector<8x8xf32>
    %47 = arith.truncf %46 : vector<8x8xf32> to vector<8x8xbf16>
    %48 = vector.extract_strided_slice %29 {offsets = [0, 16], sizes = [8, 8], strides = [1, 1]} : vector<8x32xf32> to vector<8x8xf32>
    %49 = arith.truncf %48 : vector<8x8xf32> to vector<8x8xbf16>
    %50 = vector.extract_strided_slice %29 {offsets = [0, 24], sizes = [8, 8], strides = [1, 1]} : vector<8x32xf32> to vector<8x8xf32>
    %51 = arith.truncf %50 : vector<8x8xf32> to vector<8x8xbf16>
    %52 = vector.shape_cast %45 : vector<8x8xbf16> to vector<1x8x8xbf16>
    %53 = vector.shape_cast %47 : vector<8x8xbf16> to vector<1x8x8xbf16>
    %54 = vector.shape_cast %49 : vector<8x8xbf16> to vector<1x8x8xbf16>
    %55 = vector.shape_cast %51 : vector<8x8xbf16> to vector<1x8x8xbf16>
    %56 = tpu.concatenate %52, %53, %54, %55 in 0 : vector<1x8x8xbf16>, vector<1x8x8xbf16>, vector<1x8x8xbf16>, vector<1x8x8xbf16> -> vector<4x8x8xbf16>
    %57 = vector.extract_strided_slice %30 {offsets = [0, 0], sizes = [8, 8], strides = [1, 1]} : vector<8x32xf32> to vector<8x8xf32>
    %58 = arith.truncf %57 : vector<8x8xf32> to vector<8x8xbf16>
    %59 = vector.extract_strided_slice %30 {offsets = [0, 8], sizes = [8, 8], strides = [1, 1]} : vector<8x32xf32> to vector<8x8xf32>
    %60 = arith.truncf %59 : vector<8x8xf32> to vector<8x8xbf16>
    %61 = vector.extract_strided_slice %30 {offsets = [0, 16], sizes = [8, 8], strides = [1, 1]} : vector<8x32xf32> to vector<8x8xf32>
    %62 = arith.truncf %61 : vector<8x8xf32> to vector<8x8xbf16>
    %63 = vector.extract_strided_slice %30 {offsets = [0, 24], sizes = [8, 8], strides = [1, 1]} : vector<8x32xf32> to vector<8x8xf32>
    %64 = arith.truncf %63 : vector<8x8xf32> to vector<8x8xbf16>
    %65 = vector.shape_cast %58 : vector<8x8xbf16> to vector<1x8x8xbf16>
    %66 = vector.shape_cast %60 : vector<8x8xbf16> to vector<1x8x8xbf16>
    %67 = vector.shape_cast %62 : vector<8x8xbf16> to vector<1x8x8xbf16>
    %68 = vector.shape_cast %64 : vector<8x8xbf16> to vector<1x8x8xbf16>
    %69 = tpu.concatenate %65, %66, %67, %68 in 0 : vector<1x8x8xbf16>, vector<1x8x8xbf16>, vector<1x8x8xbf16>, vector<1x8x8xbf16> -> vector<4x8x8xbf16>
    "tpu.trace_start"() <{level = 10 : i32, message = "hqd,hkd->hqk"}> : () -> ()
    %cst_22 = arith.constant dense<0.000000e+00> : vector<4x8x8xf32>
    %70 = tpu.matmul %43, %56, %cst_22 {dimension_numbers = #tpu.dot_dimension_numbers<[2], [2], [1], [1], [0, 0, 0, 1, 1, 1], [0], [0]>} : vector<4x8x8xbf16>, vector<4x8x8xbf16>, vector<4x8x8xf32> -> vector<4x8x8xf32>
    "tpu.trace_stop"() : () -> ()
    %71 = vector.shape_cast %17 : vector<8x8xf32> to vector<1x8x8xf32>
    %72 = vector.broadcast %71 : vector<1x8x8xf32> to vector<4x8x8xf32>
    %73 = arith.addf %70, %72 : vector<4x8x8xf32>
    %cst_23 = arith.constant dense<0xFF800000> : vector<4x8xf32>
    %74 = vector.multi_reduction <maximumf>, %73, %cst_23 [2] : vector<4x8x8xf32> to vector<4x8xf32>
    %75 = vector.shape_cast %74 : vector<4x8xf32> to vector<4x8x1xf32>
    %76 = vector.broadcast %75 : vector<4x8x1xf32> to vector<4x8x8xf32>
    %77 = arith.subf %73, %76 : vector<4x8x8xf32>
    %78 = math.exp %77 : vector<4x8x8xf32>
    %cst_24 = arith.constant dense<0.000000e+00> : vector<4x8xf32>
    %79 = vector.multi_reduction <add>, %78, %cst_24 [2] : vector<4x8x8xf32> to vector<4x8xf32>
    %80 = vector.shape_cast %79 : vector<4x8xf32> to vector<4x8x1xf32>
    %81 = tpu.reciprocal %80 {approx = true} : vector<4x8x1xf32> -> vector<4x8x1xf32>
    %82 = vector.broadcast %81 : vector<4x8x1xf32> to vector<4x8x8xf32>
    %83 = arith.mulf %78, %82 : vector<4x8x8xf32>
    %84 = arith.truncf %83 : vector<4x8x8xf32> to vector<4x8x8xbf16>
    "tpu.trace_start"() <{level = 10 : i32, message = "hqk,hkd->hqd"}> : () -> ()
    %cst_25 = arith.constant dense<0.000000e+00> : vector<4x8x8xf32>
    %85 = tpu.matmul %84, %69, %cst_25 {dimension_numbers = #tpu.dot_dimension_numbers<[2], [1], [1], [2], [0, 0, 0, 1, 1, 2], [0], [0]>} : vector<4x8x8xbf16>, vector<4x8x8xbf16>, vector<4x8x8xf32> -> vector<4x8x8xf32>
    "tpu.trace_stop"() : () -> ()
    %86 = vector.extract_strided_slice %85 {offsets = [0, 0, 0], sizes = [1, 8, 8], strides = [1, 1, 1]} : vector<4x8x8xf32> to vector<1x8x8xf32>
    %87 = vector.shape_cast %86 : vector<1x8x8xf32> to vector<8x8xf32>
    %88 = vector.extract_strided_slice %85 {offsets = [1, 0, 0], sizes = [1, 8, 8], strides = [1, 1, 1]} : vector<4x8x8xf32> to vector<1x8x8xf32>
    %89 = vector.shape_cast %88 : vector<1x8x8xf32> to vector<8x8xf32>
    %90 = vector.extract_strided_slice %85 {offsets = [2, 0, 0], sizes = [1, 8, 8], strides = [1, 1, 1]} : vector<4x8x8xf32> to vector<1x8x8xf32>
    %91 = vector.shape_cast %90 : vector<1x8x8xf32> to vector<8x8xf32>
    %92 = vector.extract_strided_slice %85 {offsets = [3, 0, 0], sizes = [1, 8, 8], strides = [1, 1, 1]} : vector<4x8x8xf32> to vector<1x8x8xf32>
    %93 = vector.shape_cast %92 : vector<1x8x8xf32> to vector<8x8xf32>
    %94 = tpu.concatenate %87, %89, %91, %93 in 1 : vector<8x8xf32>, vector<8x8xf32>, vector<8x8xf32>, vector<8x8xf32> -> vector<8x32xf32>
    %95 = arith.truncf %94 : vector<8x32xf32> to vector<8x32xbf16>
    %c0_26 = arith.constant 0 : index
    %c0_27 = arith.constant 0 : index
    %96 = vector.load %arg10[%c0_26, %c0_27] : memref<32x32xbf16, #tpu.memory_space<vmem>>, vector<32x32xbf16>
    %cst_28 = arith.constant dense<0.000000e+00> : vector<8x32xf32>
    %97 = tpu.matmul %95, %96, %cst_28 {dimension_numbers = #tpu.dot_dimension_numbers<[1], [0], [0], [1], [0, 0, 1, 1], [], []>} : vector<8x32xbf16>, vector<32x32xbf16>, vector<8x32xf32> -> vector<8x32xf32>
    %c0_29 = arith.constant 0 : index
    %c0_30 = arith.constant 0 : index
    %98 = vector.load %arg11[%c0_29, %c0_30] : memref<1x32xf32, #tpu.memory_space<vmem>>, vector<1x32xf32>
    %99 = vector.broadcast %98 : vector<1x32xf32> to vector<8x32xf32>
    %100 = arith.addf %97, %99 : vector<8x32xf32>
    %101 = arith.addf %100, %1 : vector<8x32xf32>
    %c0_31 = arith.constant 0 : index
    %c0_32 = arith.constant 0 : index
    %102 = vector.load %arg12[%c0_31, %c0_32] : memref<1x32xf32, #tpu.memory_space<vmem>>, vector<1x32xf32>
    %c0_33 = arith.constant 0 : index
    %c0_34 = arith.constant 0 : index
    %103 = vector.load %arg13[%c0_33, %c0_34] : memref<1x32xf32, #tpu.memory_space<vmem>>, vector<1x32xf32>
    %cst_35 = arith.constant dense<0.000000e+00> : vector<8xf32>
    %104 = vector.multi_reduction <add>, %101, %cst_35 [1] : vector<8x32xf32> to vector<8xf32>
    %105 = vector.shape_cast %104 : vector<8xf32> to vector<8x1xf32>
    %cst_36 = arith.constant 3.200000e+01 : f32
    %106 = vector.broadcast %cst_36 : f32 to vector<8x1xf32>
    %107 = arith.divf %105, %106 : vector<8x1xf32>
    %108 = vector.broadcast %107 : vector<8x1xf32> to vector<8x32xf32>
    %109 = arith.subf %101, %108 : vector<8x32xf32>
    %110 = arith.mulf %109, %109 : vector<8x32xf32>
    %cst_37 = arith.constant dense<0.000000e+00> : vector<8xf32>
    %111 = vector.multi_reduction <add>, %110, %cst_37 [1] : vector<8x32xf32> to vector<8xf32>
    %112 = vector.shape_cast %111 : vector<8xf32> to vector<8x1xf32>
    %cst_38 = arith.constant 3.100000e+01 : f32
    %113 = vector.broadcast %cst_38 : f32 to vector<8x1xf32>
    %114 = arith.divf %112, %113 : vector<8x1xf32>
    %115 = vector.broadcast %107 : vector<8x1xf32> to vector<8x32xf32>
    %116 = arith.subf %101, %115 : vector<8x32xf32>
    %117 = vector.broadcast %102 : vector<1x32xf32> to vector<8x32xf32>
    %118 = arith.mulf %117, %116 : vector<8x32xf32>
    %119 = math.sqrt %114 : vector<8x1xf32>
    %cst_39 = arith.constant 9.99999997E-7 : f32
    %120 = vector.broadcast %cst_39 : f32 to vector<8x1xf32>
    %121 = arith.addf %119, %120 : vector<8x1xf32>
    %122 = vector.broadcast %121 : vector<8x1xf32> to vector<8x32xf32>
    %123 = arith.divf %118, %122 : vector<8x32xf32>
    %124 = vector.broadcast %103 : vector<1x32xf32> to vector<8x32xf32>
    %125 = arith.addf %123, %124 : vector<8x32xf32>
    %126 = arith.truncf %125 : vector<8x32xf32> to vector<8x32xbf16>
    %c0_40 = arith.constant 0 : index
    %c0_41 = arith.constant 0 : index
    %127 = vector.load %arg14[%c0_40, %c0_41] : memref<32x32xbf16, #tpu.memory_space<vmem>>, vector<32x32xbf16>
    %cst_42 = arith.constant dense<0.000000e+00> : vector<8x32xf32>
    %128 = tpu.matmul %126, %127, %cst_42 {dimension_numbers = #tpu.dot_dimension_numbers<[1], [0], [0], [1], [0, 0, 1, 1], [], []>} : vector<8x32xbf16>, vector<32x32xbf16>, vector<8x32xf32> -> vector<8x32xf32>
    %c0_43 = arith.constant 0 : index
    %c0_44 = arith.constant 0 : index
    %129 = vector.load %arg15[%c0_43, %c0_44] : memref<1x32xf32, #tpu.memory_space<vmem>>, vector<1x32xf32>
    %130 = vector.broadcast %129 : vector<1x32xf32> to vector<8x32xf32>
    %131 = arith.addf %128, %130 : vector<8x32xf32>
    %c0_45 = arith.constant 0 : index
    %c0_46 = arith.constant 0 : index
    %132 = vector.load %arg16[%c0_45, %c0_46] : memref<32x64xbf16, #tpu.memory_space<vmem>>, vector<32x64xbf16>
    %cst_47 = arith.constant dense<0.000000e+00> : vector<16x64xf32>
    %133 = tpu.matmul %6, %132, %cst_47 {dimension_numbers = #tpu.dot_dimension_numbers<[1], [0], [0], [1], [0, 0, 1, 1], [], []>} : vector<16x32xbf16>, vector<32x64xbf16>, vector<16x64xf32> -> vector<16x64xf32>
    %c0_48 = arith.constant 0 : index
    %c0_49 = arith.constant 0 : index
    %134 = vector.load %arg17[%c0_48, %c0_49] : memref<1x64xf32, #tpu.memory_space<vmem>>, vector<1x64xf32>
    %135 = vector.broadcast %134 : vector<1x64xf32> to vector<16x64xf32>
    %136 = arith.addf %133, %135 : vector<16x64xf32>
    %137 = vector.extract_strided_slice %136 {offsets = [0, 0], sizes = [16, 32], strides = [1, 1]} : vector<16x64xf32> to vector<16x32xf32>
    %138 = vector.extract_strided_slice %136 {offsets = [0, 32], sizes = [16, 32], strides = [1, 1]} : vector<16x64xf32> to vector<16x32xf32>
    %139 = vector.extract_strided_slice %131 {offsets = [0, 0], sizes = [8, 8], strides = [1, 1]} : vector<8x32xf32> to vector<8x8xf32>
    %140 = arith.truncf %139 : vector<8x8xf32> to vector<8x8xbf16>
    %141 = vector.extract_strided_slice %131 {offsets = [0, 8], sizes = [8, 8], strides = [1, 1]} : vector<8x32xf32> to vector<8x8xf32>
    %142 = arith.truncf %141 : vector<8x8xf32> to vector<8x8xbf16>
    %143 = vector.extract_strided_slice %131 {offsets = [0, 16], sizes = [8, 8], strides = [1, 1]} : vector<8x32xf32> to vector<8x8xf32>
    %144 = arith.truncf %143 : vector<8x8xf32> to vector<8x8xbf16>
    %145 = vector.extract_strided_slice %131 {offsets = [0, 24], sizes = [8, 8], strides = [1, 1]} : vector<8x32xf32> to vector<8x8xf32>
    %146 = arith.truncf %145 : vector<8x8xf32> to vector<8x8xbf16>
    %147 = vector.shape_cast %140 : vector<8x8xbf16> to vector<1x8x8xbf16>
    %148 = vector.shape_cast %142 : vector<8x8xbf16> to vector<1x8x8xbf16>
    %149 = vector.shape_cast %144 : vector<8x8xbf16> to vector<1x8x8xbf16>
    %150 = vector.shape_cast %146 : vector<8x8xbf16> to vector<1x8x8xbf16>
    %151 = tpu.concatenate %147, %148, %149, %150 in 0 : vector<1x8x8xbf16>, vector<1x8x8xbf16>, vector<1x8x8xbf16>, vector<1x8x8xbf16> -> vector<4x8x8xbf16>
    %152 = vector.extract_strided_slice %137 {offsets = [0, 0], sizes = [16, 8], strides = [1, 1]} : vector<16x32xf32> to vector<16x8xf32>
    %153 = arith.truncf %152 : vector<16x8xf32> to vector<16x8xbf16>
    %154 = vector.extract_strided_slice %137 {offsets = [0, 8], sizes = [16, 8], strides = [1, 1]} : vector<16x32xf32> to vector<16x8xf32>
    %155 = arith.truncf %154 : vector<16x8xf32> to vector<16x8xbf16>
    %156 = vector.extract_strided_slice %137 {offsets = [0, 16], sizes = [16, 8], strides = [1, 1]} : vector<16x32xf32> to vector<16x8xf32>
    %157 = arith.truncf %156 : vector<16x8xf32> to vector<16x8xbf16>
    %158 = vector.extract_strided_slice %137 {offsets = [0, 24], sizes = [16, 8], strides = [1, 1]} : vector<16x32xf32> to vector<16x8xf32>
    %159 = arith.truncf %158 : vector<16x8xf32> to vector<16x8xbf16>
    %160 = vector.shape_cast %153 : vector<16x8xbf16> to vector<1x16x8xbf16>
    %161 = vector.shape_cast %155 : vector<16x8xbf16> to vector<1x16x8xbf16>
    %162 = vector.shape_cast %157 : vector<16x8xbf16> to vector<1x16x8xbf16>
    %163 = vector.shape_cast %159 : vector<16x8xbf16> to vector<1x16x8xbf16>
    %164 = tpu.concatenate %160, %161, %162, %163 in 0 : vector<1x16x8xbf16>, vector<1x16x8xbf16>, vector<1x16x8xbf16>, vector<1x16x8xbf16> -> vector<4x16x8xbf16>
    %165 = vector.extract_strided_slice %138 {offsets = [0, 0], sizes = [16, 8], strides = [1, 1]} : vector<16x32xf32> to vector<16x8xf32>
    %166 = arith.truncf %165 : vector<16x8xf32> to vector<16x8xbf16>
    %167 = vector.extract_strided_slice %138 {offsets = [0, 8], sizes = [16, 8], strides = [1, 1]} : vector<16x32xf32> to vector<16x8xf32>
    %168 = arith.truncf %167 : vector<16x8xf32> to vector<16x8xbf16>
    %169 = vector.extract_strided_slice %138 {offsets = [0, 16], sizes = [16, 8], strides = [1, 1]} : vector<16x32xf32> to vector<16x8xf32>
    %170 = arith.truncf %169 : vector<16x8xf32> to vector<16x8xbf16>
    %171 = vector.extract_strided_slice %138 {offsets = [0, 24], sizes = [16, 8], strides = [1, 1]} : vector<16x32xf32> to vector<16x8xf32>
    %172 = arith.truncf %171 : vector<16x8xf32> to vector<16x8xbf16>
    %173 = vector.shape_cast %166 : vector<16x8xbf16> to vector<1x16x8xbf16>
    %174 = vector.shape_cast %168 : vector<16x8xbf16> to vector<1x16x8xbf16>
    %175 = vector.shape_cast %170 : vector<16x8xbf16> to vector<1x16x8xbf16>
    %176 = vector.shape_cast %172 : vector<16x8xbf16> to vector<1x16x8xbf16>
    %177 = tpu.concatenate %173, %174, %175, %176 in 0 : vector<1x16x8xbf16>, vector<1x16x8xbf16>, vector<1x16x8xbf16>, vector<1x16x8xbf16> -> vector<4x16x8xbf16>
    "tpu.trace_start"() <{level = 10 : i32, message = "hqd,hkd->hqk"}> : () -> ()
    %cst_50 = arith.constant dense<0.000000e+00> : vector<4x8x16xf32>
    %178 = tpu.matmul %151, %164, %cst_50 {dimension_numbers = #tpu.dot_dimension_numbers<[2], [2], [1], [1], [0, 0, 0, 1, 1, 1], [0], [0]>} : vector<4x8x8xbf16>, vector<4x16x8xbf16>, vector<4x8x16xf32> -> vector<4x8x16xf32>
    "tpu.trace_stop"() : () -> ()
    %179 = vector.shape_cast %8 : vector<1x16xf32> to vector<1x1x16xf32>
    %180 = vector.broadcast %179 : vector<1x1x16xf32> to vector<4x8x16xf32>
    %181 = arith.addf %178, %180 : vector<4x8x16xf32>
    %cst_51 = arith.constant dense<0xFF800000> : vector<4x8xf32>
    %182 = vector.multi_reduction <maximumf>, %181, %cst_51 [2] : vector<4x8x16xf32> to vector<4x8xf32>
    %183 = vector.shape_cast %182 : vector<4x8xf32> to vector<4x8x1xf32>
    %184 = vector.broadcast %183 : vector<4x8x1xf32> to vector<4x8x16xf32>
    %185 = arith.subf %181, %184 : vector<4x8x16xf32>
    %186 = math.exp %185 : vector<4x8x16xf32>
    %cst_52 = arith.constant dense<0.000000e+00> : vector<4x8xf32>
    %187 = vector.multi_reduction <add>, %186, %cst_52 [2] : vector<4x8x16xf32> to vector<4x8xf32>
    %188 = vector.shape_cast %187 : vector<4x8xf32> to vector<4x8x1xf32>
    %189 = tpu.reciprocal %188 {approx = true} : vector<4x8x1xf32> -> vector<4x8x1xf32>
    %190 = vector.broadcast %189 : vector<4x8x1xf32> to vector<4x8x16xf32>
    %191 = arith.mulf %186, %190 : vector<4x8x16xf32>
    %192 = arith.truncf %191 : vector<4x8x16xf32> to vector<4x8x16xbf16>
    "tpu.trace_start"() <{level = 10 : i32, message = "hqk,hkd->hqd"}> : () -> ()
    %cst_53 = arith.constant dense<0.000000e+00> : vector<4x8x8xf32>
    %193 = tpu.matmul %192, %177, %cst_53 {dimension_numbers = #tpu.dot_dimension_numbers<[2], [1], [1], [2], [0, 0, 0, 1, 1, 2], [0], [0]>} : vector<4x8x16xbf16>, vector<4x16x8xbf16>, vector<4x8x8xf32> -> vector<4x8x8xf32>
    "tpu.trace_stop"() : () -> ()
    %194 = vector.extract_strided_slice %193 {offsets = [0, 0, 0], sizes = [1, 8, 8], strides = [1, 1, 1]} : vector<4x8x8xf32> to vector<1x8x8xf32>
    %195 = vector.shape_cast %194 : vector<1x8x8xf32> to vector<8x8xf32>
    %196 = vector.extract_strided_slice %193 {offsets = [1, 0, 0], sizes = [1, 8, 8], strides = [1, 1, 1]} : vector<4x8x8xf32> to vector<1x8x8xf32>
    %197 = vector.shape_cast %196 : vector<1x8x8xf32> to vector<8x8xf32>
    %198 = vector.extract_strided_slice %193 {offsets = [2, 0, 0], sizes = [1, 8, 8], strides = [1, 1, 1]} : vector<4x8x8xf32> to vector<1x8x8xf32>
    %199 = vector.shape_cast %198 : vector<1x8x8xf32> to vector<8x8xf32>
    %200 = vector.extract_strided_slice %193 {offsets = [3, 0, 0], sizes = [1, 8, 8], strides = [1, 1, 1]} : vector<4x8x8xf32> to vector<1x8x8xf32>
    %201 = vector.shape_cast %200 : vector<1x8x8xf32> to vector<8x8xf32>
    %202 = tpu.concatenate %195, %197, %199, %201 in 1 : vector<8x8xf32>, vector<8x8xf32>, vector<8x8xf32>, vector<8x8xf32> -> vector<8x32xf32>
    %203 = arith.truncf %202 : vector<8x32xf32> to vector<8x32xbf16>
    %c0_54 = arith.constant 0 : index
    %c0_55 = arith.constant 0 : index
    %204 = vector.load %arg18[%c0_54, %c0_55] : memref<32x32xbf16, #tpu.memory_space<vmem>>, vector<32x32xbf16>
    %cst_56 = arith.constant dense<0.000000e+00> : vector<8x32xf32>
    %205 = tpu.matmul %203, %204, %cst_56 {dimension_numbers = #tpu.dot_dimension_numbers<[1], [0], [0], [1], [0, 0, 1, 1], [], []>} : vector<8x32xbf16>, vector<32x32xbf16>, vector<8x32xf32> -> vector<8x32xf32>
    %c0_57 = arith.constant 0 : index
    %c0_58 = arith.constant 0 : index
    %206 = vector.load %arg19[%c0_57, %c0_58] : memref<1x32xf32, #tpu.memory_space<vmem>>, vector<1x32xf32>
    %207 = vector.broadcast %206 : vector<1x32xf32> to vector<8x32xf32>
    %208 = arith.addf %205, %207 : vector<8x32xf32>
    %209 = arith.addf %208, %125 : vector<8x32xf32>
    %c0_59 = arith.constant 0 : index
    %c0_60 = arith.constant 0 : index
    %210 = vector.load %arg20[%c0_59, %c0_60] : memref<1x32xf32, #tpu.memory_space<vmem>>, vector<1x32xf32>
    %c0_61 = arith.constant 0 : index
    %c0_62 = arith.constant 0 : index
    %211 = vector.load %arg21[%c0_61, %c0_62] : memref<1x32xf32, #tpu.memory_space<vmem>>, vector<1x32xf32>
    %cst_63 = arith.constant dense<0.000000e+00> : vector<8xf32>
    %212 = vector.multi_reduction <add>, %209, %cst_63 [1] : vector<8x32xf32> to vector<8xf32>
    %213 = vector.shape_cast %212 : vector<8xf32> to vector<8x1xf32>
    %cst_64 = arith.constant 3.200000e+01 : f32
    %214 = vector.broadcast %cst_64 : f32 to vector<8x1xf32>
    %215 = arith.divf %213, %214 : vector<8x1xf32>
    %216 = vector.broadcast %215 : vector<8x1xf32> to vector<8x32xf32>
    %217 = arith.subf %209, %216 : vector<8x32xf32>
    %218 = arith.mulf %217, %217 : vector<8x32xf32>
    %cst_65 = arith.constant dense<0.000000e+00> : vector<8xf32>
    %219 = vector.multi_reduction <add>, %218, %cst_65 [1] : vector<8x32xf32> to vector<8xf32>
    %220 = vector.shape_cast %219 : vector<8xf32> to vector<8x1xf32>
    %cst_66 = arith.constant 3.100000e+01 : f32
    %221 = vector.broadcast %cst_66 : f32 to vector<8x1xf32>
    %222 = arith.divf %220, %221 : vector<8x1xf32>
    %223 = vector.broadcast %215 : vector<8x1xf32> to vector<8x32xf32>
    %224 = arith.subf %209, %223 : vector<8x32xf32>
    %225 = vector.broadcast %210 : vector<1x32xf32> to vector<8x32xf32>
    %226 = arith.mulf %225, %224 : vector<8x32xf32>
    %227 = math.sqrt %222 : vector<8x1xf32>
    %cst_67 = arith.constant 9.99999997E-7 : f32
    %228 = vector.broadcast %cst_67 : f32 to vector<8x1xf32>
    %229 = arith.addf %227, %228 : vector<8x1xf32>
    %230 = vector.broadcast %229 : vector<8x1xf32> to vector<8x32xf32>
    %231 = arith.divf %226, %230 : vector<8x32xf32>
    %232 = vector.broadcast %211 : vector<1x32xf32> to vector<8x32xf32>
    %233 = arith.addf %231, %232 : vector<8x32xf32>
    %234 = arith.truncf %233 : vector<8x32xf32> to vector<8x32xbf16>
    %c0_68 = arith.constant 0 : index
    %c0_69 = arith.constant 0 : index
    %235 = vector.load %arg22[%c0_68, %c0_69] : memref<32x64xbf16, #tpu.memory_space<vmem>>, vector<32x64xbf16>
    %cst_70 = arith.constant dense<0.000000e+00> : vector<8x64xf32>
    %236 = tpu.matmul %234, %235, %cst_70 {dimension_numbers = #tpu.dot_dimension_numbers<[1], [0], [0], [1], [0, 0, 1, 1], [], []>} : vector<8x32xbf16>, vector<32x64xbf16>, vector<8x64xf32> -> vector<8x64xf32>
    %c0_71 = arith.constant 0 : index
    %c0_72 = arith.constant 0 : index
    %237 = vector.load %arg23[%c0_71, %c0_72] : memref<1x64xf32, #tpu.memory_space<vmem>>, vector<1x64xf32>
    %238 = vector.broadcast %237 : vector<1x64xf32> to vector<8x64xf32>
    %239 = arith.addf %236, %238 : vector<8x64xf32>
    %cst_73 = arith.constant 0.000000e+00 : f32
    %240 = vector.broadcast %cst_73 : f32 to vector<8x64xf32>
    %241 = arith.maximumf %239, %240 : vector<8x64xf32>
    %242 = arith.truncf %241 : vector<8x64xf32> to vector<8x64xbf16>
    %c0_74 = arith.constant 0 : index
    %c0_75 = arith.constant 0 : index
    %243 = vector.load %arg24[%c0_74, %c0_75] : memref<64x32xbf16, #tpu.memory_space<vmem>>, vector<64x32xbf16>
    %cst_76 = arith.constant dense<0.000000e+00> : vector<8x32xf32>
    %244 = tpu.matmul %242, %243, %cst_76 {dimension_numbers = #tpu.dot_dimension_numbers<[1], [0], [0], [1], [0, 0, 1, 1], [], []>} : vector<8x64xbf16>, vector<64x32xbf16>, vector<8x32xf32> -> vector<8x32xf32>
    %c0_77 = arith.constant 0 : index
    %c0_78 = arith.constant 0 : index
    %245 = vector.load %arg25[%c0_77, %c0_78] : memref<1x32xf32, #tpu.memory_space<vmem>>, vector<1x32xf32>
    %246 = vector.broadcast %245 : vector<1x32xf32> to vector<8x32xf32>
    %247 = arith.addf %244, %246 : vector<8x32xf32>
    %248 = arith.addf %247, %233 : vector<8x32xf32>
    %c0_79 = arith.constant 0 : index
    %c0_80 = arith.constant 0 : index
    %249 = vector.load %arg26[%c0_79, %c0_80] : memref<1x32xf32, #tpu.memory_space<vmem>>, vector<1x32xf32>
    %c0_81 = arith.constant 0 : index
    %c0_82 = arith.constant 0 : index
    %250 = vector.load %arg27[%c0_81, %c0_82] : memref<1x32xf32, #tpu.memory_space<vmem>>, vector<1x32xf32>
    %cst_83 = arith.constant dense<0.000000e+00> : vector<8xf32>
    %251 = vector.multi_reduction <add>, %248, %cst_83 [1] : vector<8x32xf32> to vector<8xf32>
    %252 = vector.shape_cast %251 : vector<8xf32> to vector<8x1xf32>
    %cst_84 = arith.constant 3.200000e+01 : f32
    %253 = vector.broadcast %cst_84 : f32 to vector<8x1xf32>
    %254 = arith.divf %252, %253 : vector<8x1xf32>
    %255 = vector.broadcast %254 : vector<8x1xf32> to vector<8x32xf32>
    %256 = arith.subf %248, %255 : vector<8x32xf32>
    %257 = arith.mulf %256, %256 : vector<8x32xf32>
    %cst_85 = arith.constant dense<0.000000e+00> : vector<8xf32>
    %258 = vector.multi_reduction <add>, %257, %cst_85 [1] : vector<8x32xf32> to vector<8xf32>
    %259 = vector.shape_cast %258 : vector<8xf32> to vector<8x1xf32>
    %cst_86 = arith.constant 3.100000e+01 : f32
    %260 = vector.broadcast %cst_86 : f32 to vector<8x1xf32>
    %261 = arith.divf %259, %260 : vector<8x1xf32>
    %262 = vector.broadcast %254 : vector<8x1xf32> to vector<8x32xf32>
    %263 = arith.subf %248, %262 : vector<8x32xf32>
    %264 = vector.broadcast %249 : vector<1x32xf32> to vector<8x32xf32>
    %265 = arith.mulf %264, %263 : vector<8x32xf32>
    %266 = math.sqrt %261 : vector<8x1xf32>
    %cst_87 = arith.constant 9.99999997E-7 : f32
    %267 = vector.broadcast %cst_87 : f32 to vector<8x1xf32>
    %268 = arith.addf %266, %267 : vector<8x1xf32>
    %269 = vector.broadcast %268 : vector<8x1xf32> to vector<8x32xf32>
    %270 = arith.divf %265, %269 : vector<8x32xf32>
    %271 = vector.broadcast %250 : vector<1x32xf32> to vector<8x32xf32>
    %272 = arith.addf %270, %271 : vector<8x32xf32>
    %c0_88 = arith.constant 0 : index
    %c0_89 = arith.constant 0 : index
    %c0_90 = arith.constant 0 : index
    %273 = vector.load %arg28[%c0_88, %c0_89, %c0_90] : memref<1x8x32xf32, #tpu.memory_space<vmem>>, vector<1x8x32xf32>
    %274 = vector.shape_cast %273 : vector<1x8x32xf32> to vector<8x32xf32>
    %275 = vector.shape_cast %272 : vector<8x32xf32> to vector<1x8x32xf32>
    tpu.vector_store %arg28[%c0_88, %c0_89, %c0_90], %275 {strides = array<i32>} : memref<1x8x32xf32, #tpu.memory_space<vmem>>, vector<1x8x32xf32>,
    return
  }
  func.func @transform_0(%arg0: i32, %arg1: i32) -> (i32, i32, i32) {
    %c0_i32 = arith.constant 0 : i32
    %c0_i32_0 = arith.constant 0 : i32
    return %arg0, %arg1, %c0_i32 : i32, i32, i32
  }
  func.func @transform_1(%arg0: i32, %arg1: i32) -> (i32, i32, i32) {
    %c0_i32 = arith.constant 0 : i32
    %c0_i32_0 = arith.constant 0 : i32
    %c0_i32_1 = arith.constant 0 : i32
    return %arg0, %c0_i32, %c0_i32_0 : i32, i32, i32
  }
  func.func @transform_2(%arg0: i32, %arg1: i32) -> (i32, i32, i32) {
    %c0_i32 = arith.constant 0 : i32
    %c0_i32_0 = arith.constant 0 : i32
    %c0_i32_1 = arith.constant 0 : i32
    return %arg0, %c0_i32, %c0_i32_0 : i32, i32, i32
  }
  func.func @transform_3(%arg0: i32, %arg1: i32) -> (i32, i32, i32) {
    %c0_i32 = arith.constant 0 : i32
    %c0_i32_0 = arith.constant 0 : i32
    %c0_i32_1 = arith.constant 0 : i32
    return %arg0, %c0_i32, %c0_i32_0 : i32, i32, i32
  }
  func.func @transform_4(%arg0: i32, %arg1: i32) -> (i32, i32) {
    %c0_i32 = arith.constant 0 : i32
    %c0_i32_0 = arith.constant 0 : i32
    %c0_i32_1 = arith.constant 0 : i32
    return %c0_i32, %c0_i32_0 : i32, i32
  }
  func.func @transform_5(%arg0: i32, %arg1: i32) -> (i32, i32) {
    %c0_i32 = arith.constant 0 : i32
    %c0_i32_0 = arith.constant 0 : i32
    %c0_i32_1 = arith.constant 0 : i32
    return %c0_i32, %c0_i32_0 : i32, i32
  }
  func.func @transform_6(%arg0: i32, %arg1: i32) -> (i32, i32) {
    %c0_i32 = arith.constant 0 : i32
    %c0_i32_0 = arith.constant 0 : i32
    %c0_i32_1 = arith.constant 0 : i32
    return %c0_i32, %c0_i32_0 : i32, i32
  }
  func.func @transform_7(%arg0: i32, %arg1: i32) -> (i32, i32) {
    %c0_i32 = arith.constant 0 : i32
    %c0_i32_0 = arith.constant 0 : i32
    %c0_i32_1 = arith.constant 0 : i32
    return %c0_i32, %c0_i32_0 : i32, i32
  }
  func.func @transform_8(%arg0: i32, %arg1: i32) -> (i32, i32) {
    %c0_i32 = arith.constant 0 : i32
    %c0_i32_0 = arith.constant 0 : i32
    %c0_i32_1 = arith.constant 0 : i32
    return %c0_i32, %c0_i32_0 : i32, i32
  }
  func.func @transform_9(%arg0: i32, %arg1: i32) -> (i32, i32) {
    %c0_i32 = arith.constant 0 : i32
    %c0_i32_0 = arith.constant 0 : i32
    %c0_i32_1 = arith.constant 0 : i32
    return %c0_i32, %c0_i32_0 : i32, i32
  }
  func.func @transform_10(%arg0: i32, %arg1: i32) -> (i32, i32) {
    %c0_i32 = arith.constant 0 : i32
    %c0_i32_0 = arith.constant 0 : i32
    %c0_i32_1 = arith.constant 0 : i32
    return %c0_i32, %c0_i32_0 : i32, i32
  }
  func.func @transform_11(%arg0: i32, %arg1: i32) -> (i32, i32) {
    %c0_i32 = arith.constant 0 : i32
    %c0_i32_0 = arith.constant 0 : i32
    %c0_i32_1 = arith.constant 0 : i32
    return %c0_i32, %c0_i32_0 : i32, i32
  }
  func.func @transform_12(%arg0: i32, %arg1: i32) -> (i32, i32) {
    %c0_i32 = arith.constant 0 : i32
    %c0_i32_0 = arith.constant 0 : i32
    %c0_i32_1 = arith.constant 0 : i32
    return %c0_i32, %c0_i32_0 : i32, i32
  }
  func.func @transform_13(%arg0: i32, %arg1: i32) -> (i32, i32) {
    %c0_i32 = arith.constant 0 : i32
    %c0_i32_0 = arith.constant 0 : i32
    %c0_i32_1 = arith.constant 0 : i32
    return %c0_i32, %c0_i32_0 : i32, i32
  }
  func.func @transform_14(%arg0: i32, %arg1: i32) -> (i32, i32) {
    %c0_i32 = arith.constant 0 : i32
    %c0_i32_0 = arith.constant 0 : i32
    %c0_i32_1 = arith.constant 0 : i32
    return %c0_i32, %c0_i32_0 : i32, i32
  }
  func.func @transform_15(%arg0: i32, %arg1: i32) -> (i32, i32) {
    %c0_i32 = arith.constant 0 : i32
    %c0_i32_0 = arith.constant 0 : i32
    %c0_i32_1 = arith.constant 0 : i32
    return %c0_i32, %c0_i32_0 : i32, i32
  }
  func.func @transform_16(%arg0: i32, %arg1: i32) -> (i32, i32) {
    %c0_i32 = arith.constant 0 : i32
    %c0_i32_0 = arith.constant 0 : i32
    %c0_i32_1 = arith.constant 0 : i32
    return %c0_i32, %c0_i32_0 : i32, i32
  }
  func.func @transform_17(%arg0: i32, %arg1: i32) -> (i32, i32) {
    %c0_i32 = arith.constant 0 : i32
    %c0_i32_0 = arith.constant 0 : i32
    %c0_i32_1 = arith.constant 0 : i32
    return %c0_i32, %c0_i32_0 : i32, i32
  }
  func.func @transform_18(%arg0: i32, %arg1: i32) -> (i32, i32) {
    %c0_i32 = arith.constant 0 : i32
    %c0_i32_0 = arith.constant 0 : i32
    %c0_i32_1 = arith.constant 0 : i32
    return %c0_i32, %c0_i32_0 : i32, i32
  }
  func.func @transform_19(%arg0: i32, %arg1: i32) -> (i32, i32) {
    %c0_i32 = arith.constant 0 : i32
    %c0_i32_0 = arith.constant 0 : i32
    %c0_i32_1 = arith.constant 0 : i32
    return %c0_i32, %c0_i32_0 : i32, i32
  }
  func.func @transform_20(%arg0: i32, %arg1: i32) -> (i32, i32) {
    %c0_i32 = arith.constant 0 : i32
    %c0_i32_0 = arith.constant 0 : i32
    %c0_i32_1 = arith.constant 0 : i32
    return %c0_i32, %c0_i32_0 : i32, i32
  }
  func.func @transform_21(%arg0: i32, %arg1: i32) -> (i32, i32) {
    %c0_i32 = arith.constant 0 : i32
    %c0_i32_0 = arith.constant 0 : i32
    %c0_i32_1 = arith.constant 0 : i32
    return %c0_i32, %c0_i32_0 : i32, i32
  }
  func.func @transform_22(%arg0: i32, %arg1: i32) -> (i32, i32) {
    %c0_i32 = arith.constant 0 : i32
    %c0_i32_0 = arith.constant 0 : i32
    %c0_i32_1 = arith.constant 0 : i32
    return %c0_i32, %c0_i32_0 : i32, i32
  }
  func.func @transform_23(%arg0: i32, %arg1: i32) -> (i32, i32) {
    %c0_i32 = arith.constant 0 : i32
    %c0_i32_0 = arith.constant 0 : i32
    %c0_i32_1 = arith.constant 0 : i32
    return %c0_i32, %c0_i32_0 : i32, i32
  }
  func.func @transform_24(%arg0: i32, %arg1: i32) -> (i32, i32) {
    %c0_i32 = arith.constant 0 : i32
    %c0_i32_0 = arith.constant 0 : i32
    %c0_i32_1 = arith.constant 0 : i32
    return %c0_i32, %c0_i32_0 : i32, i32
  }
  func.func @transform_25(%arg0: i32, %arg1: i32) -> (i32, i32) {
    %c0_i32 = arith.constant 0 : i32
    %c0_i32_0 = arith.constant 0 : i32
    %c0_i32_1 = arith.constant 0 : i32
    return %c0_i32, %c0_i32_0 : i32, i32
  }
  func.func @transform_26(%arg0: i32, %arg1: i32) -> (i32, i32, i32) {
    %c0_i32 = arith.constant 0 : i32
    %c0_i32_0 = arith.constant 0 : i32
    return %arg0, %arg1, %c0_i32 : i32, i32, i32
  }
}

</mosaic_0001>

<llo_original>
// kernel: tpu_custom_call.1
$region0: #{tpu_custom_call.1}
  #allocation0 [shape = 'u32[]', space=smem, size = 0x4, offset = 0x4, fixed_abs, tag = 'smem constant byte address 0x4 - core index']
  #allocation1 [shape = 'u32[72,128]{1,0:T(1,128)}', space=vmem, size = 0x9000, scoped, tag = 'internal scratch']
  %s0 = inlined_call_operand.vmem [shape: f32[2,8,32], index: 0, kind: input, shape index: {}]
  %s1 = inlined_call_operand.vmem [shape: f32[2,8,32], index: 1, kind: input, shape index: {}]
  %s2 = inlined_call_operand.vmem [shape: bf16[2,16,32], index: 2, kind: input, shape index: {}]
  %s3 = inlined_call_operand.vmem [shape: f32[2,1,16], index: 3, kind: input, shape index: {}]
  %s4 = inlined_call_operand.hbm [shape: bf16[32,32], index: 4, kind: input, shape index: {}]
  %s5 = inlined_call_operand.vmem [shape: f32[1,32], index: 5, kind: input, shape index: {}]
  %s6 = inlined_call_operand.hbm [shape: bf16[32,64], index: 6, kind: input, shape index: {}]
  %s7 = inlined_call_operand.vmem [shape: f32[1,64], index: 7, kind: input, shape index: {}]
  %s8 = inlined_call_operand.hbm [shape: bf16[32,32], index: 8, kind: input, shape index: {}]
  %s9 = inlined_call_operand.vmem [shape: f32[1,32], index: 9, kind: input, shape index: {}]
  %s10 = inlined_call_operand.hbm [shape: f32[1,32], index: 10, kind: input, shape index: {}]
  %s11 = inlined_call_operand.hbm [shape: f32[1,32], index: 11, kind: input, shape index: {}]
  %s12 = inlined_call_operand.hbm [shape: bf16[32,32], index: 12, kind: input, shape index: {}]
  %s13 = inlined_call_operand.hbm [shape: f32[1,32], index: 13, kind: input, shape index: {}]
  %s14 = inlined_call_operand.hbm [shape: bf16[32,64], index: 14, kind: input, shape index: {}]
  %s15 = inlined_call_operand.hbm [shape: f32[1,64], index: 15, kind: input, shape index: {}]
  %s16 = inlined_call_operand.hbm [shape: bf16[32,32], index: 16, kind: input, shape index: {}]
  %s17 = inlined_call_operand.hbm [shape: f32[1,32], index: 17, kind: input, shape index: {}]
  %s18 = inlined_call_operand.hbm [shape: f32[1,32], index: 18, kind: input, shape index: {}]
  %s19 = inlined_call_operand.hbm [shape: f32[1,32], index: 19, kind: input, shape index: {}]
  %s20 = inlined_call_operand.hbm [shape: bf16[32,64], index: 20, kind: input, shape index: {}]
  %s21 = inlined_call_operand.hbm [shape: f32[1,64], index: 21, kind: input, shape index: {}]
  %s22 = inlined_call_operand.vmem [shape: bf16[64,32], index: 22, kind: input, shape index: {}]
  %s23 = inlined_call_operand.vmem [shape: f32[1,32], index: 23, kind: input, shape index: {}]
  %s24 = inlined_call_operand.vmem [shape: f32[1,32], index: 24, kind: input, shape index: {}]
  %s25 = inlined_call_operand.vmem [shape: f32[1,32], index: 25, kind: input, shape index: {}]
  %s26 = inlined_call_operand.hbm [shape: f32[2,8,32], index: 26, kind: output, shape index: {}]
  %s27 = sld [smem:[#allocation0]]
  $region197: #{tpu_custom_call.1} parent=0
    _
  %s29 = ssub.s32 1, %s27
  %s30 = scalar_select 0, %s29, %s27
  $region1: #{tpu_custom_call.1} parent=0
    #allocation2 [shape = 'u8[8192]{0}', space=vmem, size = 0x2000, scoped, tag = 'input window, operand 4, single buffered']
    #allocation3 [shape = 's32[2]{0}', space=sflag, size = 0x8, scoped, tag = 'scoped memory for tpu_custom_call.1']
    #allocation4 [shape = 's32[2]{0}', space=sflag, size = 0x8, scoped, tag = 'scoped memory for tpu_custom_call.1']
    #allocation5 [shape = 'u8[8192]{0}', space=vmem, size = 0x2000, scoped, tag = 'input window, operand 6, single buffered']
    #allocation6 [shape = 's32[1]{0}', space=sflag, size = 0x4, scoped, tag = 'scoped memory for tpu_custom_call.1']
    #allocation7 [shape = 'u8[8192]{0}', space=vmem, size = 0x2000, scoped, tag = 'input window, operand 8, single buffered']
    #allocation8 [shape = 'u8[512]{0}', space=vmem, size = 0x400, scoped, tag = 'input window, operand 10, single buffered']
    #allocation9 [shape = 's32[1]{0}', space=sflag, size = 0x4, scoped, tag = 'scoped memory for tpu_custom_call.1']
    #allocation10 [shape = 'u8[512]{0}', space=vmem, size = 0x400, scoped, tag = 'input window, operand 11, single buffered']
    #allocation11 [shape = 'u8[8192]{0}', space=vmem, size = 0x2000, scoped, tag = 'input window, operand 12, single buffered']
    #allocation12 [shape = 's32[1]{0}', space=sflag, size = 0x4, scoped, tag = 'scoped memory for tpu_custom_call.1']
    #allocation13 [shape = 'u8[512]{0}', space=vmem, size = 0x400, scoped, tag = 'input window, operand 13, single buffered']
    #allocation14 [shape = 'u8[8192]{0}', space=vmem, size = 0x2000, scoped, tag = 'input window, operand 14, single buffered']
    #allocation15 [shape = 's32[1]{0}', space=sflag, size = 0x4, scoped, tag = 'scoped memory for tpu_custom_call.1']
    #allocation16 [shape = 'u8[512]{0}', space=vmem, size = 0x400, scoped, tag = 'input window, operand 15, single buffered']
    #allocation17 [shape = 'u8[8192]{0}', space=vmem, size = 0x2000, scoped, tag = 'input window, operand 16, single buffered']
    #allocation18 [shape = 's32[1]{0}', space=sflag, size = 0x4, scoped, tag = 'scoped memory for tpu_custom_call.1']
    #allocation19 [shape = 'u8[512]{0}', space=vmem, size = 0x400, scoped, tag = 'input window, operand 17, single buffered']
    #allocation20 [shape = 'u8[512]{0}', space=vmem, size = 0x400, scoped, tag = 'input window, operand 18, single buffered']
    #allocation21 [shape = 's32[1]{0}', space=sflag, size = 0x4, scoped, tag = 'scoped memory for tpu_custom_call.1']
    #allocation22 [shape = 'u8[512]{0}', space=vmem, size = 0x400, scoped, tag = 'input window, operand 19, single buffered']
    #allocation23 [shape = 'u8[8192]{0}', space=vmem, size = 0x2000, scoped, tag = 'input window, operand 20, single buffered']
    #allocation24 [shape = 's32[1]{0}', space=sflag, size = 0x4, scoped, tag = 'scoped memory for tpu_custom_call.1']
    #allocation25 [shape = 'u8[512]{0}', space=vmem, size = 0x400, scoped, tag = 'input window, operand 21, single buffered']
    #allocation26 [shape = 'u8[8192]{0}', space=vmem, size = 0x2000, scoped, tag = 'output window, operand 0']
    %31 = vsyncpa [#allocation3], 0
    %32 = vsyncpa [#allocation6], 0
    %33 = vsyncpa [#allocation9], 0
    %34 = vsyncpa [#allocation12], 0
    %35 = vsyncpa [#allocation15], 0
    %36 = vsyncpa [#allocation18], 0
    %37 = vsyncpa [#allocation21], 0
    %38 = vsyncpa [#allocation24], 0
    %39 = vsyncpa [#allocation4], 0
    %s40 = scalar_lea.sflag [#allocation4], 1
    %41 = vsyncpa %s40, 0
    loop: start=0, step=1, limit=4
    $region2: #{tpu_custom_call.1} parent=1 // loop_pre_header
      _
    $region3: #{tpu_custom_call.1} parent=1 // loop_header
      %s43 = sphi 0, %s47
      %p44 = scmp.ge.s32.totalorder %s43, 4
      %s50 = sphi 0, %s62
      %s51 = sphi 0, %s58
      %s52 = sphi 0, %s50
      %s53 = sphi 0, %s51
      %s54 = sphi 0, %s52
      %s55 = sphi 0, %s53
      %s67 = sphi 0, %s69
      %s70 = sphi 0, %s67
      %s71 = sphi 0, %s70
      %s87 = sphi 0, %s71
      %s93 = sphi 0, %s95
      %s96 = sphi 0, %s93
      %s97 = sphi 0, %s96
      %s113 = sphi 0, %s97
      %s119 = sphi 0, %s121
      %s122 = sphi 0, %s119
      %s123 = sphi 0, %s122
      %s139 = sphi 0, %s123
      %s145 = sphi 0, %s147
      %s148 = sphi 0, %s145
      %s149 = sphi 0, %s148
      %s165 = sphi 0, %s149
      %s169 = sphi 0, %s169
      %s171 = sphi 0, %s169
      %s172 = sphi 0, %s171
      %s186 = sphi 0, %s172
      %s190 = sphi 0, %s190
      %s192 = sphi 0, %s190
      %s193 = sphi 0, %s192
      %s207 = sphi 0, %s193
      %s211 = sphi 0, %s211
      %s213 = sphi 0, %s211
      %s214 = sphi 0, %s213
      %s228 = sphi 0, %s214
      %s232 = sphi 0, %s232
      %s234 = sphi 0, %s232
      %s235 = sphi 0, %s234
      %s249 = sphi 0, %s235
      %s253 = sphi 0, %s253
      %s255 = sphi 0, %s253
      %s256 = sphi 0, %s255
      %s270 = sphi 0, %s256
      %s274 = sphi 0, %s274
      %s276 = sphi 0, %s274
      %s277 = sphi 0, %s276
      %s291 = sphi 0, %s277
      %s295 = sphi 0, %s295
      %s297 = sphi 0, %s295
      %s298 = sphi 0, %s297
      %s312 = sphi 0, %s298
      %s316 = sphi 0, %s316
      %s318 = sphi 0, %s316
      %s319 = sphi 0, %s318
      %s333 = sphi 0, %s319
      %s337 = sphi 0, %s337
      %s339 = sphi 0, %s337
      %s340 = sphi 0, %s339
      %s354 = sphi 0, %s340
      %s358 = sphi 0, %s358
      %s360 = sphi 0, %s358
      %s361 = sphi 0, %s360
      %s375 = sphi 0, %s361
      %s379 = sphi 0, %s379
      %s381 = sphi 0, %s379
      %s382 = sphi 0, %s381
      %s396 = sphi 0, %s382
      %s400 = sphi 0, %s400
      %s402 = sphi 0, %s400
      %s403 = sphi 0, %s402
      %s417 = sphi 0, %s403
      %s421 = sphi 0, %s421
      %s423 = sphi 0, %s421
      %s424 = sphi 0, %s423
      %s438 = sphi 0, %s424
      %s442 = sphi 0, %s442
      %s444 = sphi 0, %s442
      %s445 = sphi 0, %s444
      %s459 = sphi 0, %s445
      %s463 = sphi 0, %s463
      %s465 = sphi 0, %s463
      %s466 = sphi 0, %s465
      %s480 = sphi 0, %s466
      %s484 = sphi 0, %s484
      %s486 = sphi 0, %s484
      %s487 = sphi 0, %s486
      %s501 = sphi 0, %s487
      %s505 = sphi 0, %s505
      %s507 = sphi 0, %s505
      %s508 = sphi 0, %s507
      %s522 = sphi 0, %s508
      %s526 = sphi 0, %s526
      %s528 = sphi 0, %s526
      %s529 = sphi 0, %s528
      %s543 = sphi 0, %s529
      %s547 = sphi 0, %s547
      %s549 = sphi 0, %s547
      %s550 = sphi 0, %s549
      %s564 = sphi 0, %s550
      %s568 = sphi 0, %s568
      %s570 = sphi 0, %s568
      %s571 = sphi 0, %s570
      %s585 = sphi 0, %s571
      %s589 = sphi 0, %s589
      %s591 = sphi 0, %s589
      %s592 = sphi 0, %s591
      %s606 = sphi 0, %s592
      %s610 = sphi 0, %s610
      %s612 = sphi 0, %s610
      %s613 = sphi 0, %s612
      %s627 = sphi 0, %s613
      %s635 = sphi 0, %s637
      %s638 = sphi 0, %s635
      %s639 = sphi 0, %s638
      %s655 = sphi 0, %s639
    $region4: #{tpu_custom_call.1} parent=1 // loop_header_branch
      %46 = sbr.rel (%p44) target = $region8
    $region5: #{tpu_custom_call.1} parent=1 // loop_body
      %s48 = ssub.s32 %s43, 1
      %s49 = ssub.s32 %s43, 2
      %s56 = sadd.s32 1, %s51
      %p57 = scmp.ge.s32.totalorder %s56, 1
      %s58 = scalar_select %p57, 0, %s56
      %s59 = sadd.s32 1, %s50
      %s60 = scalar_select %p57, %s59, %s50
      %p61 = scmp.ge.s32.totalorder %s60, 2
      %s62 = scalar_select %p61, 0, %s60
      %s63 = ssub.s32 %s50, %s62
      %s64 = ssub.s32 %s51, %s58
      %s65 = sor.u32 %s63, %s64
      %p66 = scmp.eq.s32.totalorder %s65, 0
      %s68 = sadd.s32 %s67, 1
      %s69 = scalar_select %p66, %s67, %s68
      %p72 = pneg %p66
      %p73 = scmp.eq.s32.totalorder %s43, 1
      %p74 = por %p72, %p73
      %p75 = scmp.ne.s32.totalorder %s67, %s70
      %p76 = scmp.eq.s32.totalorder %s43, 0
      %p77 = por %p75, %p76
      %p78 = scmp.ne.s32.totalorder %s67, %s70
      %p79 = scmp.eq.s32.totalorder %s48, 1
      %p80 = por %p78, %p79
      %p81 = scmp.ne.s32.totalorder %s70, %s71
      %p82 = scmp.eq.s32.totalorder %s48, 0
      %p83 = por %p81, %p82
      %p84 = scmp.ne.s32.totalorder %s70, %s71
      %p85 = scmp.eq.s32.totalorder %s49, 1
      %p86 = por %p84, %p85
      %p88 = scmp.ne.s32.totalorder %s71, %s87
      %p89 = scmp.eq.s32.totalorder %s49, 0
      %p90 = por %p88, %p89
      %s91 = ssub.s32 %s50, %s62
      %p92 = scmp.eq.s32.totalorder %s91, 0
      %s94 = sadd.s32 %s93, 1
      %s95 = scalar_select %p92, %s93, %s94
      %p98 = pneg %p92
      %p99 = scmp.eq.s32.totalorder %s43, 1
      %p100 = por %p98, %p99
      %p101 = scmp.ne.s32.totalorder %s93, %s96
      %p102 = scmp.eq.s32.totalorder %s43, 0
      %p103 = por %p101, %p102
      %p104 = scmp.ne.s32.totalorder %s93, %s96
      %p105 = scmp.eq.s32.totalorder %s48, 1
      %p106 = por %p104, %p105
      %p107 = scmp.ne.s32.totalorder %s96, %s97
      %p108 = scmp.eq.s32.totalorder %s48, 0
      %p109 = por %p107, %p108
      %p110 = scmp.ne.s32.totalorder %s96, %s97
      %p111 = scmp.eq.s32.totalorder %s49, 1
      %p112 = por %p110, %p111
      %p114 = scmp.ne.s32.totalorder %s97, %s113
      %p115 = scmp.eq.s32.totalorder %s49, 0
      %p116 = por %p114, %p115
      %s117 = ssub.s32 %s50, %s62
      %p118 = scmp.eq.s32.totalorder %s117, 0
      %s120 = sadd.s32 %s119, 1
      %s121 = scalar_select %p118, %s119, %s120
      %p124 = pneg %p118
      %p125 = scmp.eq.s32.totalorder %s43, 1
      %p126 = por %p124, %p125
      %p127 = scmp.ne.s32.totalorder %s119, %s122
      %p128 = scmp.eq.s32.totalorder %s43, 0
      %p129 = por %p127, %p128
      %p130 = scmp.ne.s32.totalorder %s119, %s122
      %p131 = scmp.eq.s32.totalorder %s48, 1
      %p132 = por %p130, %p131
      %p133 = scmp.ne.s32.totalorder %s122, %s123
      %p134 = scmp.eq.s32.totalorder %s48, 0
      %p135 = por %p133, %p134
      %p136 = scmp.ne.s32.totalorder %s122, %s123
      %p137 = scmp.eq.s32.totalorder %s49, 1
      %p138 = por %p136, %p137
      %p140 = scmp.ne.s32.totalorder %s123, %s139
      %p141 = scmp.eq.s32.totalorder %s49, 0
      %p142 = por %p140, %p141
      %s143 = ssub.s32 %s50, %s62
      %p144 = scmp.eq.s32.totalorder %s143, 0
      %s146 = sadd.s32 %s145, 1
      %s147 = scalar_select %p144, %s145, %s146
      %p150 = pneg %p144
      %p151 = scmp.eq.s32.totalorder %s43, 1
      %p152 = por %p150, %p151
      %p153 = scmp.ne.s32.totalorder %s145, %s148
      %p154 = scmp.eq.s32.totalorder %s43, 0
      %p155 = por %p153, %p154
      %p156 = scmp.ne.s32.totalorder %s145, %s148
      %p157 = scmp.eq.s32.totalorder %s48, 1
      %p158 = por %p156, %p157
      %p159 = scmp.ne.s32.totalorder %s148, %s149
      %p160 = scmp.eq.s32.totalorder %s48, 0
      %p161 = por %p159, %p160
      %p162 = scmp.ne.s32.totalorder %s148, %s149
      %p163 = scmp.eq.s32.totalorder %s49, 1
      %p164 = por %p162, %p163
      %p166 = scmp.ne.s32.totalorder %s149, %s165
      %p167 = scmp.eq.s32.totalorder %s49, 0
      %p168 = por %p166, %p167
      %s170 = sadd.s32 %s169, 1
      %p173 = scmp.eq.s32.totalorder %s43, 1
      %p174 = scmp.ne.s32.totalorder %s169, %s171
      %p175 = scmp.eq.s32.totalorder %s43, 0
      %p176 = por %p174, %p175
      %p177 = scmp.ne.s32.totalorder %s169, %s171
      %p178 = scmp.eq.s32.totalorder %s48, 1
      %p179 = por %p177, %p178
      %p180 = scmp.ne.s32.totalorder %s171, %s172
      %p181 = scmp.eq.s32.totalorder %s48, 0
      %p182 = por %p180, %p181
      %p183 = scmp.ne.s32.totalorder %s171, %s172
      %p184 = scmp.eq.s32.totalorder %s49, 1
      %p185 = por %p183, %p184
      %p187 = scmp.ne.s32.totalorder %s172, %s186
      %p188 = scmp.eq.s32.totalorder %s49, 0
      %p189 = por %p187, %p188
      %s191 = sadd.s32 %s190, 1
      %p194 = scmp.eq.s32.totalorder %s43, 1
      %p195 = scmp.ne.s32.totalorder %s190, %s192
      %p196 = scmp.eq.s32.totalorder %s43, 0
      %p197 = por %p195, %p196
      %p198 = scmp.ne.s32.totalorder %s190, %s192
      %p199 = scmp.eq.s32.totalorder %s48, 1
      %p200 = por %p198, %p199
      %p201 = scmp.ne.s32.totalorder %s192, %s193
      %p202 = scmp.eq.s32.totalorder %s48, 0
      %p203 = por %p201, %p202
      %p204 = scmp.ne.s32.totalorder %s192, %s193
      %p205 = scmp.eq.s32.totalorder %s49, 1
      %p206 = por %p204, %p205
      %p208 = scmp.ne.s32.totalorder %s193, %s207
      %p209 = scmp.eq.s32.totalorder %s49, 0
      %p210 = por %p208, %p209
      %s212 = sadd.s32 %s211, 1
      %p215 = scmp.eq.s32.totalorder %s43, 1
      %p216 = scmp.ne.s32.totalorder %s211, %s213
      %p217 = scmp.eq.s32.totalorder %s43, 0
      %p218 = por %p216, %p217
      %p219 = scmp.ne.s32.totalorder %s211, %s213
      %p220 = scmp.eq.s32.totalorder %s48, 1
      %p221 = por %p219, %p220
      %p222 = scmp.ne.s32.totalorder %s213, %s214
      %p223 = scmp.eq.s32.totalorder %s48, 0
      %p224 = por %p222, %p223
      %p225 = scmp.ne.s32.totalorder %s213, %s214
      %p226 = scmp.eq.s32.totalorder %s49, 1
      %p227 = por %p225, %p226
      %p229 = scmp.ne.s32.totalorder %s214, %s228
      %p230 = scmp.eq.s32.totalorder %s49, 0
      %p231 = por %p229, %p230
      %s233 = sadd.s32 %s232, 1
      %p236 = scmp.eq.s32.totalorder %s43, 1
      %p237 = scmp.ne.s32.totalorder %s232, %s234
      %p238 = scmp.eq.s32.totalorder %s43, 0
      %p239 = por %p237, %p238
      %p240 = scmp.ne.s32.totalorder %s232, %s234
      %p241 = scmp.eq.s32.totalorder %s48, 1
      %p242 = por %p240, %p241
      %p243 = scmp.ne.s32.totalorder %s234, %s235
      %p244 = scmp.eq.s32.totalorder %s48, 0
      %p245 = por %p243, %p244
      %p246 = scmp.ne.s32.totalorder %s234, %s235
      %p247 = scmp.eq.s32.totalorder %s49, 1
      %p248 = por %p246, %p247
      %p250 = scmp.ne.s32.totalorder %s235, %s249
      %p251 = scmp.eq.s32.totalorder %s49, 0
      %p252 = por %p250, %p251
      %s254 = sadd.s32 %s253, 1
      %p257 = scmp.eq.s32.totalorder %s43, 1
      %p258 = scmp.ne.s32.totalorder %s253, %s255
      %p259 = scmp.eq.s32.totalorder %s43, 0
      %p260 = por %p258, %p259
      %p261 = scmp.ne.s32.totalorder %s253, %s255
      %p262 = scmp.eq.s32.totalorder %s48, 1
      %p263 = por %p261, %p262
      %p264 = scmp.ne.s32.totalorder %s255, %s256
      %p265 = scmp.eq.s32.totalorder %s48, 0
      %p266 = por %p264, %p265
      %p267 = scmp.ne.s32.totalorder %s255, %s256
      %p268 = scmp.eq.s32.totalorder %s49, 1
      %p269 = por %p267, %p268
      %p271 = scmp.ne.s32.totalorder %s256, %s270
      %p272 = scmp.eq.s32.totalorder %s49, 0
      %p273 = por %p271, %p272
      %s275 = sadd.s32 %s274, 1
      %p278 = scmp.eq.s32.totalorder %s43, 1
      %p279 = scmp.ne.s32.totalorder %s274, %s276
      %p280 = scmp.eq.s32.totalorder %s43, 0
      %p281 = por %p279, %p280
      %p282 = scmp.ne.s32.totalorder %s274, %s276
      %p283 = scmp.eq.s32.totalorder %s48, 1
      %p284 = por %p282, %p283
      %p285 = scmp.ne.s32.totalorder %s276, %s277
      %p286 = scmp.eq.s32.totalorder %s48, 0
      %p287 = por %p285, %p286
      %p288 = scmp.ne.s32.totalorder %s276, %s277
      %p289 = scmp.eq.s32.totalorder %s49, 1
      %p290 = por %p288, %p289
      %p292 = scmp.ne.s32.totalorder %s277, %s291
      %p293 = scmp.eq.s32.totalorder %s49, 0
      %p294 = por %p292, %p293
      %s296 = sadd.s32 %s295, 1
      %p299 = scmp.eq.s32.totalorder %s43, 1
      %p300 = scmp.ne.s32.totalorder %s295, %s297
      %p301 = scmp.eq.s32.totalorder %s43, 0
      %p302 = por %p300, %p301
      %p303 = scmp.ne.s32.totalorder %s295, %s297
      %p304 = scmp.eq.s32.totalorder %s48, 1
      %p305 = por %p303, %p304
      %p306 = scmp.ne.s32.totalorder %s297, %s298
      %p307 = scmp.eq.s32.totalorder %s48, 0
      %p308 = por %p306, %p307
      %p309 = scmp.ne.s32.totalorder %s297, %s298
      %p310 = scmp.eq.s32.totalorder %s49, 1
      %p311 = por %p309, %p310
      %p313 = scmp.ne.s32.totalorder %s298, %s312
      %p314 = scmp.eq.s32.totalorder %s49, 0
      %p315 = por %p313, %p314
      %s317 = sadd.s32 %s316, 1
      %p320 = scmp.eq.s32.totalorder %s43, 1
      %p321 = scmp.ne.s32.totalorder %s316, %s318
      %p322 = scmp.eq.s32.totalorder %s43, 0
      %p323 = por %p321, %p322
      %p324 = scmp.ne.s32.totalorder %s316, %s318
      %p325 = scmp.eq.s32.totalorder %s48, 1
      %p326 = por %p324, %p325
      %p327 = scmp.ne.s32.totalorder %s318, %s319
      %p328 = scmp.eq.s32.totalorder %s48, 0
      %p329 = por %p327, %p328
      %p330 = scmp.ne.s32.totalorder %s318, %s319
      %p331 = scmp.eq.s32.totalorder %s49, 1
      %p332 = por %p330, %p331
      %p334 = scmp.ne.s32.totalorder %s319, %s333
      %p335 = scmp.eq.s32.totalorder %s49, 0
      %p336 = por %p334, %p335
      %s338 = sadd.s32 %s337, 1
      %p341 = scmp.eq.s32.totalorder %s43, 1
      %p342 = scmp.ne.s32.totalorder %s337, %s339
      %p343 = scmp.eq.s32.totalorder %s43, 0
      %p344 = por %p342, %p343
      %p345 = scmp.ne.s32.totalorder %s337, %s339
      %p346 = scmp.eq.s32.totalorder %s48, 1
      %p347 = por %p345, %p346
      %p348 = scmp.ne.s32.totalorder %s339, %s340
      %p349 = scmp.eq.s32.totalorder %s48, 0
      %p350 = por %p348, %p349
      %p351 = scmp.ne.s32.totalorder %s339, %s340
      %p352 = scmp.eq.s32.totalorder %s49, 1
      %p353 = por %p351, %p352
      %p355 = scmp.ne.s32.totalorder %s340, %s354
      %p356 = scmp.eq.s32.totalorder %s49, 0
      %p357 = por %p355, %p356
      %s359 = sadd.s32 %s358, 1
      %p362 = scmp.eq.s32.totalorder %s43, 1
      %p363 = scmp.ne.s32.totalorder %s358, %s360
      %p364 = scmp.eq.s32.totalorder %s43, 0
      %p365 = por %p363, %p364
      %p366 = scmp.ne.s32.totalorder %s358, %s360
      %p367 = scmp.eq.s32.totalorder %s48, 1
      %p368 = por %p366, %p367
      %p369 = scmp.ne.s32.totalorder %s360, %s361
      %p370 = scmp.eq.s32.totalorder %s48, 0
      %p371 = por %p369, %p370
      %p372 = scmp.ne.s32.totalorder %s360, %s361
      %p373 = scmp.eq.s32.totalorder %s49, 1
      %p374 = por %p372, %p373
      %p376 = scmp.ne.s32.totalorder %s361, %s375
      %p377 = scmp.eq.s32.totalorder %s49, 0
      %p378 = por %p376, %p377
      %s380 = sadd.s32 %s379, 1
      %p383 = scmp.eq.s32.totalorder %s43, 1
      %p384 = scmp.ne.s32.totalorder %s379, %s381
      %p385 = scmp.eq.s32.totalorder %s43, 0
      %p386 = por %p384, %p385
      %p387 = scmp.ne.s32.totalorder %s379, %s381
      %p388 = scmp.eq.s32.totalorder %s48, 1
      %p389 = por %p387, %p388
      %p390 = scmp.ne.s32.totalorder %s381, %s382
      %p391 = scmp.eq.s32.totalorder %s48, 0
      %p392 = por %p390, %p391
      %p393 = scmp.ne.s32.totalorder %s381, %s382
      %p394 = scmp.eq.s32.totalorder %s49, 1
      %p395 = por %p393, %p394
      %p397 = scmp.ne.s32.totalorder %s382, %s396
      %p398 = scmp.eq.s32.totalorder %s49, 0
      %p399 = por %p397, %p398
      %s401 = sadd.s32 %s400, 1
      %p404 = scmp.eq.s32.totalorder %s43, 1
      %p405 = scmp.ne.s32.totalorder %s400, %s402
      %p406 = scmp.eq.s32.totalorder %s43, 0
      %p407 = por %p405, %p406
      %p408 = scmp.ne.s32.totalorder %s400, %s402
      %p409 = scmp.eq.s32.totalorder %s48, 1
      %p410 = por %p408, %p409
      %p411 = scmp.ne.s32.totalorder %s402, %s403
      %p412 = scmp.eq.s32.totalorder %s48, 0
      %p413 = por %p411, %p412
      %p414 = scmp.ne.s32.totalorder %s402, %s403
      %p415 = scmp.eq.s32.totalorder %s49, 1
      %p416 = por %p414, %p415
      %p418 = scmp.ne.s32.totalorder %s403, %s417
      %p419 = scmp.eq.s32.totalorder %s49, 0
      %p420 = por %p418, %p419
      %s422 = sadd.s32 %s421, 1
      %p425 = scmp.eq.s32.totalorder %s43, 1
      %p426 = scmp.ne.s32.totalorder %s421, %s423
      %p427 = scmp.eq.s32.totalorder %s43, 0
      %p428 = por %p426, %p427
      %p429 = scmp.ne.s32.totalorder %s421, %s423
      %p430 = scmp.eq.s32.totalorder %s48, 1
      %p431 = por %p429, %p430
      %p432 = scmp.ne.s32.totalorder %s423, %s424
      %p433 = scmp.eq.s32.totalorder %s48, 0
      %p434 = por %p432, %p433
      %p435 = scmp.ne.s32.totalorder %s423, %s424
      %p436 = scmp.eq.s32.totalorder %s49, 1
      %p437 = por %p435, %p436
      %p439 = scmp.ne.s32.totalorder %s424, %s438
      %p440 = scmp.eq.s32.totalorder %s49, 0
      %p441 = por %p439, %p440
      %s443 = sadd.s32 %s442, 1
      %p446 = scmp.eq.s32.totalorder %s43, 1
      %p447 = scmp.ne.s32.totalorder %s442, %s444
      %p448 = scmp.eq.s32.totalorder %s43, 0
      %p449 = por %p447, %p448
      %p450 = scmp.ne.s32.totalorder %s442, %s444
      %p451 = scmp.eq.s32.totalorder %s48, 1
      %p452 = por %p450, %p451
      %p453 = scmp.ne.s32.totalorder %s444, %s445
      %p454 = scmp.eq.s32.totalorder %s48, 0
      %p455 = por %p453, %p454
      %p456 = scmp.ne.s32.totalorder %s444, %s445
      %p457 = scmp.eq.s32.totalorder %s49, 1
      %p458 = por %p456, %p457
      %p460 = scmp.ne.s32.totalorder %s445, %s459
      %p461 = scmp.eq.s32.totalorder %s49, 0
      %p462 = por %p460, %p461
      %s464 = sadd.s32 %s463, 1
      %p467 = scmp.eq.s32.totalorder %s43, 1
      %p468 = scmp.ne.s32.totalorder %s463, %s465
      %p469 = scmp.eq.s32.totalorder %s43, 0
      %p470 = por %p468, %p469
      %p471 = scmp.ne.s32.totalorder %s463, %s465
      %p472 = scmp.eq.s32.totalorder %s48, 1
      %p473 = por %p471, %p472
      %p474 = scmp.ne.s32.totalorder %s465, %s466
      %p475 = scmp.eq.s32.totalorder %s48, 0
      %p476 = por %p474, %p475
      %p477 = scmp.ne.s32.totalorder %s465, %s466
      %p478 = scmp.eq.s32.totalorder %s49, 1
      %p479 = por %p477, %p478
      %p481 = scmp.ne.s32.totalorder %s466, %s480
      %p482 = scmp.eq.s32.totalorder %s49, 0
      %p483 = por %p481, %p482
      %s485 = sadd.s32 %s484, 1
      %p488 = scmp.eq.s32.totalorder %s43, 1
      %p489 = scmp.ne.s32.totalorder %s484, %s486
      %p490 = scmp.eq.s32.totalorder %s43, 0
      %p491 = por %p489, %p490
      %p492 = scmp.ne.s32.totalorder %s484, %s486
      %p493 = scmp.eq.s32.totalorder %s48, 1
      %p494 = por %p492, %p493
      %p495 = scmp.ne.s32.totalorder %s486, %s487
      %p496 = scmp.eq.s32.totalorder %s48, 0
      %p497 = por %p495, %p496
      %p498 = scmp.ne.s32.totalorder %s486, %s487
      %p499 = scmp.eq.s32.totalorder %s49, 1
      %p500 = por %p498, %p499
      %p502 = scmp.ne.s32.totalorder %s487, %s501
      %p503 = scmp.eq.s32.totalorder %s49, 0
      %p504 = por %p502, %p503
      %s506 = sadd.s32 %s505, 1
      %p509 = scmp.eq.s32.totalorder %s43, 1
      %p510 = scmp.ne.s32.totalorder %s505, %s507
      %p511 = scmp.eq.s32.totalorder %s43, 0
      %p512 = por %p510, %p511
      %p513 = scmp.ne.s32.totalorder %s505, %s507
      %p514 = scmp.eq.s32.totalorder %s48, 1
      %p515 = por %p513, %p514
      %p516 = scmp.ne.s32.totalorder %s507, %s508
      %p517 = scmp.eq.s32.totalorder %s48, 0
      %p518 = por %p516, %p517
      %p519 = scmp.ne.s32.totalorder %s507, %s508
      %p520 = scmp.eq.s32.totalorder %s49, 1
      %p521 = por %p519, %p520
      %p523 = scmp.ne.s32.totalorder %s508, %s522
      %p524 = scmp.eq.s32.totalorder %s49, 0
      %p525 = por %p523, %p524
      %s527 = sadd.s32 %s526, 1
      %p530 = scmp.eq.s32.totalorder %s43, 1
      %p531 = scmp.ne.s32.totalorder %s526, %s528
      %p532 = scmp.eq.s32.totalorder %s43, 0
      %p533 = por %p531, %p532
      %p534 = scmp.ne.s32.totalorder %s526, %s528
      %p535 = scmp.eq.s32.totalorder %s48, 1
      %p536 = por %p534, %p535
      %p537 = scmp.ne.s32.totalorder %s528, %s529
      %p538 = scmp.eq.s32.totalorder %s48, 0
      %p539 = por %p537, %p538
      %p540 = scmp.ne.s32.totalorder %s528, %s529
      %p541 = scmp.eq.s32.totalorder %s49, 1
      %p542 = por %p540, %p541
      %p544 = scmp.ne.s32.totalorder %s529, %s543
      %p545 = scmp.eq.s32.totalorder %s49, 0
      %p546 = por %p544, %p545
      %s548 = sadd.s32 %s547, 1
      %p551 = scmp.eq.s32.totalorder %s43, 1
      %p552 = scmp.ne.s32.totalorder %s547, %s549
      %p553 = scmp.eq.s32.totalorder %s43, 0
      %p554 = por %p552, %p553
      %p555 = scmp.ne.s32.totalorder %s547, %s549
      %p556 = scmp.eq.s32.totalorder %s48, 1
      %p557 = por %p555, %p556
      %p558 = scmp.ne.s32.totalorder %s549, %s550
      %p559 = scmp.eq.s32.totalorder %s48, 0
      %p560 = por %p558, %p559
      %p561 = scmp.ne.s32.totalorder %s549, %s550
      %p562 = scmp.eq.s32.totalorder %s49, 1
      %p563 = por %p561, %p562
      %p565 = scmp.ne.s32.totalorder %s550, %s564
      %p566 = scmp.eq.s32.totalorder %s49, 0
      %p567 = por %p565, %p566
      %s569 = sadd.s32 %s568, 1
      %p572 = scmp.eq.s32.totalorder %s43, 1
      %p573 = scmp.ne.s32.totalorder %s568, %s570
      %p574 = scmp.eq.s32.totalorder %s43, 0
      %p575 = por %p573, %p574
      %p576 = scmp.ne.s32.totalorder %s568, %s570
      %p577 = scmp.eq.s32.totalorder %s48, 1
      %p578 = por %p576, %p577
      %p579 = scmp.ne.s32.totalorder %s570, %s571
      %p580 = scmp.eq.s32.totalorder %s48, 0
      %p581 = por %p579, %p580
      %p582 = scmp.ne.s32.totalorder %s570, %s571
      %p583 = scmp.eq.s32.totalorder %s49, 1
      %p584 = por %p582, %p583
      %p586 = scmp.ne.s32.totalorder %s571, %s585
      %p587 = scmp.eq.s32.totalorder %s49, 0
      %p588 = por %p586, %p587
      %s590 = sadd.s32 %s589, 1
      %p593 = scmp.eq.s32.totalorder %s43, 1
      %p594 = scmp.ne.s32.totalorder %s589, %s591
      %p595 = scmp.eq.s32.totalorder %s43, 0
      %p596 = por %p594, %p595
      %p597 = scmp.ne.s32.totalorder %s589, %s591
      %p598 = scmp.eq.s32.totalorder %s48, 1
      %p599 = por %p597, %p598
      %p600 = scmp.ne.s32.totalorder %s591, %s592
      %p601 = scmp.eq.s32.totalorder %s48, 0
      %p602 = por %p600, %p601
      %p603 = scmp.ne.s32.totalorder %s591, %s592
      %p604 = scmp.eq.s32.totalorder %s49, 1
      %p605 = por %p603, %p604
      %p607 = scmp.ne.s32.totalorder %s592, %s606
      %p608 = scmp.eq.s32.totalorder %s49, 0
      %p609 = por %p607, %p608
      %s611 = sadd.s32 %s610, 1
      %p614 = scmp.eq.s32.totalorder %s43, 1
      %p615 = scmp.ne.s32.totalorder %s610, %s612
      %p616 = scmp.eq.s32.totalorder %s43, 0
      %p617 = por %p615, %p616
      %p618 = scmp.ne.s32.totalorder %s610, %s612
      %p619 = scmp.eq.s32.totalorder %s48, 1
      %p620 = por %p618, %p619
      %p621 = scmp.ne.s32.totalorder %s612, %s613
      %p622 = scmp.eq.s32.totalorder %s48, 0
      %p623 = por %p621, %p622
      %p624 = scmp.ne.s32.totalorder %s612, %s613
      %p625 = scmp.eq.s32.totalorder %s49, 1
      %p626 = por %p624, %p625
      %p628 = scmp.ne.s32.totalorder %s613, %s627
      %p629 = scmp.eq.s32.totalorder %s49, 0
      %p630 = por %p628, %p629
      %s631 = ssub.s32 %s50, %s62
      %s632 = ssub.s32 %s51, %s58
      %s633 = sor.u32 %s631, %s632
      %p634 = scmp.eq.s32.totalorder %s633, 0
      %s636 = sadd.s32 %s635, 1
      %s637 = scalar_select %p634, %s635, %s636
      %p640 = pneg %p634
      %p641 = scmp.eq.s32.totalorder %s43, 1
      %p642 = por %p640, %p641
      %p643 = scmp.ne.s32.totalorder %s635, %s638
      %p644 = scmp.eq.s32.totalorder %s43, 0
      %p645 = por %p643, %p644
      %p646 = scmp.ne.s32.totalorder %s635, %s638
      %p647 = scmp.eq.s32.totalorder %s48, 1
      %p648 = por %p646, %p647
      %p649 = scmp.ne.s32.totalorder %s638, %s639
      %p650 = scmp.eq.s32.totalorder %s48, 0
      %p651 = por %p649, %p650
      %p652 = scmp.ne.s32.totalorder %s638, %s639
      %p653 = scmp.eq.s32.totalorder %s49, 1
      %p654 = por %p652, %p653
      %p656 = scmp.ne.s32.totalorder %s639, %s655
      %p657 = scmp.eq.s32.totalorder %s49, 0
      %p658 = por %p656, %p657
      %p659 = scmp.le.s32.totalorder 1, %s43
      %p660 = scmp.lt.s32.totalorder %s43, 3
      %p661 = pnand %p659, %p660
      %p662 = pneg %p661
      // Predicated region
      $region9: #{tpu_custom_call.1} parent=5 // pred_check
        _
      $region10: #{tpu_custom_call.1} parent=5 // pred_check_branch
        %664 = sbr.rel (%p661) target = $region12
      $region11: #{tpu_custom_call.1} parent=5 // pred_region
        %s665 = ssub.s32 %s43, 1
        // Predicated region
        $region13: #{tpu_custom_call.1} parent=11 // pred_check
          %p666 = pneg %p182
        $region14: #{tpu_custom_call.1} parent=11 // pred_check_branch
          %668 = sbr.rel (%p666) target = $region16
        $region15: #{tpu_custom_call.1} parent=11 // pred_region
          %670 = vsyncadd [#allocation3], 0
          %s671 = sshll.u32 %s4, 4
          %s672 = int_to_ptr.hbm [resolvable:$true] %s671
          %s673 = sshll.u32 [#allocation2], 4
          %s674 = int_to_ptr.vmem [resolvable:$true] %s673
          %679 = dma.hbm_to_vmem [thread:$0]  %s672, 256, %s674, [#allocation3], 64, 64, 4
        $region16: #{tpu_custom_call.1} parent=11 // pred_fallthru
          _
        // Predicated region
        $region17: #{tpu_custom_call.1} parent=11 // pred_check
          %p680 = pneg %p203
        $region18: #{tpu_custom_call.1} parent=11 // pred_check_branch
          %682 = sbr.rel (%p680) target = $region20
        $region19: #{tpu_custom_call.1} parent=11 // pred_region
          _
        $region20: #{tpu_custom_call.1} parent=11 // pred_fallthru
          _
        // Predicated region
        $region21: #{tpu_custom_call.1} parent=11 // pred_check
          %p683 = pneg %p224
        $region22: #{tpu_custom_call.1} parent=11 // pred_check_branch
          %685 = sbr.rel (%p683) target = $region24
        $region23: #{tpu_custom_call.1} parent=11 // pred_region
          %687 = vsyncadd [#allocation6], 0
          %s688 = sshll.u32 %s6, 4
          %s689 = int_to_ptr.hbm [resolvable:$true] %s688
          %s690 = sshll.u32 [#allocation5], 4
          %s691 = int_to_ptr.vmem [resolvable:$true] %s690
          %696 = dma.hbm_to_vmem [thread:$0]  %s689, 256, %s691, [#allocation6], 64, 64, 4
        $region24: #{tpu_custom_call.1} parent=11 // pred_fallthru
          _
        // Predicated region
        $region25: #{tpu_custom_call.1} parent=11 // pred_check
          %p697 = pneg %p245
        $region26: #{tpu_custom_call.1} parent=11 // pred_check_branch
          %699 = sbr.rel (%p697) target = $region28
        $region27: #{tpu_custom_call.1} parent=11 // pred_region
          _
        $region28: #{tpu_custom_call.1} parent=11 // pred_fallthru
          _
        // Predicated region
        $region29: #{tpu_custom_call.1} parent=11 // pred_check
          %p700 = pneg %p266
        $region30: #{tpu_custom_call.1} parent=11 // pred_check_branch
          %702 = sbr.rel (%p700) target = $region32
        $region31: #{tpu_custom_call.1} parent=11 // pred_region
          %704 = vsyncadd [#allocation6], 0
          %s705 = sshll.u32 %s8, 4
          %s706 = int_to_ptr.hbm [resolvable:$true] %s705
          %s707 = sshll.u32 [#allocation7], 4
          %s708 = int_to_ptr.vmem [resolvable:$true] %s707
          %713 = dma.hbm_to_vmem [thread:$0]  %s706, 256, %s708, [#allocation6], 64, 64, 4
        $region32: #{tpu_custom_call.1} parent=11 // pred_fallthru
          _
        // Predicated region
        $region33: #{tpu_custom_call.1} parent=11 // pred_check
          %p714 = pneg %p287
        $region34: #{tpu_custom_call.1} parent=11 // pred_check_branch
          %716 = sbr.rel (%p714) target = $region36
        $region35: #{tpu_custom_call.1} parent=11 // pred_region
          _
        $region36: #{tpu_custom_call.1} parent=11 // pred_fallthru
          _
        // Predicated region
        $region37: #{tpu_custom_call.1} parent=11 // pred_check
          %p717 = pneg %p308
        $region38: #{tpu_custom_call.1} parent=11 // pred_check_branch
          %719 = sbr.rel (%p717) target = $region40
        $region39: #{tpu_custom_call.1} parent=11 // pred_region
          %721 = vsyncadd [#allocation9], 0
          %s723 = sshll.u32 %s10, 4
          %s724 = int_to_ptr.hbm [resolvable:$true] %s723
          %s725 = sshll.u32 [#allocation8], 4
          %s726 = int_to_ptr.vmem [resolvable:$true] %s725
          %728 = dma.hbm_to_vmem [thread:$0]  %s724, 16, %s726, [#allocation9]
        $region40: #{tpu_custom_call.1} parent=11 // pred_fallthru
          _
        // Predicated region
        $region41: #{tpu_custom_call.1} parent=11 // pred_check
          %p729 = pneg %p329
        $region42: #{tpu_custom_call.1} parent=11 // pred_check_branch
          %731 = sbr.rel (%p729) target = $region44
        $region43: #{tpu_custom_call.1} parent=11 // pred_region
          %733 = vsyncadd [#allocation9], 0
          %s735 = sshll.u32 %s11, 4
          %s736 = int_to_ptr.hbm [resolvable:$true] %s735
          %s737 = sshll.u32 [#allocation10], 4
          %s738 = int_to_ptr.vmem [resolvable:$true] %s737
          %740 = dma.hbm_to_vmem [thread:$0]  %s736, 16, %s738, [#allocation9]
        $region44: #{tpu_custom_call.1} parent=11 // pred_fallthru
          _
        // Predicated region
        $region45: #{tpu_custom_call.1} parent=11 // pred_check
          %p741 = pneg %p350
        $region46: #{tpu_custom_call.1} parent=11 // pred_check_branch
          %743 = sbr.rel (%p741) target = $region48
        $region47: #{tpu_custom_call.1} parent=11 // pred_region
          %745 = vsyncadd [#allocation12], 0
          %s746 = sshll.u32 %s12, 4
          %s747 = int_to_ptr.hbm [resolvable:$true] %s746
          %s748 = sshll.u32 [#allocation11], 4
          %s749 = int_to_ptr.vmem [resolvable:$true] %s748
          %754 = dma.hbm_to_vmem [thread:$0]  %s747, 256, %s749, [#allocation12], 64, 64, 4
        $region48: #{tpu_custom_call.1} parent=11 // pred_fallthru
          _
        // Predicated region
        $region49: #{tpu_custom_call.1} parent=11 // pred_check
          %p755 = pneg %p371
        $region50: #{tpu_custom_call.1} parent=11 // pred_check_branch
          %757 = sbr.rel (%p755) target = $region52
        $region51: #{tpu_custom_call.1} parent=11 // pred_region
          %759 = vsyncadd [#allocation12], 0
          %s761 = sshll.u32 %s13, 4
          %s762 = int_to_ptr.hbm [resolvable:$true] %s761
          %s763 = sshll.u32 [#allocation13], 4
          %s764 = int_to_ptr.vmem [resolvable:$true] %s763
          %766 = dma.hbm_to_vmem [thread:$0]  %s762, 16, %s764, [#allocation12]
        $region52: #{tpu_custom_call.1} parent=11 // pred_fallthru
          _
        // Predicated region
        $region53: #{tpu_custom_call.1} parent=11 // pred_check
          %p767 = pneg %p392
        $region54: #{tpu_custom_call.1} parent=11 // pred_check_branch
          %769 = sbr.rel (%p767) target = $region56
        $region55: #{tpu_custom_call.1} parent=11 // pred_region
          %771 = vsyncadd [#allocation15], 0
          %s772 = sshll.u32 %s14, 4
          %s773 = int_to_ptr.hbm [resolvable:$true] %s772
          %s774 = sshll.u32 [#allocation14], 4
          %s775 = int_to_ptr.vmem [resolvable:$true] %s774
          %780 = dma.hbm_to_vmem [thread:$0]  %s773, 256, %s775, [#allocation15], 64, 64, 4
        $region56: #{tpu_custom_call.1} parent=11 // pred_fallthru
          _
        // Predicated region
        $region57: #{tpu_custom_call.1} parent=11 // pred_check
          %p781 = pneg %p413
        $region58: #{tpu_custom_call.1} parent=11 // pred_check_branch
          %783 = sbr.rel (%p781) target = $region60
        $region59: #{tpu_custom_call.1} parent=11 // pred_region
          %785 = vsyncadd [#allocation15], 0
          %s787 = sshll.u32 %s15, 4
          %s788 = int_to_ptr.hbm [resolvable:$true] %s787
          %s789 = sshll.u32 [#allocation16], 4
          %s790 = int_to_ptr.vmem [resolvable:$true] %s789
          %792 = dma.hbm_to_vmem [thread:$0]  %s788, 16, %s790, [#allocation15]
        $region60: #{tpu_custom_call.1} parent=11 // pred_fallthru
          _
        // Predicated region
        $region61: #{tpu_custom_call.1} parent=11 // pred_check
          %p793 = pneg %p434
        $region62: #{tpu_custom_call.1} parent=11 // pred_check_branch
          %795 = sbr.rel (%p793) target = $region64
        $region63: #{tpu_custom_call.1} parent=11 // pred_region
          %797 = vsyncadd [#allocation18], 0
          %s798 = sshll.u32 %s16, 4
          %s799 = int_to_ptr.hbm [resolvable:$true] %s798
          %s800 = sshll.u32 [#allocation17], 4
          %s801 = int_to_ptr.vmem [resolvable:$true] %s800
          %806 = dma.hbm_to_vmem [thread:$0]  %s799, 256, %s801, [#allocation18], 64, 64, 4
        $region64: #{tpu_custom_call.1} parent=11 // pred_fallthru
          _
        // Predicated region
        $region65: #{tpu_custom_call.1} parent=11 // pred_check
          %p807 = pneg %p455
        $region66: #{tpu_custom_call.1} parent=11 // pred_check_branch
          %809 = sbr.rel (%p807) target = $region68
        $region67: #{tpu_custom_call.1} parent=11 // pred_region
          %811 = vsyncadd [#allocation18], 0
          %s813 = sshll.u32 %s17, 4
          %s814 = int_to_ptr.hbm [resolvable:$true] %s813
          %s815 = sshll.u32 [#allocation19], 4
          %s816 = int_to_ptr.vmem [resolvable:$true] %s815
          %818 = dma.hbm_to_vmem [thread:$0]  %s814, 16, %s816, [#allocation18]
        $region68: #{tpu_custom_call.1} parent=11 // pred_fallthru
          _
        // Predicated region
        $region69: #{tpu_custom_call.1} parent=11 // pred_check
          %p819 = pneg %p476
        $region70: #{tpu_custom_call.1} parent=11 // pred_check_branch
          %821 = sbr.rel (%p819) target = $region72
        $region71: #{tpu_custom_call.1} parent=11 // pred_region
          %823 = vsyncadd [#allocation21], 0
          %s825 = sshll.u32 %s18, 4
          %s826 = int_to_ptr.hbm [resolvable:$true] %s825
          %s827 = sshll.u32 [#allocation20], 4
          %s828 = int_to_ptr.vmem [resolvable:$true] %s827
          %830 = dma.hbm_to_vmem [thread:$0]  %s826, 16, %s828, [#allocation21]
        $region72: #{tpu_custom_call.1} parent=11 // pred_fallthru
          _
        // Predicated region
        $region73: #{tpu_custom_call.1} parent=11 // pred_check
          %p831 = pneg %p497
        $region74: #{tpu_custom_call.1} parent=11 // pred_check_branch
          %833 = sbr.rel (%p831) target = $region76
        $region75: #{tpu_custom_call.1} parent=11 // pred_region
          %835 = vsyncadd [#allocation21], 0
          %s837 = sshll.u32 %s19, 4
          %s838 = int_to_ptr.hbm [resolvable:$true] %s837
          %s839 = sshll.u32 [#allocation22], 4
          %s840 = int_to_ptr.vmem [resolvable:$true] %s839
          %842 = dma.hbm_to_vmem [thread:$0]  %s838, 16, %s840, [#allocation21]
        $region76: #{tpu_custom_call.1} parent=11 // pred_fallthru
          _
        // Predicated region
        $region77: #{tpu_custom_call.1} parent=11 // pred_check
          %p843 = pneg %p518
        $region78: #{tpu_custom_call.1} parent=11 // pred_check_branch
          %845 = sbr.rel (%p843) target = $region80
        $region79: #{tpu_custom_call.1} parent=11 // pred_region
          %847 = vsyncadd [#allocation24], 0
          %s848 = sshll.u32 %s20, 4
          %s849 = int_to_ptr.hbm [resolvable:$true] %s848
          %s850 = sshll.u32 [#allocation23], 4
          %s851 = int_to_ptr.vmem [resolvable:$true] %s850
          %856 = dma.hbm_to_vmem [thread:$0]  %s849, 256, %s851, [#allocation24], 64, 64, 4
        $region80: #{tpu_custom_call.1} parent=11 // pred_fallthru
          _
        // Predicated region
        $region81: #{tpu_custom_call.1} parent=11 // pred_check
          %p857 = pneg %p539
        $region82: #{tpu_custom_call.1} parent=11 // pred_check_branch
          %859 = sbr.rel (%p857) target = $region84
        $region83: #{tpu_custom_call.1} parent=11 // pred_region
          %861 = vsyncadd [#allocation24], 0
          %s863 = sshll.u32 %s21, 4
          %s864 = int_to_ptr.hbm [resolvable:$true] %s863
          %s865 = sshll.u32 [#allocation25], 4
          %s866 = int_to_ptr.vmem [resolvable:$true] %s865
          %868 = dma.hbm_to_vmem [thread:$0]  %s864, 16, %s866, [#allocation24]
        $region84: #{tpu_custom_call.1} parent=11 // pred_fallthru
          _
        // Predicated region
        $region85: #{tpu_custom_call.1} parent=11 // pred_check
          %p869 = pneg %p560
        $region86: #{tpu_custom_call.1} parent=11 // pred_check_branch
          %871 = sbr.rel (%p869) target = $region88
        $region87: #{tpu_custom_call.1} parent=11 // pred_region
          _
        $region88: #{tpu_custom_call.1} parent=11 // pred_fallthru
          _
        // Predicated region
        $region89: #{tpu_custom_call.1} parent=11 // pred_check
          %p872 = pneg %p581
        $region90: #{tpu_custom_call.1} parent=11 // pred_check_branch
          %874 = sbr.rel (%p872) target = $region92
        $region91: #{tpu_custom_call.1} parent=11 // pred_region
          _
        $region92: #{tpu_custom_call.1} parent=11 // pred_fallthru
          _
        // Predicated region
        $region93: #{tpu_custom_call.1} parent=11 // pred_check
          %p875 = pneg %p602
        $region94: #{tpu_custom_call.1} parent=11 // pred_check_branch
          %877 = sbr.rel (%p875) target = $region96
        $region95: #{tpu_custom_call.1} parent=11 // pred_region
          _
        $region96: #{tpu_custom_call.1} parent=11 // pred_fallthru
          _
        // Predicated region
        $region97: #{tpu_custom_call.1} parent=11 // pred_check
          %p878 = pneg %p623
        $region98: #{tpu_custom_call.1} parent=11 // pred_check_branch
          %880 = sbr.rel (%p878) target = $region100
        $region99: #{tpu_custom_call.1} parent=11 // pred_region
          _
        $region100: #{tpu_custom_call.1} parent=11 // pred_fallthru
          _
      $region12: #{tpu_custom_call.1} parent=5 // pred_fallthru
        _
      %p881 = scmp.lt.s32.totalorder %s43, 2
      // Predicated region
      $region101: #{tpu_custom_call.1} parent=5 // pred_check
        %p882 = pneg %p881
      $region102: #{tpu_custom_call.1} parent=5 // pred_check_branch
        %884 = sbr.rel (%p882) target = $region104
      $region103: #{tpu_custom_call.1} parent=5 // pred_region
        // Predicated region
        $region105: #{tpu_custom_call.1} parent=103 // pred_check
          %p885 = pneg %p77
        $region106: #{tpu_custom_call.1} parent=103 // pred_check_branch
          %887 = sbr.rel (%p885) target = $region108
        $region107: #{tpu_custom_call.1} parent=103 // pred_region
          %p888 = scmp.lt.s32.totalorder %s50, 1
          %s889 = scalar_select %p888, %s50, 1
          %p890 = scmp.lt.s32.totalorder %s51, 0
          %s891 = scalar_select %p890, %s51, 0
          %s892 = sadd.s32 %s891, %s889
          %s893 = smul.addr %s892, 8
          %s894 = scalar_lea.vmem %s0, %s893
        $region108: #{tpu_custom_call.1} parent=103 // pred_fallthru
          _
        // Predicated region
        $region109: #{tpu_custom_call.1} parent=103 // pred_check
          %p895 = pneg %p103
        $region110: #{tpu_custom_call.1} parent=103 // pred_check_branch
          %897 = sbr.rel (%p895) target = $region112
        $region111: #{tpu_custom_call.1} parent=103 // pred_region
          %p898 = scmp.lt.s32.totalorder %s50, 1
          %s899 = scalar_select %p898, %s50, 1
          %s900 = smul.addr %s899, 8
          %s901 = scalar_lea.vmem %s1, %s900
        $region112: #{tpu_custom_call.1} parent=103 // pred_fallthru
          _
        // Predicated region
        $region113: #{tpu_custom_call.1} parent=103 // pred_check
          %p902 = pneg %p129
        $region114: #{tpu_custom_call.1} parent=103 // pred_check_branch
          %904 = sbr.rel (%p902) target = $region116
        $region115: #{tpu_custom_call.1} parent=103 // pred_region
          %p905 = scmp.lt.s32.totalorder %s50, 1
          %s906 = scalar_select %p905, %s50, 1
          %s907 = smul.addr %s906, 2
          %s908 = smul.addr %s907, 4
          %s909 = scalar_lea.vmem %s2, %s908
        $region116: #{tpu_custom_call.1} parent=103 // pred_fallthru
          _
        // Predicated region
        $region117: #{tpu_custom_call.1} parent=103 // pred_check
          %p910 = pneg %p155
        $region118: #{tpu_custom_call.1} parent=103 // pred_check_branch
          %912 = sbr.rel (%p910) target = $region120
        $region119: #{tpu_custom_call.1} parent=103 // pred_region
          %p913 = scmp.lt.s32.totalorder %s50, 1
          %s914 = scalar_select %p913, %s50, 1
          %s915 = scalar_lea.vmem %s3, %s914
        $region120: #{tpu_custom_call.1} parent=103 // pred_fallthru
          _
      $region104: #{tpu_custom_call.1} parent=5 // pred_fallthru
        _
      %p916 = scmp.le.s32.totalorder 1, %s43
      %p917 = scmp.lt.s32.totalorder %s43, 3
      %p918 = pnand %p916, %p917
      %p919 = pneg %p918
      // Predicated region
      $region121: #{tpu_custom_call.1} parent=5 // pred_check
        _
      $region122: #{tpu_custom_call.1} parent=5 // pred_check_branch
        %921 = sbr.rel (%p918) target = $region124
      $region123: #{tpu_custom_call.1} parent=5 // pred_region
        %s922 = ssub.s32 %s43, 1
        // Predicated region
        $region125: #{tpu_custom_call.1} parent=123 // pred_check
          %p923 = pneg %p182
        $region126: #{tpu_custom_call.1} parent=123 // pred_check_branch
          %925 = sbr.rel (%p923) target = $region128
        $region127: #{tpu_custom_call.1} parent=123 // pred_region
          %927 = dma.done [#allocation3], 256
        $region128: #{tpu_custom_call.1} parent=123 // pred_fallthru
          _
        // Predicated region
        $region129: #{tpu_custom_call.1} parent=123 // pred_check
          %p928 = pneg %p224
        $region130: #{tpu_custom_call.1} parent=123 // pred_check_branch
          %930 = sbr.rel (%p928) target = $region132
        $region131: #{tpu_custom_call.1} parent=123 // pred_region
          %932 = dma.done [#allocation6], 256
        $region132: #{tpu_custom_call.1} parent=123 // pred_fallthru
          _
        // Predicated region
        $region133: #{tpu_custom_call.1} parent=123 // pred_check
          %p933 = pneg %p266
        $region134: #{tpu_custom_call.1} parent=123 // pred_check_branch
          %935 = sbr.rel (%p933) target = $region136
        $region135: #{tpu_custom_call.1} parent=123 // pred_region
          %937 = dma.done [#allocation6], 256
        $region136: #{tpu_custom_call.1} parent=123 // pred_fallthru
          _
        // Predicated region
        $region137: #{tpu_custom_call.1} parent=123 // pred_check
          %p938 = pneg %p308
        $region138: #{tpu_custom_call.1} parent=123 // pred_check_branch
          %940 = sbr.rel (%p938) target = $region140
        $region139: #{tpu_custom_call.1} parent=123 // pred_region
          %942 = dma.done [#allocation9], 16
        $region140: #{tpu_custom_call.1} parent=123 // pred_fallthru
          _
        // Predicated region
        $region141: #{tpu_custom_call.1} parent=123 // pred_check
          %p943 = pneg %p329
        $region142: #{tpu_custom_call.1} parent=123 // pred_check_branch
          %945 = sbr.rel (%p943) target = $region144
        $region143: #{tpu_custom_call.1} parent=123 // pred_region
          %947 = dma.done [#allocation9], 16
        $region144: #{tpu_custom_call.1} parent=123 // pred_fallthru
          _
        // Predicated region
        $region145: #{tpu_custom_call.1} parent=123 // pred_check
          %p948 = pneg %p350
        $region146: #{tpu_custom_call.1} parent=123 // pred_check_branch
          %950 = sbr.rel (%p948) target = $region148
        $region147: #{tpu_custom_call.1} parent=123 // pred_region
          %952 = dma.done [#allocation12], 256
        $region148: #{tpu_custom_call.1} parent=123 // pred_fallthru
          _
        // Predicated region
        $region149: #{tpu_custom_call.1} parent=123 // pred_check
          %p953 = pneg %p371
        $region150: #{tpu_custom_call.1} parent=123 // pred_check_branch
          %955 = sbr.rel (%p953) target = $region152
        $region151: #{tpu_custom_call.1} parent=123 // pred_region
          %957 = dma.done [#allocation12], 16
        $region152: #{tpu_custom_call.1} parent=123 // pred_fallthru
          _
        // Predicated region
        $region153: #{tpu_custom_call.1} parent=123 // pred_check
          %p958 = pneg %p392
        $region154: #{tpu_custom_call.1} parent=123 // pred_check_branch
          %960 = sbr.rel (%p958) target = $region156
        $region155: #{tpu_custom_call.1} parent=123 // pred_region
          %962 = dma.done [#allocation15], 256
        $region156: #{tpu_custom_call.1} parent=123 // pred_fallthru
          _
        // Predicated region
        $region157: #{tpu_custom_call.1} parent=123 // pred_check
          %p963 = pneg %p413
        $region158: #{tpu_custom_call.1} parent=123 // pred_check_branch
          %965 = sbr.rel (%p963) target = $region160
        $region159: #{tpu_custom_call.1} parent=123 // pred_region
          %967 = dma.done [#allocation15], 16
        $region160: #{tpu_custom_call.1} parent=123 // pred_fallthru
          _
        // Predicated region
        $region161: #{tpu_custom_call.1} parent=123 // pred_check
          %p968 = pneg %p434
        $region162: #{tpu_custom_call.1} parent=123 // pred_check_branch
          %970 = sbr.rel (%p968) target = $region164
        $region163: #{tpu_custom_call.1} parent=123 // pred_region
          %972 = dma.done [#allocation18], 256
        $region164: #{tpu_custom_call.1} parent=123 // pred_fallthru
          _
        // Predicated region
        $region165: #{tpu_custom_call.1} parent=123 // pred_check
          %p973 = pneg %p455
        $region166: #{tpu_custom_call.1} parent=123 // pred_check_branch
          %975 = sbr.rel (%p973) target = $region168
        $region167: #{tpu_custom_call.1} parent=123 // pred_region
          %977 = dma.done [#allocation18], 16
        $region168: #{tpu_custom_call.1} parent=123 // pred_fallthru
          _
        // Predicated region
        $region169: #{tpu_custom_call.1} parent=123 // pred_check
          %p978 = pneg %p476
        $region170: #{tpu_custom_call.1} parent=123 // pred_check_branch
          %980 = sbr.rel (%p978) target = $region172
        $region171: #{tpu_custom_call.1} parent=123 // pred_region
          %982 = dma.done [#allocation21], 16
        $region172: #{tpu_custom_call.1} parent=123 // pred_fallthru
          _
        // Predicated region
        $region173: #{tpu_custom_call.1} parent=123 // pred_check
          %p983 = pneg %p497
        $region174: #{tpu_custom_call.1} parent=123 // pred_check_branch
          %985 = sbr.rel (%p983) target = $region176
        $region175: #{tpu_custom_call.1} parent=123 // pred_region
          %987 = dma.done [#allocation21], 16
        $region176: #{tpu_custom_call.1} parent=123 // pred_fallthru
          _
        // Predicated region
        $region177: #{tpu_custom_call.1} parent=123 // pred_check
          %p988 = pneg %p518
        $region178: #{tpu_custom_call.1} parent=123 // pred_check_branch
          %990 = sbr.rel (%p988) target = $region180
        $region179: #{tpu_custom_call.1} parent=123 // pred_region
          %992 = dma.done [#allocation24], 256
        $region180: #{tpu_custom_call.1} parent=123 // pred_fallthru
          _
        // Predicated region
        $region181: #{tpu_custom_call.1} parent=123 // pred_check
          %p993 = pneg %p539
        $region182: #{tpu_custom_call.1} parent=123 // pred_check_branch
          %995 = sbr.rel (%p993) target = $region184
        $region183: #{tpu_custom_call.1} parent=123 // pred_region
          %997 = dma.done [#allocation24], 16
        $region184: #{tpu_custom_call.1} parent=123 // pred_fallthru
          _
        %p998 = scmp.lt.s32.totalorder %s52, 1
        %s999 = scalar_select %p998, %s52, 1
        %p1000 = scmp.lt.s32.totalorder %s53, 0
        %s1001 = scalar_select %p1000, %s53, 0
        %s1002 = sadd.s32 %s1001, %s999
        %s1003 = smul.addr %s1002, 8
        %s1004 = scalar_lea.vmem %s0, %s1003
        %p1005 = pneg %p83
        %p1006 = pneg %p80
        %p1007 = scmp.lt.s32.totalorder %s52, 1
        %s1008 = scalar_select %p1007, %s52, 1
        %s1009 = smul.addr %s1008, 8
        %s1010 = scalar_lea.vmem %s1, %s1009
        %p1011 = pneg %p109
        %p1012 = pneg %p106
        %p1013 = scmp.lt.s32.totalorder %s52, 1
        %s1014 = scalar_select %p1013, %s52, 1
        %s1015 = smul.addr %s1014, 2
        %s1016 = smul.addr %s1015, 4
        %s1017 = scalar_lea.vmem %s2, %s1016
        %p1018 = pneg %p135
        %p1019 = pneg %p132
        %p1020 = scmp.lt.s32.totalorder %s52, 1
        %s1021 = scalar_select %p1020, %s52, 1
        %s1022 = scalar_lea.vmem %s3, %s1021
        %p1023 = pneg %p161
        %p1024 = pneg %p158
        %p1025 = pneg %p182
        %p1026 = pneg %p179
        %p1027 = pneg %p203
        %p1028 = pneg %p200
        %p1029 = pneg %p224
        %p1030 = pneg %p221
        %p1031 = pneg %p245
        %p1032 = pneg %p242
        %p1033 = pneg %p266
        %p1034 = pneg %p263
        %p1035 = pneg %p287
        %p1036 = pneg %p284
        %p1037 = pneg %p308
        %p1038 = pneg %p305
        %p1039 = pneg %p329
        %p1040 = pneg %p326
        %p1041 = pneg %p350
        %p1042 = pneg %p347
        %p1043 = pneg %p371
        %p1044 = pneg %p368
        %p1045 = pneg %p392
        %p1046 = pneg %p389
        %p1047 = pneg %p413
        %p1048 = pneg %p410
        %p1049 = pneg %p434
        %p1050 = pneg %p431
        %p1051 = pneg %p455
        %p1052 = pneg %p452
        %p1053 = pneg %p476
        %p1054 = pneg %p473
        %p1055 = pneg %p497
        %p1056 = pneg %p494
        %p1057 = pneg %p518
        %p1058 = pneg %p515
        %p1059 = pneg %p539
        %p1060 = pneg %p536
        %p1061 = pneg %p560
        %p1062 = pneg %p557
        %p1063 = pneg %p581
        %p1064 = pneg %p578
        %p1065 = pneg %p602
        %p1066 = pneg %p599
        %p1067 = pneg %p623
        %p1068 = pneg %p620
        %p1069 = pneg %p651
        %p1070 = pneg %p648
        %s1071 = sand.u32 %s638, 1
        %s1072 = scalar_lea.sflag [#allocation4], %s1071
        %s1073 = sand.u32 %s638, 1
        %s1074 = smul.addr %s1073, 8
        %s1075 = scalar_lea.vmem [#allocation26], %s1074
        %p1076 = scmp.lt.s32.totalorder %s52, 1
        %s1077 = scalar_select %p1076, %s52, 1
        %p1078 = scmp.lt.s32.totalorder %s53, 0
        %s1079 = scalar_select %p1078, %s53, 0
        %s1080 = sadd.s32 %s1079, %s1077
        %s1081 = smul.addr %s1080, 8
        %s1082 = scalar_lea.vmem %s0, %s1081
        %p1083 = scmp.lt.s32.totalorder %s52, 1
        %s1084 = scalar_select %p1083, %s52, 1
        %s1085 = smul.addr %s1084, 8
        %s1086 = scalar_lea.vmem %s1, %s1085
        %p1087 = scmp.lt.s32.totalorder %s52, 1
        %s1088 = scalar_select %p1087, %s52, 1
        %s1089 = smul.addr %s1088, 2
        %s1090 = smul.addr %s1089, 4
        %s1091 = scalar_lea.vmem %s2, %s1090
        %p1092 = scmp.lt.s32.totalorder %s52, 1
        %s1093 = scalar_select %p1092, %s52, 1
        %s1094 = scalar_lea.vmem %s3, %s1093
        %v1096 = vld [vmem:[%s1082] sm:$0xff]
        %v1097 = vld [vmem:[%s1086] sm:$0xff]
        %v1098 = vpack.c.bf16 %v1097, %v1097
        %v1099 = vld [vmem:[%s1091] sm:$0xf]
        %v1100 = vld [vmem:[%s1091 + $0x4] sm:$0xf]
        %v1101 = vld [vmem:[%s1094] sm:$0x1]
        %s1102 = smul.u32 %s53, 8
        %v1103 = vlaneseq
        %v1104 = vshrl.u32 %v1103, 7
        %v1105 = vstv %s1102
        %v1106 = vadd.s32 %v1105, %v1104
        %v1107 = vlaneseq
        %v1108 = vand.u32 %v1107, 127
        %vm1109 = vcmp.ge.s32.totalorder %v1106, %v1108
        %v1110 = vsel %vm1109, 0.0, -1e+09
        %v1111 = vpack.c.bf16 %v1096, %v1096
        %v1112 = vld [vmem:[#allocation2] sm:$0xf]
        %v1113 = vld [vmem:[#allocation2 + $0x4] sm:$0xf]
        %v1114 = vld [vmem:[#allocation2 + $0x8] sm:$0xf]
        %v1115 = vld [vmem:[#allocation2 + $0xc] sm:$0xf]
        %v1116 = vld [vmem:[%s5] sm:$0x1]
        %v1118 = vperm.slane %v1116, 0
        %v1124 = vunpack.c.l.b16 %v1112
        %v1125 = vunpack.c.l.b16 %v1113
        %v1126 = vunpack.c.l.b16 %v1114
        %v1127 = vunpack.c.l.b16 %v1115
        %v1128 = vpack.c.b16 %v1125, %v1124
        %v1129 = vpack.c.b16 %v1127, %v1126
        %vm1132 = vcmask 261120
        %v1134 = vsel %vm1132, %v1111, 0
        %1136 = vmatpush.bf16.msra.mxu0 0
        %1137 = vmatpush.bf16.msra.mxu0 0
        %1138 = vmatpush.bf16.msra.mxu0 0
        %1139 = vmatpush.bf16.msra.mxu0 0
        %1140 = vmatpush.bf16.msra.mxu0 0
        %1141 = vmatpush.bf16.msra.mxu0 0
        %1142 = vmatpush.bf16.msra.mxu0 %v1129
        %1143 = vmatpush.bf16.msra.mxu0 %v1128
        %1144 = vmatmul.bf16.gmra.mxu0 %v1134
        %v1145 = vpop.f32.mrf.mxu0
        %v1146 = vadd.f32 %v1118, %v1145
        %v1147 = vpop.f32.mrf.mxu0
        %1148 = vdwg.mxu0
        %v1149 = vld [vmem:[#allocation5] sm:$0xf]
        %v1150 = vld [vmem:[#allocation5 + $0x4] sm:$0xf]
        %v1151 = vld [vmem:[#allocation5 + $0x8] sm:$0xf]
        %v1152 = vld [vmem:[#allocation5 + $0xc] sm:$0xf]
        %v1153 = vld [vmem:[%s7] sm:$0x1]
        %v1155 = vperm.slane %v1153, 0
        %v1161 = vunpack.c.l.b16 %v1149
        %v1162 = vunpack.c.l.b16 %v1150
        %v1163 = vunpack.c.l.b16 %v1151
        %v1164 = vunpack.c.l.b16 %v1152
        %v1165 = vpack.c.b16 %v1162, %v1161
        %v1166 = vpack.c.b16 %v1164, %v1163
        %v1170 = vsel %vm1132, %v1098, 0
        %1172 = vmatpush.bf16.msra.mxu0 0
        %1173 = vmatpush.bf16.msra.mxu0 0
        %1174 = vmatpush.bf16.msra.mxu0 0
        %1175 = vmatpush.bf16.msra.mxu0 0
        %1176 = vmatpush.bf16.msra.mxu0 0
        %1177 = vmatpush.bf16.msra.mxu0 0
        %1178 = vmatpush.bf16.msra.mxu0 %v1166
        %1179 = vmatpush.bf16.msra.mxu0 %v1165
        %1180 = vmatmul.bf16.gmra.mxu0 %v1170
        %v1181 = vpop.f32.mrf.mxu0
        %v1182 = vadd.f32 %v1155, %v1181
        %v1183 = vpop.f32.mrf.mxu0
        %1184 = vdwg.mxu0
        %v1185 = vpack.c.bf16 %v1146, %v1146
        %1187 = vrot.lane.b32.xlu0 %v1185, 120
        %v1188 = vpop.permute.xlu0 %1187
        %1189 = vrot.lane.b32.xlu0 %v1185, 112
        %v1190 = vpop.permute.xlu0 %1189
        %1191 = vrot.lane.b32.xlu0 %v1185, 104
        %v1192 = vpop.permute.xlu0 %1191
        %v1193 = vpack.c.bf16 %v1182, %v1182
        %1195 = vrot.lane.b32.xlu0 %v1193, 120
        %v1196 = vpop.permute.xlu0 %1195
        %1197 = vrot.lane.b32.xlu0 %v1193, 112
        %v1198 = vpop.permute.xlu0 %1197
        %1199 = vrot.lane.b32.xlu0 %v1193, 104
        %v1200 = vpop.permute.xlu0 %1199
        %vm1201 = vcmask 64512
        %v1203 = vsel %vm1201, %v1185, 0
        %v1206 = vsel %vm1201, %v1193, 0
        %1208 = vmatpush.bf16.xpose.msra.mxu0 0
        %1209 = vmatpush.bf16.xpose.msra.mxu0 0
        %1210 = vmatpush.bf16.xpose.msra.mxu0 0
        %1211 = vmatpush.bf16.xpose.msra.mxu0 0
        %1212 = vmatpush.bf16.xpose.msra.mxu0 0
        %1213 = vmatpush.bf16.xpose.msra.mxu0 0
        %1214 = vmatpush.bf16.xpose.msra.mxu0 0
        %1215 = vmatpush.bf16.xpose.msra.mxu0 %v1206
        %1216 = vmatmul.bf16.gmra.mxu0 %v1203
        %v1217 = vpop.f32.mrf.mxu0
        %v1218 = vadd.f32 %v1110, %v1217
        %v1219 = vpop.f32.mrf.mxu0
        %1220 = vdwg.mxu0
        %v1222 = vsel %vm1201, %v1188, 0
        %v1225 = vsel %vm1201, %v1196, 0
        %1227 = vmatpush.bf16.xpose.msra.mxu0 0
        %1228 = vmatpush.bf16.xpose.msra.mxu0 0
        %1229 = vmatpush.bf16.xpose.msra.mxu0 0
        %1230 = vmatpush.bf16.xpose.msra.mxu0 0
        %1231 = vmatpush.bf16.xpose.msra.mxu0 0
        %1232 = vmatpush.bf16.xpose.msra.mxu0 0
        %1233 = vmatpush.bf16.xpose.msra.mxu0 0
        %1234 = vmatpush.bf16.xpose.msra.mxu0 %v1225
        %1235 = vmatmul.bf16.gmra.mxu0 %v1222
        %v1236 = vpop.f32.mrf.mxu0
        %v1237 = vadd.f32 %v1110, %v1236
        %v1238 = vpop.f32.mrf.mxu0
        %1239 = vdwg.mxu0
        %v1241 = vsel %vm1201, %v1190, 0
        %v1244 = vsel %vm1201, %v1198, 0
        %1246 = vmatpush.bf16.xpose.msra.mxu0 0
        %1247 = vmatpush.bf16.xpose.msra.mxu0 0
        %1248 = vmatpush.bf16.xpose.msra.mxu0 0
        %1249 = vmatpush.bf16.xpose.msra.mxu0 0
        %1250 = vmatpush.bf16.xpose.msra.mxu0 0
        %1251 = vmatpush.bf16.xpose.msra.mxu0 0
        %1252 = vmatpush.bf16.xpose.msra.mxu0 0
        %1253 = vmatpush.bf16.xpose.msra.mxu0 %v1244
        %1254 = vmatmul.bf16.gmra.mxu0 %v1241
        %v1255 = vpop.f32.mrf.mxu0
        %v1256 = vadd.f32 %v1110, %v1255
        %v1257 = vpop.f32.mrf.mxu0
        %1258 = vdwg.mxu0
        %v1260 = vsel %vm1201, %v1192, 0
        %v1263 = vsel %vm1201, %v1200, 0
        %1265 = vmatpush.bf16.xpose.msra.mxu0 0
        %1266 = vmatpush.bf16.xpose.msra.mxu0 0
        %1267 = vmatpush.bf16.xpose.msra.mxu0 0
        %1268 = vmatpush.bf16.xpose.msra.mxu0 0
        %1269 = vmatpush.bf16.xpose.msra.mxu0 0
        %1270 = vmatpush.bf16.xpose.msra.mxu0 0
        %1271 = vmatpush.bf16.xpose.msra.mxu0 0
        %1272 = vmatpush.bf16.xpose.msra.mxu0 %v1263
        %1273 = vmatmul.bf16.gmra.mxu0 %v1260
        %v1274 = vpop.f32.mrf.mxu0
        %v1275 = vadd.f32 %v1110, %v1274
        %v1276 = vpop.f32.mrf.mxu0
        %1277 = vdwg.mxu0
        %v1278 = vsel %vm1201, %v1218, -inf
        %1279 = vmax.xlane.f32.xlu0 %v1278
        %v1280 = vpop.xlane.xlu0 %1279
        %v1281 = vsel %vm1201, %v1237, -inf
        %1282 = vmax.xlane.f32.xlu0 %v1281
        %v1283 = vpop.xlane.xlu0 %1282
        %v1284 = vsel %vm1201, %v1256, -inf
        %1285 = vmax.xlane.f32.xlu0 %v1284
        %v1286 = vpop.xlane.xlu0 %1285
        %v1287 = vsel %vm1201, %v1275, -inf
        %1288 = vmax.xlane.f32.xlu0 %v1287
        %v1289 = vpop.xlane.xlu0 %1288
        %v1290 = vsub.f32 %v1218, %v1280
        %v1291 = vsub.f32 %v1237, %v1283
        %v1292 = vsub.f32 %v1256, %v1286
        %v1293 = vsub.f32 %v1275, %v1289
        %v1294 = vmul.f32 %v1290, 1.442695
        %v1295 = vpow.pop %v1294
        %v1296 = vmul.f32 %v1291, 1.442695
        %v1297 = vpow.pop %v1296
        %v1298 = vmul.f32 %v1292, 1.442695
        %v1299 = vpow.pop %v1298
        %v1300 = vmul.f32 %v1293, 1.442695
        %v1301 = vpow.pop %v1300
        %v1302 = vsel %vm1201, %v1295, 0.0
        %1303 = vadd.xlane.f32.xlu0 %v1302
        %v1304 = vpop.xlane.xlu0 %1303
        %v1305 = vsel %vm1201, %v1297, 0.0
        %1306 = vadd.xlane.f32.xlu0 %v1305
        %v1307 = vpop.xlane.xlu0 %1306
        %v1308 = vsel %vm1201, %v1299, 0.0
        %1309 = vadd.xlane.f32.xlu0 %v1308
        %v1310 = vpop.xlane.xlu0 %1309
        %v1311 = vsel %vm1201, %v1301, 0.0
        %1312 = vadd.xlane.f32.xlu0 %v1311
        %v1313 = vpop.xlane.xlu0 %1312
        %v1314 = vrcp.pop %v1304
        %v1315 = vrcp.pop %v1307
        %v1316 = vrcp.pop %v1310
        %v1317 = vrcp.pop %v1313
        %v1318 = vmul.f32 %v1295, %v1314
        %v1319 = vmul.f32 %v1297, %v1315
        %v1320 = vmul.f32 %v1299, %v1316
        %v1321 = vmul.f32 %v1301, %v1317
        %v1322 = vpack.c.bf16 %v1318, %v1318
        %v1323 = vpack.c.bf16 %v1319, %v1319
        %v1324 = vpack.c.bf16 %v1320, %v1320
        %v1325 = vpack.c.bf16 %v1321, %v1321
        %v1326 = vunpack.c.l.b16 %v1193
        %v1327 = vpack.c.b16 %v1326, %v1326
        %1328 = vrot.lane.b32.xlu0 %v1327, 96
        %v1329 = vpop.permute.xlu0 %1328
        %v1331 = vsel %vm1201, %v1322, 0
        %vm1333 = vcmask 1043456
        %v1335 = vsel %vm1333, %v1329, 0
        %1337 = vmatpush.bf16.msra.mxu0 0
        %1338 = vmatpush.bf16.msra.mxu0 0
        %1339 = vmatpush.bf16.msra.mxu0 0
        %1340 = vmatpush.bf16.msra.mxu0 0
        %1341 = vmatpush.bf16.msra.mxu0 0
        %1342 = vmatpush.bf16.msra.mxu0 0
        %1343 = vmatpush.bf16.msra.mxu0 0
        %1344 = vmatpush.bf16.msra.mxu0 %v1335
        %1345 = vmatmul.bf16.gmra.mxu0 %v1331
        %v1346 = vpop.f32.mrf.mxu0
        %v1347 = vadd.f32 0.0, %v1346
        %v1348 = vpop.f32.mrf.mxu0
        %1349 = vdwg.mxu0
        %v1350 = vunpack.c.l.b16 %v1196
        %v1351 = vpack.c.b16 %v1350, %v1350
        %1352 = vrot.lane.b32.xlu0 %v1351, 96
        %v1353 = vpop.permute.xlu0 %1352
        %v1355 = vsel %vm1201, %v1323, 0
        %v1358 = vsel %vm1333, %v1353, 0
        %1360 = vmatpush.bf16.msra.mxu0 0
        %1361 = vmatpush.bf16.msra.mxu0 0
        %1362 = vmatpush.bf16.msra.mxu0 0
        %1363 = vmatpush.bf16.msra.mxu0 0
        %1364 = vmatpush.bf16.msra.mxu0 0
        %1365 = vmatpush.bf16.msra.mxu0 0
        %1366 = vmatpush.bf16.msra.mxu0 0
        %1367 = vmatpush.bf16.msra.mxu0 %v1358
        %1368 = vmatmul.bf16.gmra.mxu0 %v1355
        %v1369 = vpop.f32.mrf.mxu0
        %v1370 = vadd.f32 0.0, %v1369
        %v1371 = vpop.f32.mrf.mxu0
        %1372 = vdwg.mxu0
        %v1373 = vunpack.c.l.b16 %v1198
        %v1374 = vpack.c.b16 %v1373, %v1373
        %1375 = vrot.lane.b32.xlu0 %v1374, 96
        %v1376 = vpop.permute.xlu0 %1375
        %v1378 = vsel %vm1201, %v1324, 0
        %v1381 = vsel %vm1333, %v1376, 0
        %1383 = vmatpush.bf16.msra.mxu0 0
        %1384 = vmatpush.bf16.msra.mxu0 0
        %1385 = vmatpush.bf16.msra.mxu0 0
        %1386 = vmatpush.bf16.msra.mxu0 0
        %1387 = vmatpush.bf16.msra.mxu0 0
        %1388 = vmatpush.bf16.msra.mxu0 0
        %1389 = vmatpush.bf16.msra.mxu0 0
        %1390 = vmatpush.bf16.msra.mxu0 %v1381
        %1391 = vmatmul.bf16.gmra.mxu0 %v1378
        %v1392 = vpop.f32.mrf.mxu0
        %v1393 = vadd.f32 0.0, %v1392
        %v1394 = vpop.f32.mrf.mxu0
        %1395 = vdwg.mxu0
        %v1396 = vunpack.c.l.b16 %v1200
        %v1397 = vpack.c.b16 %v1396, %v1396
        %1398 = vrot.lane.b32.xlu0 %v1397, 96
        %v1399 = vpop.permute.xlu0 %1398
        %v1401 = vsel %vm1201, %v1325, 0
        %v1404 = vsel %vm1333, %v1399, 0
        %1406 = vmatpush.bf16.msra.mxu0 0
        %1407 = vmatpush.bf16.msra.mxu0 0
        %1408 = vmatpush.bf16.msra.mxu0 0
        %1409 = vmatpush.bf16.msra.mxu0 0
        %1410 = vmatpush.bf16.msra.mxu0 0
        %1411 = vmatpush.bf16.msra.mxu0 0
        %1412 = vmatpush.bf16.msra.mxu0 0
        %1413 = vmatpush.bf16.msra.mxu0 %v1404
        %1414 = vmatmul.bf16.gmra.mxu0 %v1401
        %v1415 = vpop.f32.mrf.mxu0
        %v1416 = vadd.f32 0.0, %v1415
        %v1417 = vpop.f32.mrf.mxu0
        %1418 = vdwg.mxu0
        %1420 = vrot.lane.b32.xlu0 %v1370, 8
        %v1421 = vpop.permute.xlu0 %1420
        %1424 = vrot.lane.b32.xlu0 %v1393, 16
        %v1425 = vpop.permute.xlu0 %1424
        %1428 = vrot.lane.b32.xlu0 %v1416, 24
        %v1429 = vpop.permute.xlu0 %1428
        %v1431 = vsel %vm1201, %v1347, %v1421
        %vm1432 = vcmask 130048
        %v1433 = vsel %vm1432, %v1431, %v1425
        %vm1434 = vcmask 195584
        %v1435 = vsel %vm1434, %v1433, %v1429
        %v1436 = vpack.c.bf16 %v1435, %v1435
        %v1437 = vld [vmem:[#allocation7] sm:$0xf]
        %v1438 = vld [vmem:[#allocation7 + $0x4] sm:$0xf]
        %v1439 = vld [vmem:[#allocation7 + $0x8] sm:$0xf]
        %v1440 = vld [vmem:[#allocation7 + $0xc] sm:$0xf]
        %v1441 = vld [vmem:[%s9] sm:$0x1]
        %v1443 = vperm.slane %v1441, 0
        %v1449 = vunpack.c.l.b16 %v1437
        %v1450 = vunpack.c.l.b16 %v1438
        %v1451 = vunpack.c.l.b16 %v1439
        %v1452 = vunpack.c.l.b16 %v1440
        %v1453 = vpack.c.b16 %v1450, %v1449
        %v1454 = vpack.c.b16 %v1452, %v1451
        %v1458 = vsel %vm1132, %v1436, 0
        %1460 = vmatpush.bf16.msra.mxu0 0
        %1461 = vmatpush.bf16.msra.mxu0 0
        %1462 = vmatpush.bf16.msra.mxu0 0
        %1463 = vmatpush.bf16.msra.mxu0 0
        %1464 = vmatpush.bf16.msra.mxu0 0
        %1465 = vmatpush.bf16.msra.mxu0 0
        %1466 = vmatpush.bf16.msra.mxu0 %v1454
        %1467 = vmatpush.bf16.msra.mxu0 %v1453
        %1468 = vmatmul.bf16.gmra.mxu0 %v1458
        %v1469 = vpop.f32.mrf.mxu0
        %v1470 = vadd.f32 %v1443, %v1469
        %v1471 = vpop.f32.mrf.mxu0
        %1472 = vdwg.mxu0
        %v1473 = vadd.f32 %v1470, %v1096
        %v1474 = vld [vmem:[#allocation8] sm:$0x1]
        %v1475 = vld [vmem:[#allocation10] sm:$0x1]
        %v1476 = vsel %vm1132, %v1473, 0.0
        %1477 = vadd.xlane.f32.xlu0 %v1476
        %v1478 = vpop.xlane.xlu0 %1477
        %v1479 = vrcp.pop 32.0
        %v1480 = vmul.f32 32.0, %v1479
        %v1481 = vsub.f32 1.0, %v1480
        %v1482 = vmul.f32 %v1479, %v1481
        %v1483 = vadd.f32 %v1479, %v1482
        %vm1484 = vweird.f32 %v1479
        %v1485 = vsel %vm1484, %v1479, %v1483
        %v1486 = vmul.f32 %v1478, %v1485
        %v1487 = vsub.f32 %v1473, %v1486
        %v1488 = vmul.f32 %v1487, %v1487
        %v1489 = vsel %vm1132, %v1488, 0.0
        %1490 = vadd.xlane.f32.xlu0 %v1489
        %v1491 = vpop.xlane.xlu0 %1490
        %v1492 = vrcp.pop 31.0
        %v1493 = vmul.f32 31.0, %v1492
        %v1494 = vsub.f32 1.0, %v1493
        %v1495 = vmul.f32 %v1492, %v1494
        %v1496 = vadd.f32 %v1492, %v1495
        %vm1497 = vweird.f32 %v1492
        %v1498 = vsel %vm1497, %v1492, %v1496
        %v1499 = vmul.f32 %v1491, %v1498
        %v1501 = vperm.slane %v1474, 0
        %v1503 = vmul.f32 %v1501, %v1487
        %v1504 = vrsqrt.pop %v1499
        %v1505 = vmul.f32 %v1504, %v1499
        %v1506 = vmul.f32 %v1505, %v1504
        %v1507 = vmul.f32 0.5, %v1506
        %v1508 = vsub.f32 1.5, %v1507
        %v1509 = vmul.f32 %v1504, %v1508
        %v1510 = vmul.f32 %v1499, %v1509
        %vm1511 = vcmp.eq.f32.partialorder %v1499, inf
        %v1512 = vsel %vm1511, %v1499, %v1510
        %vm1513 = vcmp.eq.f32.partialorder %v1499, 0.0
        %v1514 = vand.u32 %v1499, 2147483648
        %v1515 = vsel %vm1513, %v1514, %v1512
        %v1516 = vadd.f32 %v1515, 1e-06
        %v1517 = vrcp.pop %v1516
        %v1518 = vmul.f32 %v1516, %v1517
        %v1519 = vsub.f32 1.0, %v1518
        %v1520 = vmul.f32 %v1517, %v1519
        %v1521 = vadd.f32 %v1517, %v1520
        %vm1522 = vweird.f32 %v1516
        %vm1523 = vweird.f32 %v1517
        %vm1524 = vmor %vm1522, %vm1523
        %v1525 = vsel %vm1524, %v1517, %v1521
        %v1526 = vand.u32 2147483647, %v1516
        %vm1527 = vcmp.eq.f32.partialorder %v1526, 8.507059e+37
        %v1528 = vand.u32 %v1516, 2147483648
        %v1529 = vor.u32 1.1754944e-38, %v1528
        %v1530 = vsel %vm1527, %v1529, %v1525
        %v1531 = vmul.f32 %v1503, %v1530
        %v1533 = vperm.slane %v1475, 0
        %v1535 = vadd.f32 %v1531, %v1533
        %v1536 = vpack.c.bf16 %v1535, %v1535
        %v1537 = vld [vmem:[#allocation11] sm:$0xf]
        %v1538 = vld [vmem:[#allocation11 + $0x4] sm:$0xf]
        %v1539 = vld [vmem:[#allocation11 + $0x8] sm:$0xf]
        %v1540 = vld [vmem:[#allocation11 + $0xc] sm:$0xf]
        %v1541 = vld [vmem:[#allocation13] sm:$0x1]
        %v1543 = vperm.slane %v1541, 0
        %v1549 = vunpack.c.l.b16 %v1537
        %v1550 = vunpack.c.l.b16 %v1538
        %v1551 = vunpack.c.l.b16 %v1539
        %v1552 = vunpack.c.l.b16 %v1540
        %v1553 = vpack.c.b16 %v1550, %v1549
        %v1554 = vpack.c.b16 %v1552, %v1551
        %v1558 = vsel %vm1132, %v1536, 0
        %1560 = vmatpush.bf16.msra.mxu0 0
        %1561 = vmatpush.bf16.msra.mxu0 0
        %1562 = vmatpush.bf16.msra.mxu0 0
        %1563 = vmatpush.bf16.msra.mxu0 0
        %1564 = vmatpush.bf16.msra.mxu0 0
        %1565 = vmatpush.bf16.msra.mxu0 0
        %1566 = vmatpush.bf16.msra.mxu0 %v1554
        %1567 = vmatpush.bf16.msra.mxu0 %v1553
        %1568 = vmatmul.bf16.gmra.mxu0 %v1558
        %v1569 = vpop.f32.mrf.mxu0
        %v1570 = vadd.f32 %v1543, %v1569
        %v1571 = vpop.f32.mrf.mxu0
        %1572 = vdwg.mxu0
        %v1573 = vld [vmem:[#allocation14] sm:$0xf]
        %v1574 = vld [vmem:[#allocation14 + $0x4] sm:$0xf]
        %v1575 = vld [vmem:[#allocation14 + $0x8] sm:$0xf]
        %v1576 = vld [vmem:[#allocation14 + $0xc] sm:$0xf]
        %v1577 = vld [vmem:[#allocation16] sm:$0x1]
        %v1579 = vperm.slane %v1577, 0
        %v1583 = vunpack.c.l.b16 %v1099
        %v1584 = vunpack.c.l.b16 %v1100
        %v1585 = vpack.c.b16 %v1584, %v1583
        %v1590 = vunpack.c.l.b16 %v1573
        %v1591 = vunpack.c.l.b16 %v1574
        %v1592 = vunpack.c.l.b16 %v1575
        %v1593 = vunpack.c.l.b16 %v1576
        %v1594 = vpack.c.b16 %v1591, %v1590
        %v1595 = vpack.c.b16 %v1593, %v1592
        %v1599 = vsel %vm1132, %v1585, 0
        %1601 = vmatpush.bf16.msra.mxu0 0
        %1602 = vmatpush.bf16.msra.mxu0 0
        %1603 = vmatpush.bf16.msra.mxu0 0
        %1604 = vmatpush.bf16.msra.mxu0 0
        %1605 = vmatpush.bf16.msra.mxu0 0
        %1606 = vmatpush.bf16.msra.mxu0 0
        %1607 = vmatpush.bf16.msra.mxu0 %v1595
        %1608 = vmatpush.bf16.msra.mxu0 %v1594
        %1609 = vmatmul.bf16.gmra.mxu0 %v1599
        %v1610 = vpop.f32.mrf.mxu0
        %v1611 = vadd.f32 %v1579, %v1610
        %v1612 = vpop.f32.mrf.mxu0
        %v1613 = vadd.f32 %v1579, %v1612
        %1614 = vdwg.mxu0
        %v1615 = vpack.c.bf16 %v1570, %v1570
        %1617 = vrot.lane.b32.xlu0 %v1615, 120
        %v1618 = vpop.permute.xlu0 %1617
        %1619 = vrot.lane.b32.xlu0 %v1615, 112
        %v1620 = vpop.permute.xlu0 %1619
        %1621 = vrot.lane.b32.xlu0 %v1615, 104
        %v1622 = vpop.permute.xlu0 %1621
        %v1623 = vpack.c.bf16 %v1611, %v1611
        %v1624 = vpack.c.bf16 %v1613, %v1613
        %1627 = vrot.lane.b32.xlu0 %v1623, 120
        %v1628 = vpop.permute.xlu0 %1627
        %1629 = vrot.lane.b32.xlu0 %v1624, 120
        %v1630 = vpop.permute.xlu0 %1629
        %1631 = vrot.lane.b32.xlu0 %v1623, 112
        %v1632 = vpop.permute.xlu0 %1631
        %1633 = vrot.lane.b32.xlu0 %v1624, 112
        %v1634 = vpop.permute.xlu0 %1633
        %1635 = vrot.lane.b32.xlu0 %v1623, 104
        %v1636 = vpop.permute.xlu0 %1635
        %1637 = vrot.lane.b32.xlu0 %v1624, 104
        %v1638 = vpop.permute.xlu0 %1637
        %v1640 = vperm.slane %v1101, 0
        %v1642 = vunpack.c.l.b16 %v1623
        %v1643 = vunpack.c.l.b16 %v1624
        %v1644 = vpack.c.b16 %v1643, %v1642
        %v1646 = vsel %vm1201, %v1615, 0
        %v1649 = vsel %vm1201, %v1644, 0
        %1651 = vmatpush.bf16.xpose.msra.mxu0 0
        %1652 = vmatpush.bf16.xpose.msra.mxu0 0
        %1653 = vmatpush.bf16.xpose.msra.mxu0 0
        %1654 = vmatpush.bf16.xpose.msra.mxu0 0
        %1655 = vmatpush.bf16.xpose.msra.mxu0 0
        %1656 = vmatpush.bf16.xpose.msra.mxu0 0
        %1657 = vmatpush.bf16.xpose.msra.mxu0 0
        %1658 = vmatpush.bf16.xpose.msra.mxu0 %v1649
        %1659 = vmatmul.bf16.gmra.mxu0 %v1646
        %v1660 = vpop.f32.mrf.mxu0
        %v1661 = vadd.f32 %v1640, %v1660
        %v1662 = vpop.f32.mrf.mxu0
        %1663 = vdwg.mxu0
        %v1664 = vunpack.c.l.b16 %v1628
        %v1665 = vunpack.c.l.b16 %v1630
        %v1666 = vpack.c.b16 %v1665, %v1664
        %v1668 = vsel %vm1201, %v1618, 0
        %v1671 = vsel %vm1201, %v1666, 0
        %1673 = vmatpush.bf16.xpose.msra.mxu0 0
        %1674 = vmatpush.bf16.xpose.msra.mxu0 0
        %1675 = vmatpush.bf16.xpose.msra.mxu0 0
        %1676 = vmatpush.bf16.xpose.msra.mxu0 0
        %1677 = vmatpush.bf16.xpose.msra.mxu0 0
        %1678 = vmatpush.bf16.xpose.msra.mxu0 0
        %1679 = vmatpush.bf16.xpose.msra.mxu0 0
        %1680 = vmatpush.bf16.xpose.msra.mxu0 %v1671
        %1681 = vmatmul.bf16.gmra.mxu0 %v1668
        %v1682 = vpop.f32.mrf.mxu0
        %v1683 = vadd.f32 %v1640, %v1682
        %v1684 = vpop.f32.mrf.mxu0
        %1685 = vdwg.mxu0
        %v1686 = vunpack.c.l.b16 %v1632
        %v1687 = vunpack.c.l.b16 %v1634
        %v1688 = vpack.c.b16 %v1687, %v1686
        %v1690 = vsel %vm1201, %v1620, 0
        %v1693 = vsel %vm1201, %v1688, 0
        %1695 = vmatpush.bf16.xpose.msra.mxu0 0
        %1696 = vmatpush.bf16.xpose.msra.mxu0 0
        %1697 = vmatpush.bf16.xpose.msra.mxu0 0
        %1698 = vmatpush.bf16.xpose.msra.mxu0 0
        %1699 = vmatpush.bf16.xpose.msra.mxu0 0
        %1700 = vmatpush.bf16.xpose.msra.mxu0 0
        %1701 = vmatpush.bf16.xpose.msra.mxu0 0
        %1702 = vmatpush.bf16.xpose.msra.mxu0 %v1693
        %1703 = vmatmul.bf16.gmra.mxu0 %v1690
        %v1704 = vpop.f32.mrf.mxu0
        %v1705 = vadd.f32 %v1640, %v1704
        %v1706 = vpop.f32.mrf.mxu0
        %1707 = vdwg.mxu0
        %v1708 = vunpack.c.l.b16 %v1636
        %v1709 = vunpack.c.l.b16 %v1638
        %v1710 = vpack.c.b16 %v1709, %v1708
        %v1712 = vsel %vm1201, %v1622, 0
        %v1715 = vsel %vm1201, %v1710, 0
        %1717 = vmatpush.bf16.xpose.msra.mxu0 0
        %1718 = vmatpush.bf16.xpose.msra.mxu0 0
        %1719 = vmatpush.bf16.xpose.msra.mxu0 0
        %1720 = vmatpush.bf16.xpose.msra.mxu0 0
        %1721 = vmatpush.bf16.xpose.msra.mxu0 0
        %1722 = vmatpush.bf16.xpose.msra.mxu0 0
        %1723 = vmatpush.bf16.xpose.msra.mxu0 0
        %1724 = vmatpush.bf16.xpose.msra.mxu0 %v1715
        %1725 = vmatmul.bf16.gmra.mxu0 %v1712
        %v1726 = vpop.f32.mrf.mxu0
        %v1727 = vadd.f32 %v1640, %v1726
        %v1728 = vpop.f32.mrf.mxu0
        %1729 = vdwg.mxu0
        %v1730 = vsel %vm1432, %v1661, -inf
        %1731 = vmax.xlane.f32.xlu0 %v1730
        %v1732 = vpop.xlane.xlu0 %1731
        %v1733 = vsel %vm1432, %v1683, -inf
        %1734 = vmax.xlane.f32.xlu0 %v1733
        %v1735 = vpop.xlane.xlu0 %1734
        %v1736 = vsel %vm1432, %v1705, -inf
        %1737 = vmax.xlane.f32.xlu0 %v1736
        %v1738 = vpop.xlane.xlu0 %1737
        %v1739 = vsel %vm1432, %v1727, -inf
        %1740 = vmax.xlane.f32.xlu0 %v1739
        %v1741 = vpop.xlane.xlu0 %1740
        %v1742 = vsub.f32 %v1661, %v1732
        %v1743 = vsub.f32 %v1683, %v1735
        %v1744 = vsub.f32 %v1705, %v1738
        %v1745 = vsub.f32 %v1727, %v1741
        %v1746 = vmul.f32 %v1742, 1.442695
        %v1747 = vpow.pop %v1746
        %v1748 = vmul.f32 %v1743, 1.442695
        %v1749 = vpow.pop %v1748
        %v1750 = vmul.f32 %v1744, 1.442695
        %v1751 = vpow.pop %v1750
        %v1752 = vmul.f32 %v1745, 1.442695
        %v1753 = vpow.pop %v1752
        %v1754 = vsel %vm1432, %v1747, 0.0
        %1755 = vadd.xlane.f32.xlu0 %v1754
        %v1756 = vpop.xlane.xlu0 %1755
        %v1757 = vsel %vm1432, %v1749, 0.0
        %1758 = vadd.xlane.f32.xlu0 %v1757
        %v1759 = vpop.xlane.xlu0 %1758
        %v1760 = vsel %vm1432, %v1751, 0.0
        %1761 = vadd.xlane.f32.xlu0 %v1760
        %v1762 = vpop.xlane.xlu0 %1761
        %v1763 = vsel %vm1432, %v1753, 0.0
        %1764 = vadd.xlane.f32.xlu0 %v1763
        %v1765 = vpop.xlane.xlu0 %1764
        %v1766 = vrcp.pop %v1756
        %v1767 = vrcp.pop %v1759
        %v1768 = vrcp.pop %v1762
        %v1769 = vrcp.pop %v1765
        %v1770 = vmul.f32 %v1747, %v1766
        %v1771 = vmul.f32 %v1749, %v1767
        %v1772 = vmul.f32 %v1751, %v1768
        %v1773 = vmul.f32 %v1753, %v1769
        %v1774 = vpack.c.bf16 %v1770, %v1770
        %v1775 = vpack.c.bf16 %v1771, %v1771
        %v1776 = vpack.c.bf16 %v1772, %v1772
        %v1777 = vpack.c.bf16 %v1773, %v1773
        %1778 = vrot.lane.b32.xlu0 %v1644, 96
        %v1779 = vpop.permute.xlu0 %1778
        %v1782 = vsel %vm1432, %v1774, 0
        %1784 = vmatpush.bf16.msra.mxu0 0
        %1785 = vmatpush.bf16.msra.mxu0 0
        %1786 = vmatpush.bf16.msra.mxu0 0
        %1787 = vmatpush.bf16.msra.mxu0 0
        %1788 = vmatpush.bf16.msra.mxu0 0
        %1789 = vmatpush.bf16.msra.mxu0 0
        %1790 = vmatpush.bf16.msra.mxu0 0
        %1791 = vmatpush.bf16.msra.mxu0 %v1779
        %1792 = vmatmul.bf16.gmra.mxu0 %v1782
        %v1793 = vpop.f32.mrf.mxu0
        %v1794 = vadd.f32 0.0, %v1793
        %v1795 = vpop.f32.mrf.mxu0
        %1796 = vdwg.mxu0
        %1797 = vrot.lane.b32.xlu0 %v1666, 96
        %v1798 = vpop.permute.xlu0 %1797
        %v1801 = vsel %vm1432, %v1775, 0
        %1803 = vmatpush.bf16.msra.mxu0 0
        %1804 = vmatpush.bf16.msra.mxu0 0
        %1805 = vmatpush.bf16.msra.mxu0 0
        %1806 = vmatpush.bf16.msra.mxu0 0
        %1807 = vmatpush.bf16.msra.mxu0 0
        %1808 = vmatpush.bf16.msra.mxu0 0
        %1809 = vmatpush.bf16.msra.mxu0 0
        %1810 = vmatpush.bf16.msra.mxu0 %v1798
        %1811 = vmatmul.bf16.gmra.mxu0 %v1801
        %v1812 = vpop.f32.mrf.mxu0
        %v1813 = vadd.f32 0.0, %v1812
        %v1814 = vpop.f32.mrf.mxu0
        %1815 = vdwg.mxu0
        %1816 = vrot.lane.b32.xlu0 %v1688, 96
        %v1817 = vpop.permute.xlu0 %1816
        %v1820 = vsel %vm1432, %v1776, 0
        %1822 = vmatpush.bf16.msra.mxu0 0
        %1823 = vmatpush.bf16.msra.mxu0 0
        %1824 = vmatpush.bf16.msra.mxu0 0
        %1825 = vmatpush.bf16.msra.mxu0 0
        %1826 = vmatpush.bf16.msra.mxu0 0
        %1827 = vmatpush.bf16.msra.mxu0 0
        %1828 = vmatpush.bf16.msra.mxu0 0
        %1829 = vmatpush.bf16.msra.mxu0 %v1817
        %1830 = vmatmul.bf16.gmra.mxu0 %v1820
        %v1831 = vpop.f32.mrf.mxu0
        %v1832 = vadd.f32 0.0, %v1831
        %v1833 = vpop.f32.mrf.mxu0
        %1834 = vdwg.mxu0
        %1835 = vrot.lane.b32.xlu0 %v1710, 96
        %v1836 = vpop.permute.xlu0 %1835
        %v1839 = vsel %vm1432, %v1777, 0
        %1841 = vmatpush.bf16.msra.mxu0 0
        %1842 = vmatpush.bf16.msra.mxu0 0
        %1843 = vmatpush.bf16.msra.mxu0 0
        %1844 = vmatpush.bf16.msra.mxu0 0
        %1845 = vmatpush.bf16.msra.mxu0 0
        %1846 = vmatpush.bf16.msra.mxu0 0
        %1847 = vmatpush.bf16.msra.mxu0 0
        %1848 = vmatpush.bf16.msra.mxu0 %v1836
        %1849 = vmatmul.bf16.gmra.mxu0 %v1839
        %v1850 = vpop.f32.mrf.mxu0
        %v1851 = vadd.f32 0.0, %v1850
        %v1852 = vpop.f32.mrf.mxu0
        %1853 = vdwg.mxu0
        %1855 = vrot.lane.b32.xlu0 %v1813, 8
        %v1856 = vpop.permute.xlu0 %1855
        %1859 = vrot.lane.b32.xlu0 %v1832, 16
        %v1860 = vpop.permute.xlu0 %1859
        %1863 = vrot.lane.b32.xlu0 %v1851, 24
        %v1864 = vpop.permute.xlu0 %1863
        %v1866 = vsel %vm1201, %v1794, %v1856
        %v1867 = vsel %vm1432, %v1866, %v1860
        %v1868 = vsel %vm1434, %v1867, %v1864
        %v1869 = vpack.c.bf16 %v1868, %v1868
        %v1870 = vld [vmem:[#allocation17] sm:$0xf]
        %v1871 = vld [vmem:[#allocation17 + $0x4] sm:$0xf]
        %v1872 = vld [vmem:[#allocation17 + $0x8] sm:$0xf]
        %v1873 = vld [vmem:[#allocation17 + $0xc] sm:$0xf]
        %v1874 = vld [vmem:[#allocation19] sm:$0x1]
        %v1876 = vperm.slane %v1874, 0
        %v1882 = vunpack.c.l.b16 %v1870
        %v1883 = vunpack.c.l.b16 %v1871
        %v1884 = vunpack.c.l.b16 %v1872
        %v1885 = vunpack.c.l.b16 %v1873
        %v1886 = vpack.c.b16 %v1883, %v1882
        %v1887 = vpack.c.b16 %v1885, %v1884
        %v1891 = vsel %vm1132, %v1869, 0
        %1893 = vmatpush.bf16.msra.mxu0 0
        %1894 = vmatpush.bf16.msra.mxu0 0
        %1895 = vmatpush.bf16.msra.mxu0 0
        %1896 = vmatpush.bf16.msra.mxu0 0
        %1897 = vmatpush.bf16.msra.mxu0 0
        %1898 = vmatpush.bf16.msra.mxu0 0
        %1899 = vmatpush.bf16.msra.mxu0 %v1887
        %1900 = vmatpush.bf16.msra.mxu0 %v1886
        %1901 = vmatmul.bf16.gmra.mxu0 %v1891
        %v1902 = vpop.f32.mrf.mxu0
        %v1903 = vadd.f32 %v1876, %v1902
        %v1904 = vpop.f32.mrf.mxu0
        %1905 = vdwg.mxu0
        %v1906 = vadd.f32 %v1903, %v1535
        %v1907 = vld [vmem:[#allocation20] sm:$0x1]
        %v1908 = vld [vmem:[#allocation22] sm:$0x1]
        %v1909 = vsel %vm1132, %v1906, 0.0
        %1910 = vadd.xlane.f32.xlu0 %v1909
        %v1911 = vpop.xlane.xlu0 %1910
        %v1912 = vmul.f32 %v1911, %v1485
        %v1913 = vsub.f32 %v1906, %v1912
        %v1914 = vmul.f32 %v1913, %v1913
        %v1915 = vsel %vm1132, %v1914, 0.0
        %1916 = vadd.xlane.f32.xlu0 %v1915
        %v1917 = vpop.xlane.xlu0 %1916
        %v1918 = vmul.f32 %v1917, %v1498
        %v1920 = vperm.slane %v1907, 0
        %v1922 = vmul.f32 %v1920, %v1913
        %v1923 = vrsqrt.pop %v1918
        %v1924 = vmul.f32 %v1923, %v1918
        %v1925 = vmul.f32 %v1924, %v1923
        %v1926 = vmul.f32 0.5, %v1925
        %v1927 = vsub.f32 1.5, %v1926
        %v1928 = vmul.f32 %v1923, %v1927
        %v1929 = vmul.f32 %v1918, %v1928
        %vm1930 = vcmp.eq.f32.partialorder %v1918, inf
        %v1931 = vsel %vm1930, %v1918, %v1929
        %vm1932 = vcmp.eq.f32.partialorder %v1918, 0.0
        %v1933 = vand.u32 %v1918, 2147483648
        %v1934 = vsel %vm1932, %v1933, %v1931
        %v1935 = vadd.f32 %v1934, 1e-06
        %v1936 = vrcp.pop %v1935
        %v1937 = vmul.f32 %v1935, %v1936
        %v1938 = vsub.f32 1.0, %v1937
        %v1939 = vmul.f32 %v1936, %v1938
        %v1940 = vadd.f32 %v1936, %v1939
        %vm1941 = vweird.f32 %v1935
        %vm1942 = vweird.f32 %v1936
        %vm1943 = vmor %vm1941, %vm1942
        %v1944 = vsel %vm1943, %v1936, %v1940
        %v1945 = vand.u32 2147483647, %v1935
        %vm1946 = vcmp.eq.f32.partialorder %v1945, 8.507059e+37
        %v1947 = vand.u32 %v1935, 2147483648
        %v1948 = vor.u32 1.1754944e-38, %v1947
        %v1949 = vsel %vm1946, %v1948, %v1944
        %v1950 = vmul.f32 %v1922, %v1949
        %v1952 = vperm.slane %v1908, 0
        %v1954 = vadd.f32 %v1950, %v1952
        %v1955 = vpack.c.bf16 %v1954, %v1954
        %v1956 = vld [vmem:[#allocation23] sm:$0xf]
        %v1957 = vld [vmem:[#allocation23 + $0x4] sm:$0xf]
        %v1958 = vld [vmem:[#allocation23 + $0x8] sm:$0xf]
        %v1959 = vld [vmem:[#allocation23 + $0xc] sm:$0xf]
        %v1960 = vld [vmem:[#allocation25] sm:$0x1]
        %v1962 = vperm.slane %v1960, 0
        %v1968 = vunpack.c.l.b16 %v1956
        %v1969 = vunpack.c.l.b16 %v1957
        %v1970 = vunpack.c.l.b16 %v1958
        %v1971 = vunpack.c.l.b16 %v1959
        %v1972 = vpack.c.b16 %v1969, %v1968
        %v1973 = vpack.c.b16 %v1971, %v1970
        %v1977 = vsel %vm1132, %v1955, 0
        %1979 = vmatpush.bf16.msra.mxu0 0
        %1980 = vmatpush.bf16.msra.mxu0 0
        %1981 = vmatpush.bf16.msra.mxu0 0
        %1982 = vmatpush.bf16.msra.mxu0 0
        %1983 = vmatpush.bf16.msra.mxu0 0
        %1984 = vmatpush.bf16.msra.mxu0 0
        %1985 = vmatpush.bf16.msra.mxu0 %v1973
        %1986 = vmatpush.bf16.msra.mxu0 %v1972
        %1987 = vmatmul.bf16.gmra.mxu0 %v1977
        %v1988 = vpop.f32.mrf.mxu0
        %v1989 = vadd.f32 %v1962, %v1988
        %v1990 = vpop.f32.mrf.mxu0
        %1991 = vdwg.mxu0
        %v1992 = vmax.f32 %v1989, 0.0
        %v1993 = vpack.c.bf16 %v1992, %v1992
        %v1994 = vld [vmem:[%s22] sm:$0xf]
        %v1995 = vld [vmem:[%s22 + $0x4] sm:$0xf]
        %v1996 = vld [vmem:[%s22 + $0x8] sm:$0xf]
        %v1997 = vld [vmem:[%s22 + $0xc] sm:$0xf]
        %v1998 = vld [vmem:[%s22 + $0x10] sm:$0xf]
        %v1999 = vld [vmem:[%s22 + $0x14] sm:$0xf]
        %v2000 = vld [vmem:[%s22 + $0x18] sm:$0xf]
        %v2001 = vld [vmem:[%s22 + $0x1c] sm:$0xf]
        %v2002 = vld [vmem:[%s23] sm:$0x1]
        %v2004 = vperm.slane %v2002, 0
        %v2014 = vunpack.c.l.b16 %v1994
        %v2015 = vunpack.c.l.b16 %v1995
        %v2016 = vunpack.c.l.b16 %v1996
        %v2017 = vunpack.c.l.b16 %v1997
        %v2018 = vunpack.c.l.b16 %v1998
        %v2019 = vunpack.c.l.b16 %v1999
        %v2020 = vunpack.c.l.b16 %v2000
        %v2021 = vunpack.c.l.b16 %v2001
        %v2022 = vpack.c.b16 %v2015, %v2014
        %v2023 = vpack.c.b16 %v2017, %v2016
        %v2024 = vpack.c.b16 %v2019, %v2018
        %v2025 = vpack.c.b16 %v2021, %v2020
        %vm2030 = vcmask 523264
        %v2032 = vsel %vm2030, %v1993, 0
        %2034 = vmatpush.bf16.msra.mxu0 0
        %2035 = vmatpush.bf16.msra.mxu0 0
        %2036 = vmatpush.bf16.msra.mxu0 0
        %2037 = vmatpush.bf16.msra.mxu0 0
        %2038 = vmatpush.bf16.msra.mxu0 %v2025
        %2039 = vmatpush.bf16.msra.mxu0 %v2024
        %2040 = vmatpush.bf16.msra.mxu0 %v2023
        %2041 = vmatpush.bf16.msra.mxu0 %v2022
        %2042 = vmatmul.bf16.gmra.mxu0 %v2032
        %v2043 = vpop.f32.mrf.mxu0
        %v2044 = vadd.f32 %v2004, %v2043
        %v2045 = vpop.f32.mrf.mxu0
        %2046 = vdwg.mxu0
        %v2047 = vadd.f32 %v2044, %v1954
        %v2048 = vld [vmem:[%s24] sm:$0x1]
        %v2049 = vld [vmem:[%s25] sm:$0x1]
        %v2050 = vsel %vm1132, %v2047, 0.0
        %2051 = vadd.xlane.f32.xlu0 %v2050
        %v2052 = vpop.xlane.xlu0 %2051
        %v2053 = vmul.f32 %v2052, %v1485
        %v2054 = vsub.f32 %v2047, %v2053
        %v2055 = vmul.f32 %v2054, %v2054
        %v2056 = vsel %vm1132, %v2055, 0.0
        %2057 = vadd.xlane.f32.xlu0 %v2056
        %v2058 = vpop.xlane.xlu0 %2057
        %v2059 = vmul.f32 %v2058, %v1498
        %v2061 = vperm.slane %v2048, 0
        %v2063 = vmul.f32 %v2061, %v2054
        %v2064 = vrsqrt.pop %v2059
        %v2065 = vmul.f32 %v2064, %v2059
        %v2066 = vmul.f32 %v2065, %v2064
        %v2067 = vmul.f32 0.5, %v2066
        %v2068 = vsub.f32 1.5, %v2067
        %v2069 = vmul.f32 %v2064, %v2068
        %v2070 = vmul.f32 %v2059, %v2069
        %vm2071 = vcmp.eq.f32.partialorder %v2059, inf
        %v2072 = vsel %vm2071, %v2059, %v2070
        %vm2073 = vcmp.eq.f32.partialorder %v2059, 0.0
        %v2074 = vand.u32 %v2059, 2147483648
        %v2075 = vsel %vm2073, %v2074, %v2072
        %v2076 = vadd.f32 %v2075, 1e-06
        %v2077 = vrcp.pop %v2076
        %v2078 = vmul.f32 %v2076, %v2077
        %v2079 = vsub.f32 1.0, %v2078
        %v2080 = vmul.f32 %v2077, %v2079
        %v2081 = vadd.f32 %v2077, %v2080
        %vm2082 = vweird.f32 %v2076
        %vm2083 = vweird.f32 %v2077
        %vm2084 = vmor %vm2082, %vm2083
        %v2085 = vsel %vm2084, %v2077, %v2081
        %v2086 = vand.u32 2147483647, %v2076
        %vm2087 = vcmp.eq.f32.partialorder %v2086, 8.507059e+37
        %v2088 = vand.u32 %v2076, 2147483648
        %v2089 = vor.u32 1.1754944e-38, %v2088
        %v2090 = vsel %vm2087, %v2089, %v2085
        %v2091 = vmul.f32 %v2063, %v2090
        %v2093 = vperm.slane %v2049, 0
        %v2095 = vadd.f32 %v2091, %v2093
        %2096 = vst.msk [vmem:[%s1075] sm:$0xff] %vm1132, %v2095
        %s2097 = sand.u32 %s638, 1
        %s2098 = scalar_lea.sflag [#allocation4], %s2097
        %s2099 = sand.u32 %s638, 1
        %s2100 = smul.addr %s2099, 8
        %s2101 = scalar_lea.vmem [#allocation26], %s2100
        // Predicated region
        $region185: #{tpu_custom_call.1} parent=123 // pred_check
          %p2102 = pneg %p648
        $region186: #{tpu_custom_call.1} parent=123 // pred_check_branch
          %2104 = sbr.rel (%p2102) target = $region188
        $region187: #{tpu_custom_call.1} parent=123 // pred_region
          %2106 = vsyncadd %s2098, 0
          %s2107 = sadd.s32 %s53, %s52
          %s2108 = smul.addr %s2107, 8
          %s2109 = scalar_lea.hbm %s26, %s2108
          %s2111 = sshll.u32 %s2101, 4
          %s2112 = int_to_ptr.vmem [resolvable:$true] %s2111
          %s2113 = sshll.u32 %s2109, 4
          %s2114 = int_to_ptr.hbm [resolvable:$true] %s2113
          %2116 = dma.vmem_to_hbm [thread:$0]  %s2112, 128, %s2114, %s2098
        $region188: #{tpu_custom_call.1} parent=123 // pred_fallthru
          _
      $region124: #{tpu_custom_call.1} parent=5 // pred_fallthru
        _
      %p2117 = scmp.le.s32.totalorder 2, %s43
      // Predicated region
      $region189: #{tpu_custom_call.1} parent=5 // pred_check
        %p2118 = pneg %p2117
      $region190: #{tpu_custom_call.1} parent=5 // pred_check_branch
        %2120 = sbr.rel (%p2118) target = $region192
      $region191: #{tpu_custom_call.1} parent=5 // pred_region
        %s2121 = ssub.s32 %s43, 2
        // Predicated region
        $region193: #{tpu_custom_call.1} parent=191 // pred_check
          %p2122 = pneg %p654
        $region194: #{tpu_custom_call.1} parent=191 // pred_check_branch
          %2124 = sbr.rel (%p2122) target = $region196
        $region195: #{tpu_custom_call.1} parent=191 // pred_region
          %s2125 = sand.u32 %s639, 1
          %s2126 = scalar_lea.sflag [#allocation4], %s2125
          %s2127 = sand.u32 %s639, 1
          %s2128 = smul.addr %s2127, 8
          %s2129 = scalar_lea.vmem [#allocation26], %s2128
          %2131 = dma.done %s2126, 128
        $region196: #{tpu_custom_call.1} parent=191 // pred_fallthru
          _
      $region192: #{tpu_custom_call.1} parent=5 // pred_fallthru
        _
    $region6: #{tpu_custom_call.1} parent=1 // loop_footer
      %s47 = sadd.s32 1, %s43
    $region7: #{tpu_custom_call.1} parent=1 // loop_footer_branch
      %42 = sbr.rel target = $region3
    $region8: #{tpu_custom_call.1} parent=1 // loop_exit
      _
    %2132 = vsyncpa [#allocation3], 1
    %s2133 = scalar_lea.sflag [#allocation3], 1
    %2134 = vsyncpa %s2133, 1
    %2135 = vsyncpa [#allocation6], 1
    %2136 = vsyncpa [#allocation9], 1
    %2137 = vsyncpa [#allocation12], 1
    %2138 = vsyncpa [#allocation15], 1
    %2139 = vsyncpa [#allocation18], 1
    %2140 = vsyncpa [#allocation21], 1
    %2141 = vsyncpa [#allocation24], 1
    %2142 = vsyncpa [#allocation4], 1
    %s2143 = scalar_lea.sflag [#allocation4], 1
    %2144 = vsyncpa %s2143, 1

// kernel: tpu_custom_call.1
$region0: #{tpu_custom_call.1}
  #allocation0 [shape = 'u32[]', space=smem, size = 0x4, offset = 0x4, fixed_abs, tag = 'smem constant byte address 0x4 - core index']
  #allocation1 [shape = 'u32[72,128]{1,0:T(1,128)}', space=vmem, size = 0x9000, scoped, tag = 'internal scratch']
  %s0 = inlined_call_operand.vmem [shape: f32[2,8,32], index: 0, kind: input, shape index: {}]
  %s1 = inlined_call_operand.vmem [shape: f32[2,8,32], index: 1, kind: input, shape index: {}]
  %s2 = inlined_call_operand.vmem [shape: bf16[2,16,32], index: 2, kind: input, shape index: {}]
  %s3 = inlined_call_operand.vmem [shape: f32[2,1,16], index: 3, kind: input, shape index: {}]
  %s4 = inlined_call_operand.hbm [shape: bf16[32,32], index: 4, kind: input, shape index: {}]
  %s5 = inlined_call_operand.vmem [shape: f32[1,32], index: 5, kind: input, shape index: {}]
  %s6 = inlined_call_operand.hbm [shape: bf16[32,64], index: 6, kind: input, shape index: {}]
  %s7 = inlined_call_operand.vmem [shape: f32[1,64], index: 7, kind: input, shape index: {}]
  %s8 = inlined_call_operand.hbm [shape: bf16[32,32], index: 8, kind: input, shape index: {}]
  %s9 = inlined_call_operand.vmem [shape: f32[1,32], index: 9, kind: input, shape index: {}]
  %s10 = inlined_call_operand.hbm [shape: f32[1,32], index: 10, kind: input, shape index: {}]
  %s11 = inlined_call_operand.hbm [shape: f32[1,32], index: 11, kind: input, shape index: {}]
  %s12 = inlined_call_operand.hbm [shape: bf16[32,32], index: 12, kind: input, shape index: {}]
  %s13 = inlined_call_operand.hbm [shape: f32[1,32], index: 13, kind: input, shape index: {}]
  %s14 = inlined_call_operand.hbm [shape: bf16[32,64], index: 14, kind: input, shape index: {}]
  %s15 = inlined_call_operand.hbm [shape: f32[1,64], index: 15, kind: input, shape index: {}]
  %s16 = inlined_call_operand.hbm [shape: bf16[32,32], index: 16, kind: input, shape index: {}]
  %s17 = inlined_call_operand.hbm [shape: f32[1,32], index: 17, kind: input, shape index: {}]
  %s18 = inlined_call_operand.hbm [shape: f32[1,32], index: 18, kind: input, shape index: {}]
  %s19 = inlined_call_operand.hbm [shape: f32[1,32], index: 19, kind: input, shape index: {}]
  %s20 = inlined_call_operand.hbm [shape: bf16[32,64], index: 20, kind: input, shape index: {}]
  %s21 = inlined_call_operand.hbm [shape: f32[1,64], index: 21, kind: input, shape index: {}]
  %s22 = inlined_call_operand.vmem [shape: bf16[64,32], index: 22, kind: input, shape index: {}]
  %s23 = inlined_call_operand.vmem [shape: f32[1,32], index: 23, kind: input, shape index: {}]
  %s24 = inlined_call_operand.vmem [shape: f32[1,32], index: 24, kind: input, shape index: {}]
  %s25 = inlined_call_operand.vmem [shape: f32[1,32], index: 25, kind: input, shape index: {}]
  %s26 = inlined_call_operand.hbm [shape: f32[2,8,32], index: 26, kind: output, shape index: {}]
  %s27 = sld [smem:[#allocation0]]
  $region197: #{tpu_custom_call.1} parent=0
    _
  %s29 = ssub.s32 1, %s27
  %s30 = scalar_select 0, %s29, %s27
  $region1: #{tpu_custom_call.1} parent=0
    #allocation2 [shape = 'u8[8192]{0}', space=vmem, size = 0x2000, scoped, tag = 'input window, operand 4, single buffered']
    #allocation3 [shape = 's32[2]{0}', space=sflag, size = 0x8, scoped, tag = 'scoped memory for tpu_custom_call.1']
    #allocation4 [shape = 's32[2]{0}', space=sflag, size = 0x8, scoped, tag = 'scoped memory for tpu_custom_call.1']
    #allocation5 [shape = 'u8[8192]{0}', space=vmem, size = 0x2000, scoped, tag = 'input window, operand 6, single buffered']
    #allocation6 [shape = 's32[1]{0}', space=sflag, size = 0x4, scoped, tag = 'scoped memory for tpu_custom_call.1']
    #allocation7 [shape = 'u8[8192]{0}', space=vmem, size = 0x2000, scoped, tag = 'input window, operand 8, single buffered']
    #allocation8 [shape = 'u8[512]{0}', space=vmem, size = 0x400, scoped, tag = 'input window, operand 10, single buffered']
    #allocation9 [shape = 's32[1]{0}', space=sflag, size = 0x4, scoped, tag = 'scoped memory for tpu_custom_call.1']
    #allocation10 [shape = 'u8[512]{0}', space=vmem, size = 0x400, scoped, tag = 'input window, operand 11, single buffered']
    #allocation11 [shape = 'u8[8192]{0}', space=vmem, size = 0x2000, scoped, tag = 'input window, operand 12, single buffered']
    #allocation12 [shape = 's32[1]{0}', space=sflag, size = 0x4, scoped, tag = 'scoped memory for tpu_custom_call.1']
    #allocation13 [shape = 'u8[512]{0}', space=vmem, size = 0x400, scoped, tag = 'input window, operand 13, single buffered']
    #allocation14 [shape = 'u8[8192]{0}', space=vmem, size = 0x2000, scoped, tag = 'input window, operand 14, single buffered']
    #allocation15 [shape = 's32[1]{0}', space=sflag, size = 0x4, scoped, tag = 'scoped memory for tpu_custom_call.1']
    #allocation16 [shape = 'u8[512]{0}', space=vmem, size = 0x400, scoped, tag = 'input window, operand 15, single buffered']
    #allocation17 [shape = 'u8[8192]{0}', space=vmem, size = 0x2000, scoped, tag = 'input window, operand 16, single buffered']
    #allocation18 [shape = 's32[1]{0}', space=sflag, size = 0x4, scoped, tag = 'scoped memory for tpu_custom_call.1']
    #allocation19 [shape = 'u8[512]{0}', space=vmem, size = 0x400, scoped, tag = 'input window, operand 17, single buffered']
    #allocation20 [shape = 'u8[512]{0}', space=vmem, size = 0x400, scoped, tag = 'input window, operand 18, single buffered']
    #allocation21 [shape = 's32[1]{0}', space=sflag, size = 0x4, scoped, tag = 'scoped memory for tpu_custom_call.1']
    #allocation22 [shape = 'u8[512]{0}', space=vmem, size = 0x400, scoped, tag = 'input window, operand 19, single buffered']
    #allocation23 [shape = 'u8[8192]{0}', space=vmem, size = 0x2000, scoped, tag = 'input window, operand 20, single buffered']
    #allocation24 [shape = 's32[1]{0}', space=sflag, size = 0x4, scoped, tag = 'scoped memory for tpu_custom_call.1']
    #allocation25 [shape = 'u8[512]{0}', space=vmem, size = 0x400, scoped, tag = 'input window, operand 21, single buffered']
    #allocation26 [shape = 'u8[8192]{0}', space=vmem, size = 0x2000, scoped, tag = 'output window, operand 0']
    %31 = vsyncpa [#allocation3], 0
    %32 = vsyncpa [#allocation6], 0
    %33 = vsyncpa [#allocation9], 0
    %34 = vsyncpa [#allocation12], 0
    %35 = vsyncpa [#allocation15], 0
    %36 = vsyncpa [#allocation18], 0
    %37 = vsyncpa [#allocation21], 0
    %38 = vsyncpa [#allocation24], 0
    %39 = vsyncpa [#allocation4], 0
    %s40 = scalar_lea.sflag [#allocation4], 1
    %41 = vsyncpa %s40, 0
    loop: start=0, step=1, limit=4
    $region2: #{tpu_custom_call.1} parent=1 // loop_pre_header
      _
    $region3: #{tpu_custom_call.1} parent=1 // loop_header
      %s43 = sphi 0, %s47
      %p44 = scmp.ge.s32.totalorder %s43, 4
      %s50 = sphi 0, %s62
      %s51 = sphi 0, %s58
      %s52 = sphi 0, %s50
      %s53 = sphi 0, %s51
      %s54 = sphi 0, %s52
      %s55 = sphi 0, %s53
      %s67 = sphi 0, %s69
      %s70 = sphi 0, %s67
      %s71 = sphi 0, %s70
      %s87 = sphi 0, %s71
      %s93 = sphi 0, %s95
      %s96 = sphi 0, %s93
      %s97 = sphi 0, %s96
      %s113 = sphi 0, %s97
      %s119 = sphi 0, %s121
      %s122 = sphi 0, %s119
      %s123 = sphi 0, %s122
      %s139 = sphi 0, %s123
      %s145 = sphi 0, %s147
      %s148 = sphi 0, %s145
      %s149 = sphi 0, %s148
      %s165 = sphi 0, %s149
      %s169 = sphi 0, %s169
      %s171 = sphi 0, %s169
      %s172 = sphi 0, %s171
      %s186 = sphi 0, %s172
      %s190 = sphi 0, %s190
      %s192 = sphi 0, %s190
      %s193 = sphi 0, %s192
      %s207 = sphi 0, %s193
      %s211 = sphi 0, %s211
      %s213 = sphi 0, %s211
      %s214 = sphi 0, %s213
      %s228 = sphi 0, %s214
      %s232 = sphi 0, %s232
      %s234 = sphi 0, %s232
      %s235 = sphi 0, %s234
      %s249 = sphi 0, %s235
      %s253 = sphi 0, %s253
      %s255 = sphi 0, %s253
      %s256 = sphi 0, %s255
      %s270 = sphi 0, %s256
      %s274 = sphi 0, %s274
      %s276 = sphi 0, %s274
      %s277 = sphi 0, %s276
      %s291 = sphi 0, %s277
      %s295 = sphi 0, %s295
      %s297 = sphi 0, %s295
      %s298 = sphi 0, %s297
      %s312 = sphi 0, %s298
      %s316 = sphi 0, %s316
      %s318 = sphi 0, %s316
      %s319 = sphi 0, %s318
      %s333 = sphi 0, %s319
      %s337 = sphi 0, %s337
      %s339 = sphi 0, %s337
      %s340 = sphi 0, %s339
      %s354 = sphi 0, %s340
      %s358 = sphi 0, %s358
      %s360 = sphi 0, %s358
      %s361 = sphi 0, %s360
      %s375 = sphi 0, %s361
      %s379 = sphi 0, %s379
      %s381 = sphi 0, %s379
      %s382 = sphi 0, %s381
      %s396 = sphi 0, %s382
      %s400 = sphi 0, %s400
      %s402 = sphi 0, %s400
      %s403 = sphi 0, %s402
      %s417 = sphi 0, %s403
      %s421 = sphi 0, %s421
      %s423 = sphi 0, %s421
      %s424 = sphi 0, %s423
      %s438 = sphi 0, %s424
      %s442 = sphi 0, %s442
      %s444 = sphi 0, %s442
      %s445 = sphi 0, %s444
      %s459 = sphi 0, %s445
      %s463 = sphi 0, %s463
      %s465 = sphi 0, %s463
      %s466 = sphi 0, %s465
      %s480 = sphi 0, %s466
      %s484 = sphi 0, %s484
      %s486 = sphi 0, %s484
      %s487 = sphi 0, %s486
      %s501 = sphi 0, %s487
      %s505 = sphi 0, %s505
      %s507 = sphi 0, %s505
      %s508 = sphi 0, %s507
      %s522 = sphi 0, %s508
      %s526 = sphi 0, %s526
      %s528 = sphi 0, %s526
      %s529 = sphi 0, %s528
      %s543 = sphi 0, %s529
      %s547 = sphi 0, %s547
      %s549 = sphi 0, %s547
      %s550 = sphi 0, %s549
      %s564 = sphi 0, %s550
      %s568 = sphi 0, %s568
      %s570 = sphi 0, %s568
      %s571 = sphi 0, %s570
      %s585 = sphi 0, %s571
      %s589 = sphi 0, %s589
      %s591 = sphi 0, %s589
      %s592 = sphi 0, %s591
      %s606 = sphi 0, %s592
      %s610 = sphi 0, %s610
      %s612 = sphi 0, %s610
      %s613 = sphi 0, %s612
      %s627 = sphi 0, %s613
      %s635 = sphi 0, %s637
      %s638 = sphi 0, %s635
      %s639 = sphi 0, %s638
      %s655 = sphi 0, %s639
    $region4: #{tpu_custom_call.1} parent=1 // loop_header_branch
      %46 = sbr.rel (%p44) target = $region8
    $region5: #{tpu_custom_call.1} parent=1 // loop_body
      %s48 = ssub.s32 %s43, 1
      %s49 = ssub.s32 %s43, 2
      %s56 = sadd.s32 1, %s51
      %p57 = scmp.ge.s32.totalorder %s56, 1
      %s58 = scalar_select %p57, 0, %s56
      %s59 = sadd.s32 1, %s50
      %s60 = scalar_select %p57, %s59, %s50
      %p61 = scmp.ge.s32.totalorder %s60, 2
      %s62 = scalar_select %p61, 0, %s60
      %s63 = ssub.s32 %s50, %s62
      %s64 = ssub.s32 %s51, %s58
      %s65 = sor.u32 %s63, %s64
      %p66 = scmp.eq.s32.totalorder %s65, 0
      %s68 = sadd.s32 %s67, 1
      %s69 = scalar_select %p66, %s67, %s68
      %p72 = pneg %p66
      %p73 = scmp.eq.s32.totalorder %s43, 1
      %p74 = por %p72, %p73
      %p75 = scmp.ne.s32.totalorder %s67, %s70
      %p76 = scmp.eq.s32.totalorder %s43, 0
      %p77 = por %p75, %p76
      %p78 = scmp.ne.s32.totalorder %s67, %s70
      %p79 = scmp.eq.s32.totalorder %s48, 1
      %p80 = por %p78, %p79
      %p81 = scmp.ne.s32.totalorder %s70, %s71
      %p82 = scmp.eq.s32.totalorder %s48, 0
      %p83 = por %p81, %p82
      %p84 = scmp.ne.s32.totalorder %s70, %s71
      %p85 = scmp.eq.s32.totalorder %s49, 1
      %p86 = por %p84, %p85
      %p88 = scmp.ne.s32.totalorder %s71, %s87
      %p89 = scmp.eq.s32.totalorder %s49, 0
      %p90 = por %p88, %p89
      %s91 = ssub.s32 %s50, %s62
      %p92 = scmp.eq.s32.totalorder %s91, 0
      %s94 = sadd.s32 %s93, 1
      %s95 = scalar_select %p92, %s93, %s94
      %p98 = pneg %p92
      %p99 = scmp.eq.s32.totalorder %s43, 1
      %p100 = por %p98, %p99
      %p101 = scmp.ne.s32.totalorder %s93, %s96
      %p102 = scmp.eq.s32.totalorder %s43, 0
      %p103 = por %p101, %p102
      %p104 = scmp.ne.s32.totalorder %s93, %s96
      %p105 = scmp.eq.s32.totalorder %s48, 1
      %p106 = por %p104, %p105
      %p107 = scmp.ne.s32.totalorder %s96, %s97
      %p108 = scmp.eq.s32.totalorder %s48, 0
      %p109 = por %p107, %p108
      %p110 = scmp.ne.s32.totalorder %s96, %s97
      %p111 = scmp.eq.s32.totalorder %s49, 1
      %p112 = por %p110, %p111
      %p114 = scmp.ne.s32.totalorder %s97, %s113
      %p115 = scmp.eq.s32.totalorder %s49, 0
      %p116 = por %p114, %p115
      %s117 = ssub.s32 %s50, %s62
      %p118 = scmp.eq.s32.totalorder %s117, 0
      %s120 = sadd.s32 %s119, 1
      %s121 = scalar_select %p118, %s119, %s120
      %p124 = pneg %p118
      %p125 = scmp.eq.s32.totalorder %s43, 1
      %p126 = por %p124, %p125
      %p127 = scmp.ne.s32.totalorder %s119, %s122
      %p128 = scmp.eq.s32.totalorder %s43, 0
      %p129 = por %p127, %p128
      %p130 = scmp.ne.s32.totalorder %s119, %s122
      %p131 = scmp.eq.s32.totalorder %s48, 1
      %p132 = por %p130, %p131
      %p133 = scmp.ne.s32.totalorder %s122, %s123
      %p134 = scmp.eq.s32.totalorder %s48, 0
      %p135 = por %p133, %p134
      %p136 = scmp.ne.s32.totalorder %s122, %s123
      %p137 = scmp.eq.s32.totalorder %s49, 1
      %p138 = por %p136, %p137
      %p140 = scmp.ne.s32.totalorder %s123, %s139
      %p141 = scmp.eq.s32.totalorder %s49, 0
      %p142 = por %p140, %p141
      %s143 = ssub.s32 %s50, %s62
      %p144 = scmp.eq.s32.totalorder %s143, 0
      %s146 = sadd.s32 %s145, 1
      %s147 = scalar_select %p144, %s145, %s146
      %p150 = pneg %p144
      %p151 = scmp.eq.s32.totalorder %s43, 1
      %p152 = por %p150, %p151
      %p153 = scmp.ne.s32.totalorder %s145, %s148
      %p154 = scmp.eq.s32.totalorder %s43, 0
      %p155 = por %p153, %p154
      %p156 = scmp.ne.s32.totalorder %s145, %s148
      %p157 = scmp.eq.s32.totalorder %s48, 1
      %p158 = por %p156, %p157
      %p159 = scmp.ne.s32.totalorder %s148, %s149
      %p160 = scmp.eq.s32.totalorder %s48, 0
      %p161 = por %p159, %p160
      %p162 = scmp.ne.s32.totalorder %s148, %s149
      %p163 = scmp.eq.s32.totalorder %s49, 1
      %p164 = por %p162, %p163
      %p166 = scmp.ne.s32.totalorder %s149, %s165
      %p167 = scmp.eq.s32.totalorder %s49, 0
      %p168 = por %p166, %p167
      %s170 = sadd.s32 %s169, 1
      %p173 = scmp.eq.s32.totalorder %s43, 1
      %p174 = scmp.ne.s32.totalorder %s169, %s171
      %p175 = scmp.eq.s32.totalorder %s43, 0
      %p176 = por %p174, %p175
      %p177 = scmp.ne.s32.totalorder %s169, %s171
      %p178 = scmp.eq.s32.totalorder %s48, 1
      %p179 = por %p177, %p178
      %p180 = scmp.ne.s32.totalorder %s171, %s172
      %p181 = scmp.eq.s32.totalorder %s48, 0
      %p182 = por %p180, %p181
      %p183 = scmp.ne.s32.totalorder %s171, %s172
      %p184 = scmp.eq.s32.totalorder %s49, 1
      %p185 = por %p183, %p184
      %p187 = scmp.ne.s32.totalorder %s172, %s186
      %p188 = scmp.eq.s32.totalorder %s49, 0
      %p189 = por %p187, %p188
      %s191 = sadd.s32 %s190, 1
      %p194 = scmp.eq.s32.totalorder %s43, 1
      %p195 = scmp.ne.s32.totalorder %s190, %s192
      %p196 = scmp.eq.s32.totalorder %s43, 0
      %p197 = por %p195, %p196
      %p198 = scmp.ne.s32.totalorder %s190, %s192
      %p199 = scmp.eq.s32.totalorder %s48, 1
      %p200 = por %p198, %p199
      %p201 = scmp.ne.s32.totalorder %s192, %s193
      %p202 = scmp.eq.s32.totalorder %s48, 0
      %p203 = por %p201, %p202
      %p204 = scmp.ne.s32.totalorder %s192, %s193
      %p205 = scmp.eq.s32.totalorder %s49, 1
      %p206 = por %p204, %p205
      %p208 = scmp.ne.s32.totalorder %s193, %s207
      %p209 = scmp.eq.s32.totalorder %s49, 0
      %p210 = por %p208, %p209
      %s212 = sadd.s32 %s211, 1
      %p215 = scmp.eq.s32.totalorder %s43, 1
      %p216 = scmp.ne.s32.totalorder %s211, %s213
      %p217 = scmp.eq.s32.totalorder %s43, 0
      %p218 = por %p216, %p217
      %p219 = scmp.ne.s32.totalorder %s211, %s213
      %p220 = scmp.eq.s32.totalorder %s48, 1
      %p221 = por %p219, %p220
      %p222 = scmp.ne.s32.totalorder %s213, %s214
      %p223 = scmp.eq.s32.totalorder %s48, 0
      %p224 = por %p222, %p223
      %p225 = scmp.ne.s32.totalorder %s213, %s214
      %p226 = scmp.eq.s32.totalorder %s49, 1
      %p227 = por %p225, %p226
      %p229 = scmp.ne.s32.totalorder %s214, %s228
      %p230 = scmp.eq.s32.totalorder %s49, 0
      %p231 = por %p229, %p230
      %s233 = sadd.s32 %s232, 1
      %p236 = scmp.eq.s32.totalorder %s43, 1
      %p237 = scmp.ne.s32.totalorder %s232, %s234
      %p238 = scmp.eq.s32.totalorder %s43, 0
      %p239 = por %p237, %p238
      %p240 = scmp.ne.s32.totalorder %s232, %s234
      %p241 = scmp.eq.s32.totalorder %s48, 1
      %p242 = por %p240, %p241
      %p243 = scmp.ne.s32.totalorder %s234, %s235
      %p244 = scmp.eq.s32.totalorder %s48, 0
      %p245 = por %p243, %p244
      %p246 = scmp.ne.s32.totalorder %s234, %s235
      %p247 = scmp.eq.s32.totalorder %s49, 1
      %p248 = por %p246, %p247
      %p250 = scmp.ne.s32.totalorder %s235, %s249
      %p251 = scmp.eq.s32.totalorder %s49, 0
      %p252 = por %p250, %p251
      %s254 = sadd.s32 %s253, 1
      %p257 = scmp.eq.s32.totalorder %s43, 1
      %p258 = scmp.ne.s32.totalorder %s253, %s255
      %p259 = scmp.eq.s32.totalorder %s43, 0
      %p260 = por %p258, %p259
      %p261 = scmp.ne.s32.totalorder %s253, %s255
      %p262 = scmp.eq.s32.totalorder %s48, 1
      %p263 = por %p261, %p262
      %p264 = scmp.ne.s32.totalorder %s255, %s256
      %p265 = scmp.eq.s32.totalorder %s48, 0
      %p266 = por %p264, %p265
      %p267 = scmp.ne.s32.totalorder %s255, %s256
      %p268 = scmp.eq.s32.totalorder %s49, 1
      %p269 = por %p267, %p268
      %p271 = scmp.ne.s32.totalorder %s256, %s270
      %p272 = scmp.eq.s32.totalorder %s49, 0
      %p273 = por %p271, %p272
      %s275 = sadd.s32 %s274, 1
      %p278 = scmp.eq.s32.totalorder %s43, 1
      %p279 = scmp.ne.s32.totalorder %s274, %s276
      %p280 = scmp.eq.s32.totalorder %s43, 0
      %p281 = por %p279, %p280
      %p282 = scmp.ne.s32.totalorder %s274, %s276
      %p283 = scmp.eq.s32.totalorder %s48, 1
      %p284 = por %p282, %p283
      %p285 = scmp.ne.s32.totalorder %s276, %s277
      %p286 = scmp.eq.s32.totalorder %s48, 0
      %p287 = por %p285, %p286
      %p288 = scmp.ne.s32.totalorder %s276, %s277
      %p289 = scmp.eq.s32.totalorder %s49, 1
      %p290 = por %p288, %p289
      %p292 = scmp.ne.s32.totalorder %s277, %s291
      %p293 = scmp.eq.s32.totalorder %s49, 0
      %p294 = por %p292, %p293
      %s296 = sadd.s32 %s295, 1
      %p299 = scmp.eq.s32.totalorder %s43, 1
      %p300 = scmp.ne.s32.totalorder %s295, %s297
      %p301 = scmp.eq.s32.totalorder %s43, 0
      %p302 = por %p300, %p301
      %p303 = scmp.ne.s32.totalorder %s295, %s297
      %p304 = scmp.eq.s32.totalorder %s48, 1
      %p305 = por %p303, %p304
      %p306 = scmp.ne.s32.totalorder %s297, %s298
      %p307 = scmp.eq.s32.totalorder %s48, 0
      %p308 = por %p306, %p307
      %p309 = scmp.ne.s32.totalorder %s297, %s298
      %p310 = scmp.eq.s32.totalorder %s49, 1
      %p311 = por %p309, %p310
      %p313 = scmp.ne.s32.totalorder %s298, %s312
      %p314 = scmp.eq.s32.totalorder %s49, 0
      %p315 = por %p313, %p314
      %s317 = sadd.s32 %s316, 1
      %p320 = scmp.eq.s32.totalorder %s43, 1
      %p321 = scmp.ne.s32.totalorder %s316, %s318
      %p322 = scmp.eq.s32.totalorder %s43, 0
      %p323 = por %p321, %p322
      %p324 = scmp.ne.s32.totalorder %s316, %s318
      %p325 = scmp.eq.s32.totalorder %s48, 1
      %p326 = por %p324, %p325
      %p327 = scmp.ne.s32.totalorder %s318, %s319
      %p328 = scmp.eq.s32.totalorder %s48, 0
      %p329 = por %p327, %p328
      %p330 = scmp.ne.s32.totalorder %s318, %s319
      %p331 = scmp.eq.s32.totalorder %s49, 1
      %p332 = por %p330, %p331
      %p334 = scmp.ne.s32.totalorder %s319, %s333
      %p335 = scmp.eq.s32.totalorder %s49, 0
      %p336 = por %p334, %p335
      %s338 = sadd.s32 %s337, 1
      %p341 = scmp.eq.s32.totalorder %s43, 1
      %p342 = scmp.ne.s32.totalorder %s337, %s339
      %p343 = scmp.eq.s32.totalorder %s43, 0
      %p344 = por %p342, %p343
      %p345 = scmp.ne.s32.totalorder %s337, %s339
      %p346 = scmp.eq.s32.totalorder %s48, 1
      %p347 = por %p345, %p346
      %p348 = scmp.ne.s32.totalorder %s339, %s340
      %p349 = scmp.eq.s32.totalorder %s48, 0
      %p350 = por %p348, %p349
      %p351 = scmp.ne.s32.totalorder %s339, %s340
      %p352 = scmp.eq.s32.totalorder %s49, 1
      %p353 = por %p351, %p352
      %p355 = scmp.ne.s32.totalorder %s340, %s354
      %p356 = scmp.eq.s32.totalorder %s49, 0
      %p357 = por %p355, %p356
      %s359 = sadd.s32 %s358, 1
      %p362 = scmp.eq.s32.totalorder %s43, 1
      %p363 = scmp.ne.s32.totalorder %s358, %s360
      %p364 = scmp.eq.s32.totalorder %s43, 0
      %p365 = por %p363, %p364
      %p366 = scmp.ne.s32.totalorder %s358, %s360
      %p367 = scmp.eq.s32.totalorder %s48, 1
      %p368 = por %p366, %p367
      %p369 = scmp.ne.s32.totalorder %s360, %s361
      %p370 = scmp.eq.s32.totalorder %s48, 0
      %p371 = por %p369, %p370
      %p372 = scmp.ne.s32.totalorder %s360, %s361
      %p373 = scmp.eq.s32.totalorder %s49, 1
      %p374 = por %p372, %p373
      %p376 = scmp.ne.s32.totalorder %s361, %s375
      %p377 = scmp.eq.s32.totalorder %s49, 0
      %p378 = por %p376, %p377
      %s380 = sadd.s32 %s379, 1
      %p383 = scmp.eq.s32.totalorder %s43, 1
      %p384 = scmp.ne.s32.totalorder %s379, %s381
      %p385 = scmp.eq.s32.totalorder %s43, 0
      %p386 = por %p384, %p385
      %p387 = scmp.ne.s32.totalorder %s379, %s381
      %p388 = scmp.eq.s32.totalorder %s48, 1
      %p389 = por %p387, %p388
      %p390 = scmp.ne.s32.totalorder %s381, %s382
      %p391 = scmp.eq.s32.totalorder %s48, 0
      %p392 = por %p390, %p391
      %p393 = scmp.ne.s32.totalorder %s381, %s382
      %p394 = scmp.eq.s32.totalorder %s49, 1
      %p395 = por %p393, %p394
      %p397 = scmp.ne.s32.totalorder %s382, %s396
      %p398 = scmp.eq.s32.totalorder %s49, 0
      %p399 = por %p397, %p398
      %s401 = sadd.s32 %s400, 1
      %p404 = scmp.eq.s32.totalorder %s43, 1
      %p405 = scmp.ne.s32.totalorder %s400, %s402
      %p406 = scmp.eq.s32.totalorder %s43, 0
      %p407 = por %p405, %p406
      %p408 = scmp.ne.s32.totalorder %s400, %s402
      %p409 = scmp.eq.s32.totalorder %s48, 1
      %p410 = por %p408, %p409
      %p411 = scmp.ne.s32.totalorder %s402, %s403
      %p412 = scmp.eq.s32.totalorder %s48, 0
      %p413 = por %p411, %p412
      %p414 = scmp.ne.s32.totalorder %s402, %s403
      %p415 = scmp.eq.s32.totalorder %s49, 1
      %p416 = por %p414, %p415
      %p418 = scmp.ne.s32.totalorder %s403, %s417
      %p419 = scmp.eq.s32.totalorder %s49, 0
      %p420 = por %p418, %p419
      %s422 = sadd.s32 %s421, 1
      %p425 = scmp.eq.s32.totalorder %s43, 1
      %p426 = scmp.ne.s32.totalorder %s421, %s423
      %p427 = scmp.eq.s32.totalorder %s43, 0
      %p428 = por %p426, %p427
      %p429 = scmp.ne.s32.totalorder %s421, %s423
      %p430 = scmp.eq.s32.totalorder %s48, 1
      %p431 = por %p429, %p430
      %p432 = scmp.ne.s32.totalorder %s423, %s424
      %p433 = scmp.eq.s32.totalorder %s48, 0
      %p434 = por %p432, %p433
      %p435 = scmp.ne.s32.totalorder %s423, %s424
      %p436 = scmp.eq.s32.totalorder %s49, 1
      %p437 = por %p435, %p436
      %p439 = scmp.ne.s32.totalorder %s424, %s438
      %p440 = scmp.eq.s32.totalorder %s49, 0
      %p441 = por %p439, %p440
      %s443 = sadd.s32 %s442, 1
      %p446 = scmp.eq.s32.totalorder %s43, 1
      %p447 = scmp.ne.s32.totalorder %s442, %s444
      %p448 = scmp.eq.s32.totalorder %s43, 0
      %p449 = por %p447, %p448
      %p450 = scmp.ne.s32.totalorder %s442, %s444
      %p451 = scmp.eq.s32.totalorder %s48, 1
      %p452 = por %p450, %p451
      %p453 = scmp.ne.s32.totalorder %s444, %s445
      %p454 = scmp.eq.s32.totalorder %s48, 0
      %p455 = por %p453, %p454
      %p456 = scmp.ne.s32.totalorder %s444, %s445
      %p457 = scmp.eq.s32.totalorder %s49, 1
      %p458 = por %p456, %p457
      %p460 = scmp.ne.s32.totalorder %s445, %s459
      %p461 = scmp.eq.s32.totalorder %s49, 0
      %p462 = por %p460, %p461
      %s464 = sadd.s32 %s463, 1
      %p467 = scmp.eq.s32.totalorder %s43, 1
      %p468 = scmp.ne.s32.totalorder %s463, %s465
      %p469 = scmp.eq.s32.totalorder %s43, 0
      %p470 = por %p468, %p469
      %p471 = scmp.ne.s32.totalorder %s463, %s465
      %p472 = scmp.eq.s32.totalorder %s48, 1
      %p473 = por %p471, %p472
      %p474 = scmp.ne.s32.totalorder %s465, %s466
      %p475 = scmp.eq.s32.totalorder %s48, 0
      %p476 = por %p474, %p475
      %p477 = scmp.ne.s32.totalorder %s465, %s466
      %p478 = scmp.eq.s32.totalorder %s49, 1
      %p479 = por %p477, %p478
      %p481 = scmp.ne.s32.totalorder %s466, %s480
      %p482 = scmp.eq.s32.totalorder %s49, 0
      %p483 = por %p481, %p482
      %s485 = sadd.s32 %s484, 1
      %p488 = scmp.eq.s32.totalorder %s43, 1
      %p489 = scmp.ne.s32.totalorder %s484, %s486
      %p490 = scmp.eq.s32.totalorder %s43, 0
      %p491 = por %p489, %p490
      %p492 = scmp.ne.s32.totalorder %s484, %s486
      %p493 = scmp.eq.s32.totalorder %s48, 1
      %p494 = por %p492, %p493
      %p495 = scmp.ne.s32.totalorder %s486, %s487
      %p496 = scmp.eq.s32.totalorder %s48, 0
      %p497 = por %p495, %p496
      %p498 = scmp.ne.s32.totalorder %s486, %s487
      %p499 = scmp.eq.s32.totalorder %s49, 1
      %p500 = por %p498, %p499
      %p502 = scmp.ne.s32.totalorder %s487, %s501
      %p503 = scmp.eq.s32.totalorder %s49, 0
      %p504 = por %p502, %p503
      %s506 = sadd.s32 %s505, 1
      %p509 = scmp.eq.s32.totalorder %s43, 1
      %p510 = scmp.ne.s32.totalorder %s505, %s507
      %p511 = scmp.eq.s32.totalorder %s43, 0
      %p512 = por %p510, %p511
      %p513 = scmp.ne.s32.totalorder %s505, %s507
      %p514 = scmp.eq.s32.totalorder %s48, 1
      %p515 = por %p513, %p514
      %p516 = scmp.ne.s32.totalorder %s507, %s508
      %p517 = scmp.eq.s32.totalorder %s48, 0
      %p518 = por %p516, %p517
      %p519 = scmp.ne.s32.totalorder %s507, %s508
      %p520 = scmp.eq.s32.totalorder %s49, 1
      %p521 = por %p519, %p520
      %p523 = scmp.ne.s32.totalorder %s508, %s522
      %p524 = scmp.eq.s32.totalorder %s49, 0
      %p525 = por %p523, %p524
      %s527 = sadd.s32 %s526, 1
      %p530 = scmp.eq.s32.totalorder %s43, 1
      %p531 = scmp.ne.s32.totalorder %s526, %s528
      %p532 = scmp.eq.s32.totalorder %s43, 0
      %p533 = por %p531, %p532
      %p534 = scmp.ne.s32.totalorder %s526, %s528
      %p535 = scmp.eq.s32.totalorder %s48, 1
      %p536 = por %p534, %p535
      %p537 = scmp.ne.s32.totalorder %s528, %s529
      %p538 = scmp.eq.s32.totalorder %s48, 0
      %p539 = por %p537, %p538
      %p540 = scmp.ne.s32.totalorder %s528, %s529
      %p541 = scmp.eq.s32.totalorder %s49, 1
      %p542 = por %p540, %p541
      %p544 = scmp.ne.s32.totalorder %s529, %s543
      %p545 = scmp.eq.s32.totalorder %s49, 0
      %p546 = por %p544, %p545
      %s548 = sadd.s32 %s547, 1
      %p551 = scmp.eq.s32.totalorder %s43, 1
      %p552 = scmp.ne.s32.totalorder %s547, %s549
      %p553 = scmp.eq.s32.totalorder %s43, 0
      %p554 = por %p552, %p553
      %p555 = scmp.ne.s32.totalorder %s547, %s549
      %p556 = scmp.eq.s32.totalorder %s48, 1
      %p557 = por %p555, %p556
      %p558 = scmp.ne.s32.totalorder %s549, %s550
      %p559 = scmp.eq.s32.totalorder %s48, 0
      %p560 = por %p558, %p559
      %p561 = scmp.ne.s32.totalorder %s549, %s550
      %p562 = scmp.eq.s32.totalorder %s49, 1
      %p563 = por %p561, %p562
      %p565 = scmp.ne.s32.totalorder %s550, %s564
      %p566 = scmp.eq.s32.totalorder %s49, 0
      %p567 = por %p565, %p566
      %s569 = sadd.s32 %s568, 1
      %p572 = scmp.eq.s32.totalorder %s43, 1
      %p573 = scmp.ne.s32.totalorder %s568, %s570
      %p574 = scmp.eq.s32.totalorder %s43, 0
      %p575 = por %p573, %p574
      %p576 = scmp.ne.s32.totalorder %s568, %s570
      %p577 = scmp.eq.s32.totalorder %s48, 1
      %p578 = por %p576, %p577
      %p579 = scmp.ne.s32.totalorder %s570, %s571
      %p580 = scmp.eq.s32.totalorder %s48, 0
      %p581 = por %p579, %p580
      %p582 = scmp.ne.s32.totalorder %s570, %s571
      %p583 = scmp.eq.s32.totalorder %s49, 1
      %p584 = por %p582, %p583
      %p586 = scmp.ne.s32.totalorder %s571, %s585
      %p587 = scmp.eq.s32.totalorder %s49, 0
      %p588 = por %p586, %p587
      %s590 = sadd.s32 %s589, 1
      %p593 = scmp.eq.s32.totalorder %s43, 1
      %p594 = scmp.ne.s32.totalorder %s589, %s591
      %p595 = scmp.eq.s32.totalorder %s43, 0
      %p596 = por %p594, %p595
      %p597 = scmp.ne.s32.totalorder %s589, %s591
      %p598 = scmp.eq.s32.totalorder %s48, 1
      %p599 = por %p597, %p598
      %p600 = scmp.ne.s32.totalorder %s591, %s592
      %p601 = scmp.eq.s32.totalorder %s48, 0
      %p602 = por %p600, %p601
      %p603 = scmp.ne.s32.totalorder %s591, %s592
      %p604 = scmp.eq.s32.totalorder %s49, 1
      %p605 = por %p603, %p604
      %p607 = scmp.ne.s32.totalorder %s592, %s606
      %p608 = scmp.eq.s32.totalorder %s49, 0
      %p609 = por %p607, %p608
      %s611 = sadd.s32 %s610, 1
      %p614 = scmp.eq.s32.totalorder %s43, 1
      %p615 = scmp.ne.s32.totalorder %s610, %s612
      %p616 = scmp.eq.s32.totalorder %s43, 0
      %p617 = por %p615, %p616
      %p618 = scmp.ne.s32.totalorder %s610, %s612
      %p619 = scmp.eq.s32.totalorder %s48, 1
      %p620 = por %p618, %p619
      %p621 = scmp.ne.s32.totalorder %s612, %s613
      %p622 = scmp.eq.s32.totalorder %s48, 0
      %p623 = por %p621, %p622
      %p624 = scmp.ne.s32.totalorder %s612, %s613
      %p625 = scmp.eq.s32.totalorder %s49, 1
      %p626 = por %p624, %p625
      %p628 = scmp.ne.s32.totalorder %s613, %s627
      %p629 = scmp.eq.s32.totalorder %s49, 0
      %p630 = por %p628, %p629
      %s631 = ssub.s32 %s50, %s62
      %s632 = ssub.s32 %s51, %s58
      %s633 = sor.u32 %s631, %s632
      %p634 = scmp.eq.s32.totalorder %s633, 0
      %s636 = sadd.s32 %s635, 1
      %s637 = scalar_select %p634, %s635, %s636
      %p640 = pneg %p634
      %p641 = scmp.eq.s32.totalorder %s43, 1
      %p642 = por %p640, %p641
      %p643 = scmp.ne.s32.totalorder %s635, %s638
      %p644 = scmp.eq.s32.totalorder %s43, 0
      %p645 = por %p643, %p644
      %p646 = scmp.ne.s32.totalorder %s635, %s638
      %p647 = scmp.eq.s32.totalorder %s48, 1
      %p648 = por %p646, %p647
      %p649 = scmp.ne.s32.totalorder %s638, %s639
      %p650 = scmp.eq.s32.totalorder %s48, 0
      %p651 = por %p649, %p650
      %p652 = scmp.ne.s32.totalorder %s638, %s639
      %p653 = scmp.eq.s32.totalorder %s49, 1
      %p654 = por %p652, %p653
      %p656 = scmp.ne.s32.totalorder %s639, %s655
      %p657 = scmp.eq.s32.totalorder %s49, 0
      %p658 = por %p656, %p657
      %p659 = scmp.le.s32.totalorder 1, %s43
      %p660 = scmp.lt.s32.totalorder %s43, 3
      %p661 = pnand %p659, %p660
      %p662 = pneg %p661
      // Predicated region
      $region9: #{tpu_custom_call.1} parent=5 // pred_check
        _
      $region10: #{tpu_custom_call.1} parent=5 // pred_check_branch
        %664 = sbr.rel (%p661) target = $region12
      $region11: #{tpu_custom_call.1} parent=5 // pred_region
        %s665 = ssub.s32 %s43, 1
        // Predicated region
        $region13: #{tpu_custom_call.1} parent=11 // pred_check
          %p666 = pneg %p182
        $region14: #{tpu_custom_call.1} parent=11 // pred_check_branch
          %668 = sbr.rel (%p666) target = $region16
        $region15: #{tpu_custom_call.1} parent=11 // pred_region
          %670 = vsyncadd [#allocation3], 0
          %s671 = sshll.u32 %s4, 4
          %s672 = int_to_ptr.hbm [resolvable:$true] %s671
          %s673 = sshll.u32 [#allocation2], 4
          %s674 = int_to_ptr.vmem [resolvable:$true] %s673
          %679 = dma.hbm_to_vmem [thread:$0]  %s672, 256, %s674, [#allocation3], 64, 64, 4
        $region16: #{tpu_custom_call.1} parent=11 // pred_fallthru
          _
        // Predicated region
        $region17: #{tpu_custom_call.1} parent=11 // pred_check
          %p680 = pneg %p203
        $region18: #{tpu_custom_call.1} parent=11 // pred_check_branch
          %682 = sbr.rel (%p680) target = $region20
        $region19: #{tpu_custom_call.1} parent=11 // pred_region
          _
        $region20: #{tpu_custom_call.1} parent=11 // pred_fallthru
          _
        // Predicated region
        $region21: #{tpu_custom_call.1} parent=11 // pred_check
          %p683 = pneg %p224
        $region22: #{tpu_custom_call.1} parent=11 // pred_check_branch
          %685 = sbr.rel (%p683) target = $region24
        $region23: #{tpu_custom_call.1} parent=11 // pred_region
          %687 = vsyncadd [#allocation6], 0
          %s688 = sshll.u32 %s6, 4
          %s689 = int_to_ptr.hbm [resolvable:$true] %s688
          %s690 = sshll.u32 [#allocation5], 4
          %s691 = int_to_ptr.vmem [resolvable:$true] %s690
          %696 = dma.hbm_to_vmem [thread:$0]  %s689, 256, %s691, [#allocation6], 64, 64, 4
        $region24: #{tpu_custom_call.1} parent=11 // pred_fallthru
          _
        // Predicated region
        $region25: #{tpu_custom_call.1} parent=11 // pred_check
          %p697 = pneg %p245
        $region26: #{tpu_custom_call.1} parent=11 // pred_check_branch
          %699 = sbr.rel (%p697) target = $region28
        $region27: #{tpu_custom_call.1} parent=11 // pred_region
          _
        $region28: #{tpu_custom_call.1} parent=11 // pred_fallthru
          _
        // Predicated region
        $region29: #{tpu_custom_call.1} parent=11 // pred_check
          %p700 = pneg %p266
        $region30: #{tpu_custom_call.1} parent=11 // pred_check_branch
          %702 = sbr.rel (%p700) target = $region32
        $region31: #{tpu_custom_call.1} parent=11 // pred_region
          %704 = vsyncadd [#allocation6], 0
          %s705 = sshll.u32 %s8, 4
          %s706 = int_to_ptr.hbm [resolvable:$true] %s705
          %s707 = sshll.u32 [#allocation7], 4
          %s708 = int_to_ptr.vmem [resolvable:$true] %s707
          %713 = dma.hbm_to_vmem [thread:$0]  %s706, 256, %s708, [#allocation6], 64, 64, 4
        $region32: #{tpu_custom_call.1} parent=11 // pred_fallthru
          _
        // Predicated region
        $region33: #{tpu_custom_call.1} parent=11 // pred_check
          %p714 = pneg %p287
        $region34: #{tpu_custom_call.1} parent=11 // pred_check_branch
          %716 = sbr.rel (%p714) target = $region36
        $region35: #{tpu_custom_call.1} parent=11 // pred_region
          _
        $region36: #{tpu_custom_call.1} parent=11 // pred_fallthru
          _
        // Predicated region
        $region37: #{tpu_custom_call.1} parent=11 // pred_check
          %p717 = pneg %p308
        $region38: #{tpu_custom_call.1} parent=11 // pred_check_branch
          %719 = sbr.rel (%p717) target = $region40
        $region39: #{tpu_custom_call.1} parent=11 // pred_region
          %721 = vsyncadd [#allocation9], 0
          %s723 = sshll.u32 %s10, 4
          %s724 = int_to_ptr.hbm [resolvable:$true] %s723
          %s725 = sshll.u32 [#allocation8], 4
          %s726 = int_to_ptr.vmem [resolvable:$true] %s725
          %728 = dma.hbm_to_vmem [thread:$0]  %s724, 16, %s726, [#allocation9]
        $region40: #{tpu_custom_call.1} parent=11 // pred_fallthru
          _
        // Predicated region
        $region41: #{tpu_custom_call.1} parent=11 // pred_check
          %p729 = pneg %p329
        $region42: #{tpu_custom_call.1} parent=11 // pred_check_branch
          %731 = sbr.rel (%p729) target = $region44
        $region43: #{tpu_custom_call.1} parent=11 // pred_region
          %733 = vsyncadd [#allocation9], 0
          %s735 = sshll.u32 %s11, 4
          %s736 = int_to_ptr.hbm [resolvable:$true] %s735
          %s737 = sshll.u32 [#allocation10], 4
          %s738 = int_to_ptr.vmem [resolvable:$true] %s737
          %740 = dma.hbm_to_vmem [thread:$0]  %s736, 16, %s738, [#allocation9]
        $region44: #{tpu_custom_call.1} parent=11 // pred_fallthru
          _
        // Predicated region
        $region45: #{tpu_custom_call.1} parent=11 // pred_check
          %p741 = pneg %p350
        $region46: #{tpu_custom_call.1} parent=11 // pred_check_branch
          %743 = sbr.rel (%p741) target = $region48
        $region47: #{tpu_custom_call.1} parent=11 // pred_region
          %745 = vsyncadd [#allocation12], 0
          %s746 = sshll.u32 %s12, 4
          %s747 = int_to_ptr.hbm [resolvable:$true] %s746
          %s748 = sshll.u32 [#allocation11], 4
          %s749 = int_to_ptr.vmem [resolvable:$true] %s748
          %754 = dma.hbm_to_vmem [thread:$0]  %s747, 256, %s749, [#allocation12], 64, 64, 4
        $region48: #{tpu_custom_call.1} parent=11 // pred_fallthru
          _
        // Predicated region
        $region49: #{tpu_custom_call.1} parent=11 // pred_check
          %p755 = pneg %p371
        $region50: #{tpu_custom_call.1} parent=11 // pred_check_branch
          %757 = sbr.rel (%p755) target = $region52
        $region51: #{tpu_custom_call.1} parent=11 // pred_region
          %759 = vsyncadd [#allocation12], 0
          %s761 = sshll.u32 %s13, 4
          %s762 = int_to_ptr.hbm [resolvable:$true] %s761
          %s763 = sshll.u32 [#allocation13], 4
          %s764 = int_to_ptr.vmem [resolvable:$true] %s763
          %766 = dma.hbm_to_vmem [thread:$0]  %s762, 16, %s764, [#allocation12]
        $region52: #{tpu_custom_call.1} parent=11 // pred_fallthru
          _
        // Predicated region
        $region53: #{tpu_custom_call.1} parent=11 // pred_check
          %p767 = pneg %p392
        $region54: #{tpu_custom_call.1} parent=11 // pred_check_branch
          %769 = sbr.rel (%p767) target = $region56
        $region55: #{tpu_custom_call.1} parent=11 // pred_region
          %771 = vsyncadd [#allocation15], 0
          %s772 = sshll.u32 %s14, 4
          %s773 = int_to_ptr.hbm [resolvable:$true] %s772
          %s774 = sshll.u32 [#allocation14], 4
          %s775 = int_to_ptr.vmem [resolvable:$true] %s774
          %780 = dma.hbm_to_vmem [thread:$0]  %s773, 256, %s775, [#allocation15], 64, 64, 4
        $region56: #{tpu_custom_call.1} parent=11 // pred_fallthru
          _
        // Predicated region
        $region57: #{tpu_custom_call.1} parent=11 // pred_check
          %p781 = pneg %p413
        $region58: #{tpu_custom_call.1} parent=11 // pred_check_branch
          %783 = sbr.rel (%p781) target = $region60
        $region59: #{tpu_custom_call.1} parent=11 // pred_region
          %785 = vsyncadd [#allocation15], 0
          %s787 = sshll.u32 %s15, 4
          %s788 = int_to_ptr.hbm [resolvable:$true] %s787
          %s789 = sshll.u32 [#allocation16], 4
          %s790 = int_to_ptr.vmem [resolvable:$true] %s789
          %792 = dma.hbm_to_vmem [thread:$0]  %s788, 16, %s790, [#allocation15]
        $region60: #{tpu_custom_call.1} parent=11 // pred_fallthru
          _
        // Predicated region
        $region61: #{tpu_custom_call.1} parent=11 // pred_check
          %p793 = pneg %p434
        $region62: #{tpu_custom_call.1} parent=11 // pred_check_branch
          %795 = sbr.rel (%p793) target = $region64
        $region63: #{tpu_custom_call.1} parent=11 // pred_region
          %797 = vsyncadd [#allocation18], 0
          %s798 = sshll.u32 %s16, 4
          %s799 = int_to_ptr.hbm [resolvable:$true] %s798
          %s800 = sshll.u32 [#allocation17], 4
          %s801 = int_to_ptr.vmem [resolvable:$true] %s800
          %806 = dma.hbm_to_vmem [thread:$0]  %s799, 256, %s801, [#allocation18], 64, 64, 4
        $region64: #{tpu_custom_call.1} parent=11 // pred_fallthru
          _
        // Predicated region
        $region65: #{tpu_custom_call.1} parent=11 // pred_check
          %p807 = pneg %p455
        $region66: #{tpu_custom_call.1} parent=11 // pred_check_branch
          %809 = sbr.rel (%p807) target = $region68
        $region67: #{tpu_custom_call.1} parent=11 // pred_region
          %811 = vsyncadd [#allocation18], 0
          %s813 = sshll.u32 %s17, 4
          %s814 = int_to_ptr.hbm [resolvable:$true] %s813
          %s815 = sshll.u32 [#allocation19], 4
          %s816 = int_to_ptr.vmem [resolvable:$true] %s815
          %818 = dma.hbm_to_vmem [thread:$0]  %s814, 16, %s816, [#allocation18]
        $region68: #{tpu_custom_call.1} parent=11 // pred_fallthru
          _
        // Predicated region
        $region69: #{tpu_custom_call.1} parent=11 // pred_check
          %p819 = pneg %p476
        $region70: #{tpu_custom_call.1} parent=11 // pred_check_branch
          %821 = sbr.rel (%p819) target = $region72
        $region71: #{tpu_custom_call.1} parent=11 // pred_region
          %823 = vsyncadd [#allocation21], 0
          %s825 = sshll.u32 %s18, 4
          %s826 = int_to_ptr.hbm [resolvable:$true] %s825
          %s827 = sshll.u32 [#allocation20], 4
          %s828 = int_to_ptr.vmem [resolvable:$true] %s827
          %830 = dma.hbm_to_vmem [thread:$0]  %s826, 16, %s828, [#allocation21]
        $region72: #{tpu_custom_call.1} parent=11 // pred_fallthru
          _
        // Predicated region
        $region73: #{tpu_custom_call.1} parent=11 // pred_check
          %p831 = pneg %p497
        $region74: #{tpu_custom_call.1} parent=11 // pred_check_branch
          %833 = sbr.rel (%p831) target = $region76
        $region75: #{tpu_custom_call.1} parent=11 // pred_region
          %835 = vsyncadd [#allocation21], 0
          %s837 = sshll.u32 %s19, 4
          %s838 = int_to_ptr.hbm [resolvable:$true] %s837
          %s839 = sshll.u32 [#allocation22], 4
          %s840 = int_to_ptr.vmem [resolvable:$true] %s839
          %842 = dma.hbm_to_vmem [thread:$0]  %s838, 16, %s840, [#allocation21]
        $region76: #{tpu_custom_call.1} parent=11 // pred_fallthru
          _
        // Predicated region
        $region77: #{tpu_custom_call.1} parent=11 // pred_check
          %p843 = pneg %p518
        $region78: #{tpu_custom_call.1} parent=11 // pred_check_branch
          %845 = sbr.rel (%p843) target = $region80
        $region79: #{tpu_custom_call.1} parent=11 // pred_region
          %847 = vsyncadd [#allocation24], 0
          %s848 = sshll.u32 %s20, 4
          %s849 = int_to_ptr.hbm [resolvable:$true] %s848
          %s850 = sshll.u32 [#allocation23], 4
          %s851 = int_to_ptr.vmem [resolvable:$true] %s850
          %856 = dma.hbm_to_vmem [thread:$0]  %s849, 256, %s851, [#allocation24], 64, 64, 4
        $region80: #{tpu_custom_call.1} parent=11 // pred_fallthru
          _
        // Predicated region
        $region81: #{tpu_custom_call.1} parent=11 // pred_check
          %p857 = pneg %p539
        $region82: #{tpu_custom_call.1} parent=11 // pred_check_branch
          %859 = sbr.rel (%p857) target = $region84
        $region83: #{tpu_custom_call.1} parent=11 // pred_region
          %861 = vsyncadd [#allocation24], 0
          %s863 = sshll.u32 %s21, 4
          %s864 = int_to_ptr.hbm [resolvable:$true] %s863
          %s865 = sshll.u32 [#allocation25], 4
          %s866 = int_to_ptr.vmem [resolvable:$true] %s865
          %868 = dma.hbm_to_vmem [thread:$0]  %s864, 16, %s866, [#allocation24]
        $region84: #{tpu_custom_call.1} parent=11 // pred_fallthru
          _
        // Predicated region
        $region85: #{tpu_custom_call.1} parent=11 // pred_check
          %p869 = pneg %p560
        $region86: #{tpu_custom_call.1} parent=11 // pred_check_branch
          %871 = sbr.rel (%p869) target = $region88
        $region87: #{tpu_custom_call.1} parent=11 // pred_region
          _
        $region88: #{tpu_custom_call.1} parent=11 // pred_fallthru
          _
        // Predicated region
        $region89: #{tpu_custom_call.1} parent=11 // pred_check
          %p872 = pneg %p581
        $region90: #{tpu_custom_call.1} parent=11 // pred_check_branch
          %874 = sbr.rel (%p872) target = $region92
        $region91: #{tpu_custom_call.1} parent=11 // pred_region
          _
        $region92: #{tpu_custom_call.1} parent=11 // pred_fallthru
          _
        // Predicated region
        $region93: #{tpu_custom_call.1} parent=11 // pred_check
          %p875 = pneg %p602
        $region94: #{tpu_custom_call.1} parent=11 // pred_check_branch
          %877 = sbr.rel (%p875) target = $region96
        $region95: #{tpu_custom_call.1} parent=11 // pred_region
          _
        $region96: #{tpu_custom_call.1} parent=11 // pred_fallthru
          _
        // Predicated region
        $region97: #{tpu_custom_call.1} parent=11 // pred_check
          %p878 = pneg %p623
        $region98: #{tpu_custom_call.1} parent=11 // pred_check_branch
          %880 = sbr.rel (%p878) target = $region100
        $region99: #{tpu_custom_call.1} parent=11 // pred_region
          _
        $region100: #{tpu_custom_call.1} parent=11 // pred_fallthru
          _
      $region12: #{tpu_custom_call.1} parent=5 // pred_fallthru
        _
      %p881 = scmp.lt.s32.totalorder %s43, 2
      // Predicated region
      $region101: #{tpu_custom_call.1} parent=5 // pred_check
        %p882 = pneg %p881
      $region102: #{tpu_custom_call.1} parent=5 // pred_check_branch
        %884 = sbr.rel (%p882) target = $region104
      $region103: #{tpu_custom_call.1} parent=5 // pred_region
        // Predicated region
        $region105: #{tpu_custom_call.1} parent=103 // pred_check
          %p885 = pneg %p77
        $region106: #{tpu_custom_call.1} parent=103 // pred_check_branch
          %887 = sbr.rel (%p885) target = $region108
        $region107: #{tpu_custom_call.1} parent=103 // pred_region
          %p888 = scmp.lt.s32.totalorder %s50, 1
          %s889 = scalar_select %p888, %s50, 1
          %p890 = scmp.lt.s32.totalorder %s51, 0
          %s891 = scalar_select %p890, %s51, 0
          %s892 = sadd.s32 %s891, %s889
          %s893 = smul.addr %s892, 8
          %s894 = scalar_lea.vmem %s0, %s893
        $region108: #{tpu_custom_call.1} parent=103 // pred_fallthru
          _
        // Predicated region
        $region109: #{tpu_custom_call.1} parent=103 // pred_check
          %p895 = pneg %p103
        $region110: #{tpu_custom_call.1} parent=103 // pred_check_branch
          %897 = sbr.rel (%p895) target = $region112
        $region111: #{tpu_custom_call.1} parent=103 // pred_region
          %p898 = scmp.lt.s32.totalorder %s50, 1
          %s899 = scalar_select %p898, %s50, 1
          %s900 = smul.addr %s899, 8
          %s901 = scalar_lea.vmem %s1, %s900
        $region112: #{tpu_custom_call.1} parent=103 // pred_fallthru
          _
        // Predicated region
        $region113: #{tpu_custom_call.1} parent=103 // pred_check
          %p902 = pneg %p129
        $region114: #{tpu_custom_call.1} parent=103 // pred_check_branch
          %904 = sbr.rel (%p902) target = $region116
        $region115: #{tpu_custom_call.1} parent=103 // pred_region
          %p905 = scmp.lt.s32.totalorder %s50, 1
          %s906 = scalar_select %p905, %s50, 1
          %s907 = smul.addr %s906, 2
          %s908 = smul.addr %s907, 4
          %s909 = scalar_lea.vmem %s2, %s908
        $region116: #{tpu_custom_call.1} parent=103 // pred_fallthru
          _
        // Predicated region
        $region117: #{tpu_custom_call.1} parent=103 // pred_check
          %p910 = pneg %p155
        $region118: #{tpu_custom_call.1} parent=103 // pred_check_branch
          %912 = sbr.rel (%p910) target = $region120
        $region119: #{tpu_custom_call.1} parent=103 // pred_region
          %p913 = scmp.lt.s32.totalorder %s50, 1
          %s914 = scalar_select %p913, %s50, 1
          %s915 = scalar_lea.vmem %s3, %s914
        $region120: #{tpu_custom_call.1} parent=103 // pred_fallthru
          _
      $region104: #{tpu_custom_call.1} parent=5 // pred_fallthru
        _
      %p916 = scmp.le.s32.totalorder 1, %s43
      %p917 = scmp.lt.s32.totalorder %s43, 3
      %p918 = pnand %p916, %p917
      %p919 = pneg %p918
      // Predicated region
      $region121: #{tpu_custom_call.1} parent=5 // pred_check
        _
      $region122: #{tpu_custom_call.1} parent=5 // pred_check_branch
        %921 = sbr.rel (%p918) target = $region124
      $region123: #{tpu_custom_call.1} parent=5 // pred_region
        %s922 = ssub.s32 %s43, 1
        // Predicated region
        $region125: #{tpu_custom_call.1} parent=123 // pred_check
          %p923 = pneg %p182
        $region126: #{tpu_custom_call.1} parent=123 // pred_check_branch
          %925 = sbr.rel (%p923) target = $region128
        $region127: #{tpu_custom_call.1} parent=123 // pred_region
          %927 = dma.done [#allocation3], 256
        $region128: #{tpu_custom_call.1} parent=123 // pred_fallthru
          _
        // Predicated region
        $region129: #{tpu_custom_call.1} parent=123 // pred_check
          %p928 = pneg %p224
        $region130: #{tpu_custom_call.1} parent=123 // pred_check_branch
          %930 = sbr.rel (%p928) target = $region132
        $region131: #{tpu_custom_call.1} parent=123 // pred_region
          %932 = dma.done [#allocation6], 256
        $region132: #{tpu_custom_call.1} parent=123 // pred_fallthru
          _
        // Predicated region
        $region133: #{tpu_custom_call.1} parent=123 // pred_check
          %p933 = pneg %p266
        $region134: #{tpu_custom_call.1} parent=123 // pred_check_branch
          %935 = sbr.rel (%p933) target = $region136
        $region135: #{tpu_custom_call.1} parent=123 // pred_region
          %937 = dma.done [#allocation6], 256
        $region136: #{tpu_custom_call.1} parent=123 // pred_fallthru
          _
        // Predicated region
        $region137: #{tpu_custom_call.1} parent=123 // pred_check
          %p938 = pneg %p308
        $region138: #{tpu_custom_call.1} parent=123 // pred_check_branch
          %940 = sbr.rel (%p938) target = $region140
        $region139: #{tpu_custom_call.1} parent=123 // pred_region
          %942 = dma.done [#allocation9], 16
        $region140: #{tpu_custom_call.1} parent=123 // pred_fallthru
          _
        // Predicated region
        $region141: #{tpu_custom_call.1} parent=123 // pred_check
          %p943 = pneg %p329
        $region142: #{tpu_custom_call.1} parent=123 // pred_check_branch
          %945 = sbr.rel (%p943) target = $region144
        $region143: #{tpu_custom_call.1} parent=123 // pred_region
          %947 = dma.done [#allocation9], 16
        $region144: #{tpu_custom_call.1} parent=123 // pred_fallthru
          _
        // Predicated region
        $region145: #{tpu_custom_call.1} parent=123 // pred_check
          %p948 = pneg %p350
        $region146: #{tpu_custom_call.1} parent=123 // pred_check_branch
          %950 = sbr.rel (%p948) target = $region148
        $region147: #{tpu_custom_call.1} parent=123 // pred_region
          %952 = dma.done [#allocation12], 256
        $region148: #{tpu_custom_call.1} parent=123 // pred_fallthru
          _
        // Predicated region
        $region149: #{tpu_custom_call.1} parent=123 // pred_check
          %p953 = pneg %p371
        $region150: #{tpu_custom_call.1} parent=123 // pred_check_branch
          %955 = sbr.rel (%p953) target = $region152
        $region151: #{tpu_custom_call.1} parent=123 // pred_region
          %957 = dma.done [#allocation12], 16
        $region152: #{tpu_custom_call.1} parent=123 // pred_fallthru
          _
        // Predicated region
        $region153: #{tpu_custom_call.1} parent=123 // pred_check
          %p958 = pneg %p392
        $region154: #{tpu_custom_call.1} parent=123 // pred_check_branch
          %960 = sbr.rel (%p958) target = $region156
        $region155: #{tpu_custom_call.1} parent=123 // pred_region
          %962 = dma.done [#allocation15], 256
        $region156: #{tpu_custom_call.1} parent=123 // pred_fallthru
          _
        // Predicated region
        $region157: #{tpu_custom_call.1} parent=123 // pred_check
          %p963 = pneg %p413
        $region158: #{tpu_custom_call.1} parent=123 // pred_check_branch
          %965 = sbr.rel (%p963) target = $region160
        $region159: #{tpu_custom_call.1} parent=123 // pred_region
          %967 = dma.done [#allocation15], 16
        $region160: #{tpu_custom_call.1} parent=123 // pred_fallthru
          _
        // Predicated region
        $region161: #{tpu_custom_call.1} parent=123 // pred_check
          %p968 = pneg %p434
        $region162: #{tpu_custom_call.1} parent=123 // pred_check_branch
          %970 = sbr.rel (%p968) target = $region164
        $region163: #{tpu_custom_call.1} parent=123 // pred_region
          %972 = dma.done [#allocation18], 256
        $region164: #{tpu_custom_call.1} parent=123 // pred_fallthru
          _
        // Predicated region
        $region165: #{tpu_custom_call.1} parent=123 // pred_check
          %p973 = pneg %p455
        $region166: #{tpu_custom_call.1} parent=123 // pred_check_branch
          %975 = sbr.rel (%p973) target = $region168
        $region167: #{tpu_custom_call.1} parent=123 // pred_region
          %977 = dma.done [#allocation18], 16
        $region168: #{tpu_custom_call.1} parent=123 // pred_fallthru
          _
        // Predicated region
        $region169: #{tpu_custom_call.1} parent=123 // pred_check
          %p978 = pneg %p476
        $region170: #{tpu_custom_call.1} parent=123 // pred_check_branch
          %980 = sbr.rel (%p978) target = $region172
        $region171: #{tpu_custom_call.1} parent=123 // pred_region
          %982 = dma.done [#allocation21], 16
        $region172: #{tpu_custom_call.1} parent=123 // pred_fallthru
          _
        // Predicated region
        $region173: #{tpu_custom_call.1} parent=123 // pred_check
          %p983 = pneg %p497
        $region174: #{tpu_custom_call.1} parent=123 // pred_check_branch
          %985 = sbr.rel (%p983) target = $region176
        $region175: #{tpu_custom_call.1} parent=123 // pred_region
          %987 = dma.done [#allocation21], 16
        $region176: #{tpu_custom_call.1} parent=123 // pred_fallthru
          _
        // Predicated region
        $region177: #{tpu_custom_call.1} parent=123 // pred_check
          %p988 = pneg %p518
        $region178: #{tpu_custom_call.1} parent=123 // pred_check_branch
          %990 = sbr.rel (%p988) target = $region180
        $region179: #{tpu_custom_call.1} parent=123 // pred_region
          %992 = dma.done [#allocation24], 256
        $region180: #{tpu_custom_call.1} parent=123 // pred_fallthru
          _
        // Predicated region
        $region181: #{tpu_custom_call.1} parent=123 // pred_check
          %p993 = pneg %p539
        $region182: #{tpu_custom_call.1} parent=123 // pred_check_branch
          %995 = sbr.rel (%p993) target = $region184
        $region183: #{tpu_custom_call.1} parent=123 // pred_region
          %997 = dma.done [#allocation24], 16
        $region184: #{tpu_custom_call.1} parent=123 // pred_fallthru
          _
        %p998 = scmp.lt.s32.totalorder %s52, 1
        %s999 = scalar_select %p998, %s52, 1
        %p1000 = scmp.lt.s32.totalorder %s53, 0
        %s1001 = scalar_select %p1000, %s53, 0
        %s1002 = sadd.s32 %s1001, %s999
        %s1003 = smul.addr %s1002, 8
        %s1004 = scalar_lea.vmem %s0, %s1003
        %p1005 = pneg %p83
        %p1006 = pneg %p80
        %p1007 = scmp.lt.s32.totalorder %s52, 1
        %s1008 = scalar_select %p1007, %s52, 1
        %s1009 = smul.addr %s1008, 8
        %s1010 = scalar_lea.vmem %s1, %s1009
        %p1011 = pneg %p109
        %p1012 = pneg %p106
        %p1013 = scmp.lt.s32.totalorder %s52, 1
        %s1014 = scalar_select %p1013, %s52, 1
        %s1015 = smul.addr %s1014, 2
        %s1016 = smul.addr %s1015, 4
        %s1017 = scalar_lea.vmem %s2, %s1016
        %p1018 = pneg %p135
        %p1019 = pneg %p132
        %p1020 = scmp.lt.s32.totalorder %s52, 1
        %s1021 = scalar_select %p1020, %s52, 1
        %s1022 = scalar_lea.vmem %s3, %s1021
        %p1023 = pneg %p161
        %p1024 = pneg %p158
        %p1025 = pneg %p182
        %p1026 = pneg %p179
        %p1027 = pneg %p203
        %p1028 = pneg %p200
        %p1029 = pneg %p224
        %p1030 = pneg %p221
        %p1031 = pneg %p245
        %p1032 = pneg %p242
        %p1033 = pneg %p266
        %p1034 = pneg %p263
        %p1035 = pneg %p287
        %p1036 = pneg %p284
        %p1037 = pneg %p308
        %p1038 = pneg %p305
        %p1039 = pneg %p329
        %p1040 = pneg %p326
        %p1041 = pneg %p350
        %p1042 = pneg %p347
        %p1043 = pneg %p371
        %p1044 = pneg %p368
        %p1045 = pneg %p392
        %p1046 = pneg %p389
        %p1047 = pneg %p413
        %p1048 = pneg %p410
        %p1049 = pneg %p434
        %p1050 = pneg %p431
        %p1051 = pneg %p455
        %p1052 = pneg %p452
        %p1053 = pneg %p476
        %p1054 = pneg %p473
        %p1055 = pneg %p497
        %p1056 = pneg %p494
        %p1057 = pneg %p518
        %p1058 = pneg %p515
        %p1059 = pneg %p539
        %p1060 = pneg %p536
        %p1061 = pneg %p560
        %p1062 = pneg %p557
        %p1063 = pneg %p581
        %p1064 = pneg %p578
        %p1065 = pneg %p602
        %p1066 = pneg %p599
        %p1067 = pneg %p623
        %p1068 = pneg %p620
        %p1069 = pneg %p651
        %p1070 = pneg %p648
        %s1071 = sand.u32 %s638, 1
        %s1072 = scalar_lea.sflag [#allocation4], %s1071
        %s1073 = sand.u32 %s638, 1
        %s1074 = smul.addr %s1073, 8
        %s1075 = scalar_lea.vmem [#allocation26], %s1074
        %p1076 = scmp.lt.s32.totalorder %s52, 1
        %s1077 = scalar_select %p1076, %s52, 1
        %p1078 = scmp.lt.s32.totalorder %s53, 0
        %s1079 = scalar_select %p1078, %s53, 0
        %s1080 = sadd.s32 %s1079, %s1077
        %s1081 = smul.addr %s1080, 8
        %s1082 = scalar_lea.vmem %s0, %s1081
        %p1083 = scmp.lt.s32.totalorder %s52, 1
        %s1084 = scalar_select %p1083, %s52, 1
        %s1085 = smul.addr %s1084, 8
        %s1086 = scalar_lea.vmem %s1, %s1085
        %p1087 = scmp.lt.s32.totalorder %s52, 1
        %s1088 = scalar_select %p1087, %s52, 1
        %s1089 = smul.addr %s1088, 2
        %s1090 = smul.addr %s1089, 4
        %s1091 = scalar_lea.vmem %s2, %s1090
        %p1092 = scmp.lt.s32.totalorder %s52, 1
        %s1093 = scalar_select %p1092, %s52, 1
        %s1094 = scalar_lea.vmem %s3, %s1093
        %v1096 = vld [vmem:[%s1082] sm:$0xff]
        %v1097 = vld [vmem:[%s1086] sm:$0xff]
        %v1098 = vpack.c.bf16 %v1097, %v1097
        %v1099 = vld [vmem:[%s1091] sm:$0xf]
        %v1100 = vld [vmem:[%s1091 + $0x4] sm:$0xf]
        %v1101 = vld [vmem:[%s1094] sm:$0x1]
        %s1102 = smul.u32 %s53, 8
        %v1103 = vlaneseq
        %v1104 = vshrl.u32 %v1103, 7
        %v1105 = vstv %s1102
        %v1106 = vadd.s32 %v1105, %v1104
        %v1107 = vlaneseq
        %v1108 = vand.u32 %v1107, 127
        %vm1109 = vcmp.ge.s32.totalorder %v1106, %v1108
        %v1110 = vsel %vm1109, 0.0, -1e+09
        %v1111 = vpack.c.bf16 %v1096, %v1096
        %v1112 = vld [vmem:[#allocation2] sm:$0xf]
        %v1113 = vld [vmem:[#allocation2 + $0x4] sm:$0xf]
        %v1114 = vld [vmem:[#allocation2 + $0x8] sm:$0xf]
        %v1115 = vld [vmem:[#allocation2 + $0xc] sm:$0xf]
        %v1116 = vld [vmem:[%s5] sm:$0x1]
        %v1118 = vperm.slane %v1116, 0
        %v1124 = vunpack.c.l.b16 %v1112
        %v1125 = vunpack.c.l.b16 %v1113
        %v1126 = vunpack.c.l.b16 %v1114
        %v1127 = vunpack.c.l.b16 %v1115
        %v1128 = vpack.c.b16 %v1125, %v1124
        %v1129 = vpack.c.b16 %v1127, %v1126
        %vm1132 = vcmask 261120
        %v1134 = vsel %vm1132, %v1111, 0
        %1136 = vmatpush.bf16.msra.mxu0 0
        %1137 = vmatpush.bf16.msra.mxu0 0
        %1138 = vmatpush.bf16.msra.mxu0 0
        %1139 = vmatpush.bf16.msra.mxu0 0
        %1140 = vmatpush.bf16.msra.mxu0 0
        %1141 = vmatpush.bf16.msra.mxu0 0
        %1142 = vmatpush.bf16.msra.mxu0 %v1129
        %1143 = vmatpush.bf16.msra.mxu0 %v1128
        %1144 = vmatmul.bf16.gmra.mxu0 %v1134
        %v1145 = vpop.f32.mrf.mxu0
        %v1146 = vadd.f32 %v1118, %v1145
        %v1147 = vpop.f32.mrf.mxu0
        %1148 = vdwg.mxu0
        %v1149 = vld [vmem:[#allocation5] sm:$0xf]
        %v1150 = vld [vmem:[#allocation5 + $0x4] sm:$0xf]
        %v1151 = vld [vmem:[#allocation5 + $0x8] sm:$0xf]
        %v1152 = vld [vmem:[#allocation5 + $0xc] sm:$0xf]
        %v1153 = vld [vmem:[%s7] sm:$0x1]
        %v1155 = vperm.slane %v1153, 0
        %v1161 = vunpack.c.l.b16 %v1149
        %v1162 = vunpack.c.l.b16 %v1150
        %v1163 = vunpack.c.l.b16 %v1151
        %v1164 = vunpack.c.l.b16 %v1152
        %v1165 = vpack.c.b16 %v1162, %v1161
        %v1166 = vpack.c.b16 %v1164, %v1163
        %v1170 = vsel %vm1132, %v1098, 0
        %1172 = vmatpush.bf16.msra.mxu0 0
        %1173 = vmatpush.bf16.msra.mxu0 0
        %1174 = vmatpush.bf16.msra.mxu0 0
        %1175 = vmatpush.bf16.msra.mxu0 0
        %1176 = vmatpush.bf16.msra.mxu0 0
        %1177 = vmatpush.bf16.msra.mxu0 0
        %1178 = vmatpush.bf16.msra.mxu0 %v1166
        %1179 = vmatpush.bf16.msra.mxu0 %v1165
        %1180 = vmatmul.bf16.gmra.mxu0 %v1170
        %v1181 = vpop.f32.mrf.mxu0
        %v1182 = vadd.f32 %v1155, %v1181
        %v1183 = vpop.f32.mrf.mxu0
        %1184 = vdwg.mxu0
        %v1185 = vpack.c.bf16 %v1146, %v1146
        %1187 = vrot.lane.b32.xlu0 %v1185, 120
        %v1188 = vpop.permute.xlu0 %1187
        %1189 = vrot.lane.b32.xlu0 %v1185, 112
        %v1190 = vpop.permute.xlu0 %1189
        %1191 = vrot.lane.b32.xlu0 %v1185, 104
        %v1192 = vpop.permute.xlu0 %1191
        %v1193 = vpack.c.bf16 %v1182, %v1182
        %1195 = vrot.lane.b32.xlu0 %v1193, 120
        %v1196 = vpop.permute.xlu0 %1195
        %1197 = vrot.lane.b32.xlu0 %v1193, 112
        %v1198 = vpop.permute.xlu0 %1197
        %1199 = vrot.lane.b32.xlu0 %v1193, 104
        %v1200 = vpop.permute.xlu0 %1199
        %vm1201 = vcmask 64512
        %v1203 = vsel %vm1201, %v1185, 0
        %v1206 = vsel %vm1201, %v1193, 0
        %1208 = vmatpush.bf16.xpose.msra.mxu0 0
        %1209 = vmatpush.bf16.xpose.msra.mxu0 0
        %1210 = vmatpush.bf16.xpose.msra.mxu0 0
        %1211 = vmatpush.bf16.xpose.msra.mxu0 0
        %1212 = vmatpush.bf16.xpose.msra.mxu0 0
        %1213 = vmatpush.bf16.xpose.msra.mxu0 0
        %1214 = vmatpush.bf16.xpose.msra.mxu0 0
        %1215 = vmatpush.bf16.xpose.msra.mxu0 %v1206
        %1216 = vmatmul.bf16.gmra.mxu0 %v1203
        %v1217 = vpop.f32.mrf.mxu0
        %v1218 = vadd.f32 %v1110, %v1217
        %v1219 = vpop.f32.mrf.mxu0
        %1220 = vdwg.mxu0
        %v1222 = vsel %vm1201, %v1188, 0
        %v1225 = vsel %vm1201, %v1196, 0
        %1227 = vmatpush.bf16.xpose.msra.mxu0 0
        %1228 = vmatpush.bf16.xpose.msra.mxu0 0
        %1229 = vmatpush.bf16.xpose.msra.mxu0 0
        %1230 = vmatpush.bf16.xpose.msra.mxu0 0
        %1231 = vmatpush.bf16.xpose.msra.mxu0 0
        %1232 = vmatpush.bf16.xpose.msra.mxu0 0
        %1233 = vmatpush.bf16.xpose.msra.mxu0 0
        %1234 = vmatpush.bf16.xpose.msra.mxu0 %v1225
        %1235 = vmatmul.bf16.gmra.mxu0 %v1222
        %v1236 = vpop.f32.mrf.mxu0
        %v1237 = vadd.f32 %v1110, %v1236
        %v1238 = vpop.f32.mrf.mxu0
        %1239 = vdwg.mxu0
        %v1241 = vsel %vm1201, %v1190, 0
        %v1244 = vsel %vm1201, %v1198, 0
        %1246 = vmatpush.bf16.xpose.msra.mxu0 0
        %1247 = vmatpush.bf16.xpose.msra.mxu0 0
        %1248 = vmatpush.bf16.xpose.msra.mxu0 0
        %1249 = vmatpush.bf16.xpose.msra.mxu0 0
        %1250 = vmatpush.bf16.xpose.msra.mxu0 0
        %1251 = vmatpush.bf16.xpose.msra.mxu0 0
        %1252 = vmatpush.bf16.xpose.msra.mxu0 0
        %1253 = vmatpush.bf16.xpose.msra.mxu0 %v1244
        %1254 = vmatmul.bf16.gmra.mxu0 %v1241
        %v1255 = vpop.f32.mrf.mxu0
        %v1256 = vadd.f32 %v1110, %v1255
        %v1257 = vpop.f32.mrf.mxu0
        %1258 = vdwg.mxu0
        %v1260 = vsel %vm1201, %v1192, 0
        %v1263 = vsel %vm1201, %v1200, 0
        %1265 = vmatpush.bf16.xpose.msra.mxu0 0
        %1266 = vmatpush.bf16.xpose.msra.mxu0 0
        %1267 = vmatpush.bf16.xpose.msra.mxu0 0
        %1268 = vmatpush.bf16.xpose.msra.mxu0 0
        %1269 = vmatpush.bf16.xpose.msra.mxu0 0
        %1270 = vmatpush.bf16.xpose.msra.mxu0 0
        %1271 = vmatpush.bf16.xpose.msra.mxu0 0
        %1272 = vmatpush.bf16.xpose.msra.mxu0 %v1263
        %1273 = vmatmul.bf16.gmra.mxu0 %v1260
        %v1274 = vpop.f32.mrf.mxu0
        %v1275 = vadd.f32 %v1110, %v1274
        %v1276 = vpop.f32.mrf.mxu0
        %1277 = vdwg.mxu0
        %v1278 = vsel %vm1201, %v1218, -inf
        %1279 = vmax.xlane.f32.xlu0 %v1278
        %v1280 = vpop.xlane.xlu0 %1279
        %v1281 = vsel %vm1201, %v1237, -inf
        %1282 = vmax.xlane.f32.xlu0 %v1281
        %v1283 = vpop.xlane.xlu0 %1282
        %v1284 = vsel %vm1201, %v1256, -inf
        %1285 = vmax.xlane.f32.xlu0 %v1284
        %v1286 = vpop.xlane.xlu0 %1285
        %v1287 = vsel %vm1201, %v1275, -inf
        %1288 = vmax.xlane.f32.xlu0 %v1287
        %v1289 = vpop.xlane.xlu0 %1288
        %v1290 = vsub.f32 %v1218, %v1280
        %v1291 = vsub.f32 %v1237, %v1283
        %v1292 = vsub.f32 %v1256, %v1286
        %v1293 = vsub.f32 %v1275, %v1289
        %v1294 = vmul.f32 %v1290, 1.442695
        %v1295 = vpow.pop %v1294
        %v1296 = vmul.f32 %v1291, 1.442695
        %v1297 = vpow.pop %v1296
        %v1298 = vmul.f32 %v1292, 1.442695
        %v1299 = vpow.pop %v1298
        %v1300 = vmul.f32 %v1293, 1.442695
        %v1301 = vpow.pop %v1300
        %v1302 = vsel %vm1201, %v1295, 0.0
        %1303 = vadd.xlane.f32.xlu0 %v1302
        %v1304 = vpop.xlane.xlu0 %1303
        %v1305 = vsel %vm1201, %v1297, 0.0
        %1306 = vadd.xlane.f32.xlu0 %v1305
        %v1307 = vpop.xlane.xlu0 %1306
        %v1308 = vsel %vm1201, %v1299, 0.0
        %1309 = vadd.xlane.f32.xlu0 %v1308
        %v1310 = vpop.xlane.xlu0 %1309
        %v1311 = vsel %vm1201, %v1301, 0.0
        %1312 = vadd.xlane.f32.xlu0 %v1311
        %v1313 = vpop.xlane.xlu0 %1312
        %v1314 = vrcp.pop %v1304
        %v1315 = vrcp.pop %v1307
        %v1316 = vrcp.pop %v1310
        %v1317 = vrcp.pop %v1313
        %v1318 = vmul.f32 %v1295, %v1314
        %v1319 = vmul.f32 %v1297, %v1315
        %v1320 = vmul.f32 %v1299, %v1316
        %v1321 = vmul.f32 %v1301, %v1317
        %v1322 = vpack.c.bf16 %v1318, %v1318
        %v1323 = vpack.c.bf16 %v1319, %v1319
        %v1324 = vpack.c.bf16 %v1320, %v1320
        %v1325 = vpack.c.bf16 %v1321, %v1321
        %v1326 = vunpack.c.l.b16 %v1193
        %v1327 = vpack.c.b16 %v1326, %v1326
        %1328 = vrot.lane.b32.xlu0 %v1327, 96
        %v1329 = vpop.permute.xlu0 %1328
        %v1331 = vsel %vm1201, %v1322, 0
        %vm1333 = vcmask 1043456
        %v1335 = vsel %vm1333, %v1329, 0
        %1337 = vmatpush.bf16.msra.mxu0 0
        %1338 = vmatpush.bf16.msra.mxu0 0
        %1339 = vmatpush.bf16.msra.mxu0 0
        %1340 = vmatpush.bf16.msra.mxu0 0
        %1341 = vmatpush.bf16.msra.mxu0 0
        %1342 = vmatpush.bf16.msra.mxu0 0
        %1343 = vmatpush.bf16.msra.mxu0 0
        %1344 = vmatpush.bf16.msra.mxu0 %v1335
        %1345 = vmatmul.bf16.gmra.mxu0 %v1331
        %v1346 = vpop.f32.mrf.mxu0
        %v1347 = vadd.f32 0.0, %v1346
        %v1348 = vpop.f32.mrf.mxu0
        %1349 = vdwg.mxu0
        %v1350 = vunpack.c.l.b16 %v1196
        %v1351 = vpack.c.b16 %v1350, %v1350
        %1352 = vrot.lane.b32.xlu0 %v1351, 96
        %v1353 = vpop.permute.xlu0 %1352
        %v1355 = vsel %vm1201, %v1323, 0
        %v1358 = vsel %vm1333, %v1353, 0
        %1360 = vmatpush.bf16.msra.mxu0 0
        %1361 = vmatpush.bf16.msra.mxu0 0
        %1362 = vmatpush.bf16.msra.mxu0 0
        %1363 = vmatpush.bf16.msra.mxu0 0
        %1364 = vmatpush.bf16.msra.mxu0 0
        %1365 = vmatpush.bf16.msra.mxu0 0
        %1366 = vmatpush.bf16.msra.mxu0 0
        %1367 = vmatpush.bf16.msra.mxu0 %v1358
        %1368 = vmatmul.bf16.gmra.mxu0 %v1355
        %v1369 = vpop.f32.mrf.mxu0
        %v1370 = vadd.f32 0.0, %v1369
        %v1371 = vpop.f32.mrf.mxu0
        %1372 = vdwg.mxu0
        %v1373 = vunpack.c.l.b16 %v1198
        %v1374 = vpack.c.b16 %v1373, %v1373
        %1375 = vrot.lane.b32.xlu0 %v1374, 96
        %v1376 = vpop.permute.xlu0 %1375
        %v1378 = vsel %vm1201, %v1324, 0
        %v1381 = vsel %vm1333, %v1376, 0
        %1383 = vmatpush.bf16.msra.mxu0 0
        %1384 = vmatpush.bf16.msra.mxu0 0
        %1385 = vmatpush.bf16.msra.mxu0 0
        %1386 = vmatpush.bf16.msra.mxu0 0
        %1387 = vmatpush.bf16.msra.mxu0 0
        %1388 = vmatpush.bf16.msra.mxu0 0
        %1389 = vmatpush.bf16.msra.mxu0 0
        %1390 = vmatpush.bf16.msra.mxu0 %v1381
        %1391 = vmatmul.bf16.gmra.mxu0 %v1378
        %v1392 = vpop.f32.mrf.mxu0
        %v1393 = vadd.f32 0.0, %v1392
        %v1394 = vpop.f32.mrf.mxu0
        %1395 = vdwg.mxu0
        %v1396 = vunpack.c.l.b16 %v1200
        %v1397 = vpack.c.b16 %v1396, %v1396
        %1398 = vrot.lane.b32.xlu0 %v1397, 96
        %v1399 = vpop.permute.xlu0 %1398
        %v1401 = vsel %vm1201, %v1325, 0
        %v1404 = vsel %vm1333, %v1399, 0
        %1406 = vmatpush.bf16.msra.mxu0 0
        %1407 = vmatpush.bf16.msra.mxu0 0
        %1408 = vmatpush.bf16.msra.mxu0 0
        %1409 = vmatpush.bf16.msra.mxu0 0
        %1410 = vmatpush.bf16.msra.mxu0 0
        %1411 = vmatpush.bf16.msra.mxu0 0
        %1412 = vmatpush.bf16.msra.mxu0 0
        %1413 = vmatpush.bf16.msra.mxu0 %v1404
        %1414 = vmatmul.bf16.gmra.mxu0 %v1401
        %v1415 = vpop.f32.mrf.mxu0
        %v1416 = vadd.f32 0.0, %v1415
        %v1417 = vpop.f32.mrf.mxu0
        %1418 = vdwg.mxu0
        %1420 = vrot.lane.b32.xlu0 %v1370, 8
        %v1421 = vpop.permute.xlu0 %1420
        %1424 = vrot.lane.b32.xlu0 %v1393, 16
        %v1425 = vpop.permute.xlu0 %1424
        %1428 = vrot.lane.b32.xlu0 %v1416, 24
        %v1429 = vpop.permute.xlu0 %1428
        %v1431 = vsel %vm1201, %v1347, %v1421
        %vm1432 = vcmask 130048
        %v1433 = vsel %vm1432, %v1431, %v1425
        %vm1434 = vcmask 195584
        %v1435 = vsel %vm1434, %v1433, %v1429
        %v1436 = vpack.c.bf16 %v1435, %v1435
        %v1437 = vld [vmem:[#allocation7] sm:$0xf]
        %v1438 = vld [vmem:[#allocation7 + $0x4] sm:$0xf]
        %v1439 = vld [vmem:[#allocation7 + $0x8] sm:$0xf]
        %v1440 = vld [vmem:[#allocation7 + $0xc] sm:$0xf]
        %v1441 = vld [vmem:[%s9] sm:$0x1]
        %v1443 = vperm.slane %v1441, 0
        %v1449 = vunpack.c.l.b16 %v1437
        %v1450 = vunpack.c.l.b16 %v1438
        %v1451 = vunpack.c.l.b16 %v1439
        %v1452 = vunpack.c.l.b16 %v1440
        %v1453 = vpack.c.b16 %v1450, %v1449
        %v1454 = vpack.c.b16 %v1452, %v1451
        %v1458 = vsel %vm1132, %v1436, 0
        %1460 = vmatpush.bf16.msra.mxu0 0
        %1461 = vmatpush.bf16.msra.mxu0 0
        %1462 = vmatpush.bf16.msra.mxu0 0
        %1463 = vmatpush.bf16.msra.mxu0 0
        %1464 = vmatpush.bf16.msra.mxu0 0
        %1465 = vmatpush.bf16.msra.mxu0 0
        %1466 = vmatpush.bf16.msra.mxu0 %v1454
        %1467 = vmatpush.bf16.msra.mxu0 %v1453
        %1468 = vmatmul.bf16.gmra.mxu0 %v1458
        %v1469 = vpop.f32.mrf.mxu0
        %v1470 = vadd.f32 %v1443, %v1469
        %v1471 = vpop.f32.mrf.mxu0
        %1472 = vdwg.mxu0
        %v1473 = vadd.f32 %v1470, %v1096
        %v1474 = vld [vmem:[#allocation8] sm:$0x1]
        %v1475 = vld [vmem:[#allocation10] sm:$0x1]
        %v1476 = vsel %vm1132, %v1473, 0.0
        %1477 = vadd.xlane.f32.xlu0 %v1476
        %v1478 = vpop.xlane.xlu0 %1477
        %v1479 = vrcp.pop 32.0
        %v1480 = vmul.f32 32.0, %v1479
        %v1481 = vsub.f32 1.0, %v1480
        %v1482 = vmul.f32 %v1479, %v1481
        %v1483 = vadd.f32 %v1479, %v1482
        %vm1484 = vweird.f32 %v1479
        %v1485 = vsel %vm1484, %v1479, %v1483
        %v1486 = vmul.f32 %v1478, %v1485
        %v1487 = vsub.f32 %v1473, %v1486
        %v1488 = vmul.f32 %v1487, %v1487
        %v1489 = vsel %vm1132, %v1488, 0.0
        %1490 = vadd.xlane.f32.xlu0 %v1489
        %v1491 = vpop.xlane.xlu0 %1490
        %v1492 = vrcp.pop 31.0
        %v1493 = vmul.f32 31.0, %v1492
        %v1494 = vsub.f32 1.0, %v1493
        %v1495 = vmul.f32 %v1492, %v1494
        %v1496 = vadd.f32 %v1492, %v1495
        %vm1497 = vweird.f32 %v1492
        %v1498 = vsel %vm1497, %v1492, %v1496
        %v1499 = vmul.f32 %v1491, %v1498
        %v1501 = vperm.slane %v1474, 0
        %v1503 = vmul.f32 %v1501, %v1487
        %v1504 = vrsqrt.pop %v1499
        %v1505 = vmul.f32 %v1504, %v1499
        %v1506 = vmul.f32 %v1505, %v1504
        %v1507 = vmul.f32 0.5, %v1506
        %v1508 = vsub.f32 1.5, %v1507
        %v1509 = vmul.f32 %v1504, %v1508
        %v1510 = vmul.f32 %v1499, %v1509
        %vm1511 = vcmp.eq.f32.partialorder %v1499, inf
        %v1512 = vsel %vm1511, %v1499, %v1510
        %vm1513 = vcmp.eq.f32.partialorder %v1499, 0.0
        %v1514 = vand.u32 %v1499, 2147483648
        %v1515 = vsel %vm1513, %v1514, %v1512
        %v1516 = vadd.f32 %v1515, 1e-06
        %v1517 = vrcp.pop %v1516
        %v1518 = vmul.f32 %v1516, %v1517
        %v1519 = vsub.f32 1.0, %v1518
        %v1520 = vmul.f32 %v1517, %v1519
        %v1521 = vadd.f32 %v1517, %v1520
        %vm1522 = vweird.f32 %v1516
        %vm1523 = vweird.f32 %v1517
        %vm1524 = vmor %vm1522, %vm1523
        %v1525 = vsel %vm1524, %v1517, %v1521
        %v1526 = vand.u32 2147483647, %v1516
        %vm1527 = vcmp.eq.f32.partialorder %v1526, 8.507059e+37
        %v1528 = vand.u32 %v1516, 2147483648
        %v1529 = vor.u32 1.1754944e-38, %v1528
        %v1530 = vsel %vm1527, %v1529, %v1525
        %v1531 = vmul.f32 %v1503, %v1530
        %v1533 = vperm.slane %v1475, 0
        %v1535 = vadd.f32 %v1531, %v1533
        %v1536 = vpack.c.bf16 %v1535, %v1535
        %v1537 = vld [vmem:[#allocation11] sm:$0xf]
        %v1538 = vld [vmem:[#allocation11 + $0x4] sm:$0xf]
        %v1539 = vld [vmem:[#allocation11 + $0x8] sm:$0xf]
        %v1540 = vld [vmem:[#allocation11 + $0xc] sm:$0xf]
        %v1541 = vld [vmem:[#allocation13] sm:$0x1]
        %v1543 = vperm.slane %v1541, 0
        %v1549 = vunpack.c.l.b16 %v1537
        %v1550 = vunpack.c.l.b16 %v1538
        %v1551 = vunpack.c.l.b16 %v1539
        %v1552 = vunpack.c.l.b16 %v1540
        %v1553 = vpack.c.b16 %v1550, %v1549
        %v1554 = vpack.c.b16 %v1552, %v1551
        %v1558 = vsel %vm1132, %v1536, 0
        %1560 = vmatpush.bf16.msra.mxu0 0
        %1561 = vmatpush.bf16.msra.mxu0 0
        %1562 = vmatpush.bf16.msra.mxu0 0
        %1563 = vmatpush.bf16.msra.mxu0 0
        %1564 = vmatpush.bf16.msra.mxu0 0
        %1565 = vmatpush.bf16.msra.mxu0 0
        %1566 = vmatpush.bf16.msra.mxu0 %v1554
        %1567 = vmatpush.bf16.msra.mxu0 %v1553
        %1568 = vmatmul.bf16.gmra.mxu0 %v1558
        %v1569 = vpop.f32.mrf.mxu0
        %v1570 = vadd.f32 %v1543, %v1569
        %v1571 = vpop.f32.mrf.mxu0
        %1572 = vdwg.mxu0
        %v1573 = vld [vmem:[#allocation14] sm:$0xf]
        %v1574 = vld [vmem:[#allocation14 + $0x4] sm:$0xf]
        %v1575 = vld [vmem:[#allocation14 + $0x8] sm:$0xf]
        %v1576 = vld [vmem:[#allocation14 + $0xc] sm:$0xf]
        %v1577 = vld [vmem:[#allocation16] sm:$0x1]
        %v1579 = vperm.slane %v1577, 0
        %v1583 = vunpack.c.l.b16 %v1099
        %v1584 = vunpack.c.l.b16 %v1100
        %v1585 = vpack.c.b16 %v1584, %v1583
        %v1590 = vunpack.c.l.b16 %v1573
        %v1591 = vunpack.c.l.b16 %v1574
        %v1592 = vunpack.c.l.b16 %v1575
        %v1593 = vunpack.c.l.b16 %v1576
        %v1594 = vpack.c.b16 %v1591, %v1590
        %v1595 = vpack.c.b16 %v1593, %v1592
        %v1599 = vsel %vm1132, %v1585, 0
        %1601 = vmatpush.bf16.msra.mxu0 0
        %1602 = vmatpush.bf16.msra.mxu0 0
        %1603 = vmatpush.bf16.msra.mxu0 0
        %1604 = vmatpush.bf16.msra.mxu0 0
        %1605 = vmatpush.bf16.msra.mxu0 0
        %1606 = vmatpush.bf16.msra.mxu0 0
        %1607 = vmatpush.bf16.msra.mxu0 %v1595
        %1608 = vmatpush.bf16.msra.mxu0 %v1594
        %1609 = vmatmul.bf16.gmra.mxu0 %v1599
        %v1610 = vpop.f32.mrf.mxu0
        %v1611 = vadd.f32 %v1579, %v1610
        %v1612 = vpop.f32.mrf.mxu0
        %v1613 = vadd.f32 %v1579, %v1612
        %1614 = vdwg.mxu0
        %v1615 = vpack.c.bf16 %v1570, %v1570
        %1617 = vrot.lane.b32.xlu0 %v1615, 120
        %v1618 = vpop.permute.xlu0 %1617
        %1619 = vrot.lane.b32.xlu0 %v1615, 112
        %v1620 = vpop.permute.xlu0 %1619
        %1621 = vrot.lane.b32.xlu0 %v1615, 104
        %v1622 = vpop.permute.xlu0 %1621
        %v1623 = vpack.c.bf16 %v1611, %v1611
        %v1624 = vpack.c.bf16 %v1613, %v1613
        %1627 = vrot.lane.b32.xlu0 %v1623, 120
        %v1628 = vpop.permute.xlu0 %1627
        %1629 = vrot.lane.b32.xlu0 %v1624, 120
        %v1630 = vpop.permute.xlu0 %1629
        %1631 = vrot.lane.b32.xlu0 %v1623, 112
        %v1632 = vpop.permute.xlu0 %1631
        %1633 = vrot.lane.b32.xlu0 %v1624, 112
        %v1634 = vpop.permute.xlu0 %1633
        %1635 = vrot.lane.b32.xlu0 %v1623, 104
        %v1636 = vpop.permute.xlu0 %1635
        %1637 = vrot.lane.b32.xlu0 %v1624, 104
        %v1638 = vpop.permute.xlu0 %1637
        %v1640 = vperm.slane %v1101, 0
        %v1642 = vunpack.c.l.b16 %v1623
        %v1643 = vunpack.c.l.b16 %v1624
        %v1644 = vpack.c.b16 %v1643, %v1642
        %v1646 = vsel %vm1201, %v1615, 0
        %v1649 = vsel %vm1201, %v1644, 0
        %1651 = vmatpush.bf16.xpose.msra.mxu0 0
        %1652 = vmatpush.bf16.xpose.msra.mxu0 0
        %1653 = vmatpush.bf16.xpose.msra.mxu0 0
        %1654 = vmatpush.bf16.xpose.msra.mxu0 0
        %1655 = vmatpush.bf16.xpose.msra.mxu0 0
        %1656 = vmatpush.bf16.xpose.msra.mxu0 0
        %1657 = vmatpush.bf16.xpose.msra.mxu0 0
        %1658 = vmatpush.bf16.xpose.msra.mxu0 %v1649
        %1659 = vmatmul.bf16.gmra.mxu0 %v1646
        %v1660 = vpop.f32.mrf.mxu0
        %v1661 = vadd.f32 %v1640, %v1660
        %v1662 = vpop.f32.mrf.mxu0
        %1663 = vdwg.mxu0
        %v1664 = vunpack.c.l.b16 %v1628
        %v1665 = vunpack.c.l.b16 %v1630
        %v1666 = vpack.c.b16 %v1665, %v1664
        %v1668 = vsel %vm1201, %v1618, 0
        %v1671 = vsel %vm1201, %v1666, 0
        %1673 = vmatpush.bf16.xpose.msra.mxu0 0
        %1674 = vmatpush.bf16.xpose.msra.mxu0 0
        %1675 = vmatpush.bf16.xpose.msra.mxu0 0
        %1676 = vmatpush.bf16.xpose.msra.mxu0 0
        %1677 = vmatpush.bf16.xpose.msra.mxu0 0
        %1678 = vmatpush.bf16.xpose.msra.mxu0 0
        %1679 = vmatpush.bf16.xpose.msra.mxu0 0
        %1680 = vmatpush.bf16.xpose.msra.mxu0 %v1671
        %1681 = vmatmul.bf16.gmra.mxu0 %v1668
        %v1682 = vpop.f32.mrf.mxu0
        %v1683 = vadd.f32 %v1640, %v1682
        %v1684 = vpop.f32.mrf.mxu0
        %1685 = vdwg.mxu0
        %v1686 = vunpack.c.l.b16 %v1632
        %v1687 = vunpack.c.l.b16 %v1634
        %v1688 = vpack.c.b16 %v1687, %v1686
        %v1690 = vsel %vm1201, %v1620, 0
        %v1693 = vsel %vm1201, %v1688, 0
        %1695 = vmatpush.bf16.xpose.msra.mxu0 0
        %1696 = vmatpush.bf16.xpose.msra.mxu0 0
        %1697 = vmatpush.bf16.xpose.msra.mxu0 0
        %1698 = vmatpush.bf16.xpose.msra.mxu0 0
        %1699 = vmatpush.bf16.xpose.msra.mxu0 0
        %1700 = vmatpush.bf16.xpose.msra.mxu0 0
        %1701 = vmatpush.bf16.xpose.msra.mxu0 0
        %1702 = vmatpush.bf16.xpose.msra.mxu0 %v1693
        %1703 = vmatmul.bf16.gmra.mxu0 %v1690
        %v1704 = vpop.f32.mrf.mxu0
        %v1705 = vadd.f32 %v1640, %v1704
        %v1706 = vpop.f32.mrf.mxu0
        %1707 = vdwg.mxu0
        %v1708 = vunpack.c.l.b16 %v1636
        %v1709 = vunpack.c.l.b16 %v1638
        %v1710 = vpack.c.b16 %v1709, %v1708
        %v1712 = vsel %vm1201, %v1622, 0
        %v1715 = vsel %vm1201, %v1710, 0
        %1717 = vmatpush.bf16.xpose.msra.mxu0 0
        %1718 = vmatpush.bf16.xpose.msra.mxu0 0
        %1719 = vmatpush.bf16.xpose.msra.mxu0 0
        %1720 = vmatpush.bf16.xpose.msra.mxu0 0
        %1721 = vmatpush.bf16.xpose.msra.mxu0 0
        %1722 = vmatpush.bf16.xpose.msra.mxu0 0
        %1723 = vmatpush.bf16.xpose.msra.mxu0 0
        %1724 = vmatpush.bf16.xpose.msra.mxu0 %v1715
        %1725 = vmatmul.bf16.gmra.mxu0 %v1712
        %v1726 = vpop.f32.mrf.mxu0
        %v1727 = vadd.f32 %v1640, %v1726
        %v1728 = vpop.f32.mrf.mxu0
        %1729 = vdwg.mxu0
        %v1730 = vsel %vm1432, %v1661, -inf
        %1731 = vmax.xlane.f32.xlu0 %v1730
        %v1732 = vpop.xlane.xlu0 %1731
        %v1733 = vsel %vm1432, %v1683, -inf
        %1734 = vmax.xlane.f32.xlu0 %v1733
        %v1735 = vpop.xlane.xlu0 %1734
        %v1736 = vsel %vm1432, %v1705, -inf
        %1737 = vmax.xlane.f32.xlu0 %v1736
        %v1738 = vpop.xlane.xlu0 %1737
        %v1739 = vsel %vm1432, %v1727, -inf
        %1740 = vmax.xlane.f32.xlu0 %v1739
        %v1741 = vpop.xlane.xlu0 %1740
        %v1742 = vsub.f32 %v1661, %v1732
        %v1743 = vsub.f32 %v1683, %v1735
        %v1744 = vsub.f32 %v1705, %v1738
        %v1745 = vsub.f32 %v1727, %v1741
        %v1746 = vmul.f32 %v1742, 1.442695
        %v1747 = vpow.pop %v1746
        %v1748 = vmul.f32 %v1743, 1.442695
        %v1749 = vpow.pop %v1748
        %v1750 = vmul.f32 %v1744, 1.442695
        %v1751 = vpow.pop %v1750
        %v1752 = vmul.f32 %v1745, 1.442695
        %v1753 = vpow.pop %v1752
        %v1754 = vsel %vm1432, %v1747, 0.0
        %1755 = vadd.xlane.f32.xlu0 %v1754
        %v1756 = vpop.xlane.xlu0 %1755
        %v1757 = vsel %vm1432, %v1749, 0.0
        %1758 = vadd.xlane.f32.xlu0 %v1757
        %v1759 = vpop.xlane.xlu0 %1758
        %v1760 = vsel %vm1432, %v1751, 0.0
        %1761 = vadd.xlane.f32.xlu0 %v1760
        %v1762 = vpop.xlane.xlu0 %1761
        %v1763 = vsel %vm1432, %v1753, 0.0
        %1764 = vadd.xlane.f32.xlu0 %v1763
        %v1765 = vpop.xlane.xlu0 %1764
        %v1766 = vrcp.pop %v1756
        %v1767 = vrcp.pop %v1759
        %v1768 = vrcp.pop %v1762
        %v1769 = vrcp.pop %v1765
        %v1770 = vmul.f32 %v1747, %v1766
        %v1771 = vmul.f32 %v1749, %v1767
        %v1772 = vmul.f32 %v1751, %v1768
        %v1773 = vmul.f32 %v1753, %v1769
        %v1774 = vpack.c.bf16 %v1770, %v1770
        %v1775 = vpack.c.bf16 %v1771, %v1771
        %v1776 = vpack.c.bf16 %v1772, %v1772
        %v1777 = vpack.c.bf16 %v1773, %v1773
        %1778 = vrot.lane.b32.xlu0 %v1644, 96
        %v1779 = vpop.permute.xlu0 %1778
        %v1782 = vsel %vm1432, %v1774, 0
        %1784 = vmatpush.bf16.msra.mxu0 0
        %1785 = vmatpush.bf16.msra.mxu0 0
        %1786 = vmatpush.bf16.msra.mxu0 0
        %1787 = vmatpush.bf16.msra.mxu0 0
        %1788 = vmatpush.bf16.msra.mxu0 0
        %1789 = vmatpush.bf16.msra.mxu0 0
        %1790 = vmatpush.bf16.msra.mxu0 0
        %1791 = vmatpush.bf16.msra.mxu0 %v1779
        %1792 = vmatmul.bf16.gmra.mxu0 %v1782
        %v1793 = vpop.f32.mrf.mxu0
        %v1794 = vadd.f32 0.0, %v1793
        %v1795 = vpop.f32.mrf.mxu0
        %1796 = vdwg.mxu0
        %1797 = vrot.lane.b32.xlu0 %v1666, 96
        %v1798 = vpop.permute.xlu0 %1797
        %v1801 = vsel %vm1432, %v1775, 0
        %1803 = vmatpush.bf16.msra.mxu0 0
        %1804 = vmatpush.bf16.msra.mxu0 0
        %1805 = vmatpush.bf16.msra.mxu0 0
        %1806 = vmatpush.bf16.msra.mxu0 0
        %1807 = vmatpush.bf16.msra.mxu0 0
        %1808 = vmatpush.bf16.msra.mxu0 0
        %1809 = vmatpush.bf16.msra.mxu0 0
        %1810 = vmatpush.bf16.msra.mxu0 %v1798
        %1811 = vmatmul.bf16.gmra.mxu0 %v1801
        %v1812 = vpop.f32.mrf.mxu0
        %v1813 = vadd.f32 0.0, %v1812
        %v1814 = vpop.f32.mrf.mxu0
        %1815 = vdwg.mxu0
        %1816 = vrot.lane.b32.xlu0 %v1688, 96
        %v1817 = vpop.permute.xlu0 %1816
        %v1820 = vsel %vm1432, %v1776, 0
        %1822 = vmatpush.bf16.msra.mxu0 0
        %1823 = vmatpush.bf16.msra.mxu0 0
        %1824 = vmatpush.bf16.msra.mxu0 0
        %1825 = vmatpush.bf16.msra.mxu0 0
        %1826 = vmatpush.bf16.msra.mxu0 0
        %1827 = vmatpush.bf16.msra.mxu0 0
        %1828 = vmatpush.bf16.msra.mxu0 0
        %1829 = vmatpush.bf16.msra.mxu0 %v1817
        %1830 = vmatmul.bf16.gmra.mxu0 %v1820
        %v1831 = vpop.f32.mrf.mxu0
        %v1832 = vadd.f32 0.0, %v1831
        %v1833 = vpop.f32.mrf.mxu0
        %1834 = vdwg.mxu0
        %1835 = vrot.lane.b32.xlu0 %v1710, 96
        %v1836 = vpop.permute.xlu0 %1835
        %v1839 = vsel %vm1432, %v1777, 0
        %1841 = vmatpush.bf16.msra.mxu0 0
        %1842 = vmatpush.bf16.msra.mxu0 0
        %1843 = vmatpush.bf16.msra.mxu0 0
        %1844 = vmatpush.bf16.msra.mxu0 0
        %1845 = vmatpush.bf16.msra.mxu0 0
        %1846 = vmatpush.bf16.msra.mxu0 0
        %1847 = vmatpush.bf16.msra.mxu0 0
        %1848 = vmatpush.bf16.msra.mxu0 %v1836
        %1849 = vmatmul.bf16.gmra.mxu0 %v1839
        %v1850 = vpop.f32.mrf.mxu0
        %v1851 = vadd.f32 0.0, %v1850
        %v1852 = vpop.f32.mrf.mxu0
        %1853 = vdwg.mxu0
        %1855 = vrot.lane.b32.xlu0 %v1813, 8
        %v1856 = vpop.permute.xlu0 %1855
        %1859 = vrot.lane.b32.xlu0 %v1832, 16
        %v1860 = vpop.permute.xlu0 %1859
        %1863 = vrot.lane.b32.xlu0 %v1851, 24
        %v1864 = vpop.permute.xlu0 %1863
        %v1866 = vsel %vm1201, %v1794, %v1856
        %v1867 = vsel %vm1432, %v1866, %v1860
        %v1868 = vsel %vm1434, %v1867, %v1864
        %v1869 = vpack.c.bf16 %v1868, %v1868
        %v1870 = vld [vmem:[#allocation17] sm:$0xf]
        %v1871 = vld [vmem:[#allocation17 + $0x4] sm:$0xf]
        %v1872 = vld [vmem:[#allocation17 + $0x8] sm:$0xf]
        %v1873 = vld [vmem:[#allocation17 + $0xc] sm:$0xf]
        %v1874 = vld [vmem:[#allocation19] sm:$0x1]
        %v1876 = vperm.slane %v1874, 0
        %v1882 = vunpack.c.l.b16 %v1870
        %v1883 = vunpack.c.l.b16 %v1871
        %v1884 = vunpack.c.l.b16 %v1872
        %v1885 = vunpack.c.l.b16 %v1873
        %v1886 = vpack.c.b16 %v1883, %v1882
        %v1887 = vpack.c.b16 %v1885, %v1884
        %v1891 = vsel %vm1132, %v1869, 0
        %1893 = vmatpush.bf16.msra.mxu0 0
        %1894 = vmatpush.bf16.msra.mxu0 0
        %1895 = vmatpush.bf16.msra.mxu0 0
        %1896 = vmatpush.bf16.msra.mxu0 0
        %1897 = vmatpush.bf16.msra.mxu0 0
        %1898 = vmatpush.bf16.msra.mxu0 0
        %1899 = vmatpush.bf16.msra.mxu0 %v1887
        %1900 = vmatpush.bf16.msra.mxu0 %v1886
        %1901 = vmatmul.bf16.gmra.mxu0 %v1891
        %v1902 = vpop.f32.mrf.mxu0
        %v1903 = vadd.f32 %v1876, %v1902
        %v1904 = vpop.f32.mrf.mxu0
        %1905 = vdwg.mxu0
        %v1906 = vadd.f32 %v1903, %v1535
        %v1907 = vld [vmem:[#allocation20] sm:$0x1]
        %v1908 = vld [vmem:[#allocation22] sm:$0x1]
        %v1909 = vsel %vm1132, %v1906, 0.0
        %1910 = vadd.xlane.f32.xlu0 %v1909
        %v1911 = vpop.xlane.xlu0 %1910
        %v1912 = vmul.f32 %v1911, %v1485
        %v1913 = vsub.f32 %v1906, %v1912
        %v1914 = vmul.f32 %v1913, %v1913
        %v1915 = vsel %vm1132, %v1914, 0.0
        %1916 = vadd.xlane.f32.xlu0 %v1915
        %v1917 = vpop.xlane.xlu0 %1916
        %v1918 = vmul.f32 %v1917, %v1498
        %v1920 = vperm.slane %v1907, 0
        %v1922 = vmul.f32 %v1920, %v1913
        %v1923 = vrsqrt.pop %v1918
        %v1924 = vmul.f32 %v1923, %v1918
        %v1925 = vmul.f32 %v1924, %v1923
        %v1926 = vmul.f32 0.5, %v1925
        %v1927 = vsub.f32 1.5, %v1926
        %v1928 = vmul.f32 %v1923, %v1927
        %v1929 = vmul.f32 %v1918, %v1928
        %vm1930 = vcmp.eq.f32.partialorder %v1918, inf
        %v1931 = vsel %vm1930, %v1918, %v1929
        %vm1932 = vcmp.eq.f32.partialorder %v1918, 0.0
        %v1933 = vand.u32 %v1918, 2147483648
        %v1934 = vsel %vm1932, %v1933, %v1931
        %v1935 = vadd.f32 %v1934, 1e-06
        %v1936 = vrcp.pop %v1935
        %v1937 = vmul.f32 %v1935, %v1936
        %v1938 = vsub.f32 1.0, %v1937
        %v1939 = vmul.f32 %v1936, %v1938
        %v1940 = vadd.f32 %v1936, %v1939
        %vm1941 = vweird.f32 %v1935
        %vm1942 = vweird.f32 %v1936
        %vm1943 = vmor %vm1941, %vm1942
        %v1944 = vsel %vm1943, %v1936, %v1940
        %v1945 = vand.u32 2147483647, %v1935
        %vm1946 = vcmp.eq.f32.partialorder %v1945, 8.507059e+37
        %v1947 = vand.u32 %v1935, 2147483648
        %v1948 = vor.u32 1.1754944e-38, %v1947
        %v1949 = vsel %vm1946, %v1948, %v1944
        %v1950 = vmul.f32 %v1922, %v1949
        %v1952 = vperm.slane %v1908, 0
        %v1954 = vadd.f32 %v1950, %v1952
        %v1955 = vpack.c.bf16 %v1954, %v1954
        %v1956 = vld [vmem:[#allocation23] sm:$0xf]
        %v1957 = vld [vmem:[#allocation23 + $0x4] sm:$0xf]
        %v1958 = vld [vmem:[#allocation23 + $0x8] sm:$0xf]
        %v1959 = vld [vmem:[#allocation23 + $0xc] sm:$0xf]
        %v1960 = vld [vmem:[#allocation25] sm:$0x1]
        %v1962 = vperm.slane %v1960, 0
        %v1968 = vunpack.c.l.b16 %v1956
        %v1969 = vunpack.c.l.b16 %v1957
        %v1970 = vunpack.c.l.b16 %v1958
        %v1971 = vunpack.c.l.b16 %v1959
        %v1972 = vpack.c.b16 %v1969, %v1968
        %v1973 = vpack.c.b16 %v1971, %v1970
        %v1977 = vsel %vm1132, %v1955, 0
        %1979 = vmatpush.bf16.msra.mxu0 0
        %1980 = vmatpush.bf16.msra.mxu0 0
        %1981 = vmatpush.bf16.msra.mxu0 0
        %1982 = vmatpush.bf16.msra.mxu0 0
        %1983 = vmatpush.bf16.msra.mxu0 0
        %1984 = vmatpush.bf16.msra.mxu0 0
        %1985 = vmatpush.bf16.msra.mxu0 %v1973
        %1986 = vmatpush.bf16.msra.mxu0 %v1972
        %1987 = vmatmul.bf16.gmra.mxu0 %v1977
        %v1988 = vpop.f32.mrf.mxu0
        %v1989 = vadd.f32 %v1962, %v1988
        %v1990 = vpop.f32.mrf.mxu0
        %1991 = vdwg.mxu0
        %v1992 = vmax.f32 %v1989, 0.0
        %v1993 = vpack.c.bf16 %v1992, %v1992
        %v1994 = vld [vmem:[%s22] sm:$0xf]
        %v1995 = vld [vmem:[%s22 + $0x4] sm:$0xf]
        %v1996 = vld [vmem:[%s22 + $0x8] sm:$0xf]
        %v1997 = vld [vmem:[%s22 + $0xc] sm:$0xf]
        %v1998 = vld [vmem:[%s22 + $0x10] sm:$0xf]
        %v1999 = vld [vmem:[%s22 + $0x14] sm:$0xf]
        %v2000 = vld [vmem:[%s22 + $0x18] sm:$0xf]
        %v2001 = vld [vmem:[%s22 + $0x1c] sm:$0xf]
        %v2002 = vld [vmem:[%s23] sm:$0x1]
        %v2004 = vperm.slane %v2002, 0
        %v2014 = vunpack.c.l.b16 %v1994
        %v2015 = vunpack.c.l.b16 %v1995
        %v2016 = vunpack.c.l.b16 %v1996
        %v2017 = vunpack.c.l.b16 %v1997
        %v2018 = vunpack.c.l.b16 %v1998
        %v2019 = vunpack.c.l.b16 %v1999
        %v2020 = vunpack.c.l.b16 %v2000
        %v2021 = vunpack.c.l.b16 %v2001
        %v2022 = vpack.c.b16 %v2015, %v2014
        %v2023 = vpack.c.b16 %v2017, %v2016
        %v2024 = vpack.c.b16 %v2019, %v2018
        %v2025 = vpack.c.b16 %v2021, %v2020
        %vm2030 = vcmask 523264
        %v2032 = vsel %vm2030, %v1993, 0
        %2034 = vmatpush.bf16.msra.mxu0 0
        %2035 = vmatpush.bf16.msra.mxu0 0
        %2036 = vmatpush.bf16.msra.mxu0 0
        %2037 = vmatpush.bf16.msra.mxu0 0
        %2038 = vmatpush.bf16.msra.mxu0 %v2025
        %2039 = vmatpush.bf16.msra.mxu0 %v2024
        %2040 = vmatpush.bf16.msra.mxu0 %v2023
        %2041 = vmatpush.bf16.msra.mxu0 %v2022
        %2042 = vmatmul.bf16.gmra.mxu0 %v2032
        %v2043 = vpop.f32.mrf.mxu0
        %v2044 = vadd.f32 %v2004, %v2043
        %v2045 = vpop.f32.mrf.mxu0
        %2046 = vdwg.mxu0
        %v2047 = vadd.f32 %v2044, %v1954
        %v2048 = vld [vmem:[%s24] sm:$0x1]
        %v2049 = vld [vmem:[%s25] sm:$0x1]
        %v2050 = vsel %vm1132, %v2047, 0.0
        %2051 = vadd.xlane.f32.xlu0 %v2050
        %v2052 = vpop.xlane.xlu0 %2051
        %v2053 = vmul.f32 %v2052, %v1485
        %v2054 = vsub.f32 %v2047, %v2053
        %v2055 = vmul.f32 %v2054, %v2054
        %v2056 = vsel %vm1132, %v2055, 0.0
        %2057 = vadd.xlane.f32.xlu0 %v2056
        %v2058 = vpop.xlane.xlu0 %2057
        %v2059 = vmul.f32 %v2058, %v1498
        %v2061 = vperm.slane %v2048, 0
        %v2063 = vmul.f32 %v2061, %v2054
        %v2064 = vrsqrt.pop %v2059
        %v2065 = vmul.f32 %v2064, %v2059
        %v2066 = vmul.f32 %v2065, %v2064
        %v2067 = vmul.f32 0.5, %v2066
        %v2068 = vsub.f32 1.5, %v2067
        %v2069 = vmul.f32 %v2064, %v2068
        %v2070 = vmul.f32 %v2059, %v2069
        %vm2071 = vcmp.eq.f32.partialorder %v2059, inf
        %v2072 = vsel %vm2071, %v2059, %v2070
        %vm2073 = vcmp.eq.f32.partialorder %v2059, 0.0
        %v2074 = vand.u32 %v2059, 2147483648
        %v2075 = vsel %vm2073, %v2074, %v2072
        %v2076 = vadd.f32 %v2075, 1e-06
        %v2077 = vrcp.pop %v2076
        %v2078 = vmul.f32 %v2076, %v2077
        %v2079 = vsub.f32 1.0, %v2078
        %v2080 = vmul.f32 %v2077, %v2079
        %v2081 = vadd.f32 %v2077, %v2080
        %vm2082 = vweird.f32 %v2076
        %vm2083 = vweird.f32 %v2077
        %vm2084 = vmor %vm2082, %vm2083
        %v2085 = vsel %vm2084, %v2077, %v2081
        %v2086 = vand.u32 2147483647, %v2076
        %vm2087 = vcmp.eq.f32.partialorder %v2086, 8.507059e+37
        %v2088 = vand.u32 %v2076, 2147483648
        %v2089 = vor.u32 1.1754944e-38, %v2088
        %v2090 = vsel %vm2087, %v2089, %v2085
        %v2091 = vmul.f32 %v2063, %v2090
        %v2093 = vperm.slane %v2049, 0
        %v2095 = vadd.f32 %v2091, %v2093
        %2096 = vst.msk [vmem:[%s1075] sm:$0xff] %vm1132, %v2095
        %s2097 = sand.u32 %s638, 1
        %s2098 = scalar_lea.sflag [#allocation4], %s2097
        %s2099 = sand.u32 %s638, 1
        %s2100 = smul.addr %s2099, 8
        %s2101 = scalar_lea.vmem [#allocation26], %s2100
        // Predicated region
        $region185: #{tpu_custom_call.1} parent=123 // pred_check
          %p2102 = pneg %p648
        $region186: #{tpu_custom_call.1} parent=123 // pred_check_branch
          %2104 = sbr.rel (%p2102) target = $region188
        $region187: #{tpu_custom_call.1} parent=123 // pred_region
          %2106 = vsyncadd %s2098, 0
          %s2107 = sadd.s32 %s53, %s52
          %s2108 = smul.addr %s2107, 8
          %s2109 = scalar_lea.hbm %s26, %s2108
          %s2111 = sshll.u32 %s2101, 4
          %s2112 = int_to_ptr.vmem [resolvable:$true] %s2111
          %s2113 = sshll.u32 %s2109, 4
          %s2114 = int_to_ptr.hbm [resolvable:$true] %s2113
          %2116 = dma.vmem_to_hbm [thread:$0]  %s2112, 128, %s2114, %s2098
        $region188: #{tpu_custom_call.1} parent=123 // pred_fallthru
          _
      $region124: #{tpu_custom_call.1} parent=5 // pred_fallthru
        _
      %p2117 = scmp.le.s32.totalorder 2, %s43
      // Predicated region
      $region189: #{tpu_custom_call.1} parent=5 // pred_check
        %p2118 = pneg %p2117
      $region190: #{tpu_custom_call.1} parent=5 // pred_check_branch
        %2120 = sbr.rel (%p2118) target = $region192
      $region191: #{tpu_custom_call.1} parent=5 // pred_region
        %s2121 = ssub.s32 %s43, 2
        // Predicated region
        $region193: #{tpu_custom_call.1} parent=191 // pred_check
          %p2122 = pneg %p654
        $region194: #{tpu_custom_call.1} parent=191 // pred_check_branch
          %2124 = sbr.rel (%p2122) target = $region196
        $region195: #{tpu_custom_call.1} parent=191 // pred_region
          %s2125 = sand.u32 %s639, 1
          %s2126 = scalar_lea.sflag [#allocation4], %s2125
          %s2127 = sand.u32 %s639, 1
          %s2128 = smul.addr %s2127, 8
          %s2129 = scalar_lea.vmem [#allocation26], %s2128
          %2131 = dma.done %s2126, 128
        $region196: #{tpu_custom_call.1} parent=191 // pred_fallthru
          _
      $region192: #{tpu_custom_call.1} parent=5 // pred_fallthru
        _
    $region6: #{tpu_custom_call.1} parent=1 // loop_footer
      %s47 = sadd.s32 1, %s43
    $region7: #{tpu_custom_call.1} parent=1 // loop_footer_branch
      %42 = sbr.rel target = $region3
    $region8: #{tpu_custom_call.1} parent=1 // loop_exit
      _
    %2132 = vsyncpa [#allocation3], 1
    %s2133 = scalar_lea.sflag [#allocation3], 1
    %2134 = vsyncpa %s2133, 1
    %2135 = vsyncpa [#allocation6], 1
    %2136 = vsyncpa [#allocation9], 1
    %2137 = vsyncpa [#allocation12], 1
    %2138 = vsyncpa [#allocation15], 1
    %2139 = vsyncpa [#allocation18], 1
    %2140 = vsyncpa [#allocation21], 1
    %2141 = vsyncpa [#allocation24], 1
    %2142 = vsyncpa [#allocation4], 1
    %s2143 = scalar_lea.sflag [#allocation4], 1
    %2144 = vsyncpa %s2143, 1

</llo_original>
